<compile_context>
chip_gen: v7x
topology: tpu7x:2x2x1
jax: 0.10.0
libtpu: 0.0.40
codegen_flags: <defaults>
</compile_context>

<pallas_src>
import functools

import jax
import jax.numpy as jnp
from jax.experimental import pallas as pl
from jax.experimental.pallas import tpu as pltpu


def encoder_layer_kernel(x_ref, wqkv_ref, bqkv_ref, wo_ref, bo_ref,
                         n1w_ref, n1b_ref, n2w_ref, n2b_ref,
                         w1_ref, b1_ref, w2_ref, b2_ref,
                         out_ref, *, bt, seq, nhead, eps):
    rows, d = x_ref.shape            # rows = bt * seq
    dh = d // nhead

    def layer_norm(v, w_r, b_r):     # v: (rows, D) f32
        mu = jnp.mean(v, axis=-1, keepdims=True)
        var = jnp.mean((v - mu) ** 2, axis=-1, keepdims=True)
        return (v - mu) * jax.lax.rsqrt(var + eps) * w_r[...] + b_r[...]

    # ---- self-attention block (pre-norm) ----
    y = layer_norm(x_ref[...].astype(jnp.float32), n1w_ref, n1b_ref)
    y = y.astype(jnp.bfloat16)
    # wqkv pre-transposed to (D, 3D); 1/sqrt(Dh) pre-folded into the q columns.
    qkv = jnp.dot(y, wqkv_ref[...],
                  preferred_element_type=jnp.float32) + bqkv_ref[...]  # (rows, 3D) f32

    def split_heads(col0):
        # Slice q/k/v directly from the f32 accumulator (bias already added),
        # downcast, and stack heads into the einsum batch dim: (nhead*bt, S, Dh).
        t = qkv[:, col0:col0 + d].astype(jnp.bfloat16).reshape(bt, seq, d)
        return jnp.concatenate(
            [t[:, :, h * dh:(h + 1) * dh] for h in range(nhead)], axis=0)

    qh = split_heads(0)
    kh = split_heads(d)
    vh = split_heads(2 * d)

    # One heads-batched score matmul + softmax + PV matmul for all heads.
    s = jnp.einsum('bqd,bkd->bqk', qh, kh,
                   preferred_element_type=jnp.float32)          # (nhead*bt, S, S) f32
    m = jnp.max(s, axis=-1, keepdims=True)
    p = jnp.exp(s - m)
    inv = pl.reciprocal(jnp.sum(p, axis=-1, keepdims=True), approx=True)
    p = (p * inv).astype(jnp.bfloat16)
    o = jnp.einsum('bqk,bkd->bqd', p, vh,
                   preferred_element_type=jnp.float32)          # (nhead*bt, S, Dh) f32

    # Merge heads back to a single lane-dense (rows, D) value (one merge,
    # no per-head masked stores), then the output projection.
    attn_in = jnp.concatenate(
        [o[h * bt:(h + 1) * bt] for h in range(nhead)], axis=-1)  # (bt, S, D)
    attn_in = attn_in.reshape(rows, d).astype(jnp.bfloat16)

    attn = jnp.dot(attn_in, wo_ref[...],
                   preferred_element_type=jnp.float32) + bo_ref[...]
    # TODO(synk): dropout1 / dropout / dropout2 are identity in eval mode.
    x1 = x_ref[...].astype(jnp.float32) + attn

    # ---- feed-forward block (pre-norm) ----
    y2 = layer_norm(x1, n2w_ref, n2b_ref).astype(jnp.bfloat16)
    h1 = jnp.dot(y2, w1_ref[...],
                 preferred_element_type=jnp.float32) + b1_ref[...]
    h1 = jnp.maximum(h1, 0.0).astype(jnp.bfloat16)              # F.relu
    ff = jnp.dot(h1, w2_ref[...],
                 preferred_element_type=jnp.float32) + b2_ref[...]
    out_ref[...] = (x1 + ff).astype(out_ref.dtype)


def _vmem_limit_bytes():
    # Explicit scoped-VMEM budget: well above the 16/32 MiB defaults, with
    # headroom below physical capacity (64 MiB on v7x, 128 MiB on v5e/v6e).
    try:
        cap = pltpu.get_tpu_info().vmem_capacity_bytes
        return int(min(cap * 0.8, 100 * 1024 * 1024))
    except Exception:
        return 48 * 1024 * 1024


def multi_stream_encoder_layer(src, params, *, nhead, eps=1e-5, target_rows=256):
    """src: (S, B, D)  -- PyTorch batch_first=False convention (modality=None)."""
    S, B, D = src.shape
    Fdim = params["linear1_w"].shape[0]
    assert D % nhead == 0
    dh = D // nhead
    # f32 sublane tile is 8: keeps the (rows, D) <-> (bt, S, D) reshapes
    # layout-free and the (rows, D) block shape legal.
    assert S % 8 == 0, "S must be a multiple of 8 (sublane tile)"
    scale = 1.0 / (dh ** 0.5)

    # ---- parameter preparation (host-side, once) ----
    # Pre-transpose weights to (in, out); fold the attention scale into q proj.
    qscale = jnp.concatenate([jnp.full((D,), scale, jnp.float32),
                              jnp.ones((2 * D,), jnp.float32)])
    wqkv = (params["in_proj_w"].T * qscale[None, :]).astype(jnp.bfloat16)   # (D, 3D)
    bqkv = (params["in_proj_b"] * qscale).astype(jnp.float32)
    wo = params["out_proj_w"].T.astype(jnp.bfloat16)                        # (D, D)
    w1 = params["linear1_w"].T.astype(jnp.bfloat16)                         # (D, F)
    w2 = params["linear2_w"].T.astype(jnp.bfloat16)                         # (F, D)

    def row2d(b):
        return b.reshape(1, -1).astype(jnp.float32)

    # ---- activations: (S, B, D) -> (B*S, D), batch-major rows ----
    x = jnp.transpose(src, (1, 0, 2)).reshape(B * S, D)

    # Row-tile: fill the MXU (target_rows ~ 256; raise toward 512 on v6e when
    # B*S allows), but keep >= 2 grid steps whenever B permits so both v7x
    # TensorCores get a "parallel" block and activation DMAs overlap compute.
    bt = min(B, max(1, target_rows // S))
    while B % bt:
        bt -= 1
    if B >= 2:
        while B // bt < 2:
            bt -= 1
            while B % bt:
                bt -= 1
    rows = bt * S
    assert rows % 8 == 0
    grid = (B // bt,)

    kernel = functools.partial(encoder_layer_kernel, bt=bt, seq=S,
                               nhead=nhead, eps=eps)

    def build_specs(single_buffer_weights):
        if single_buffer_weights:
            # Constant-index blocks: single-buffer (no point double-buffering
            # resident weights; halves their VMEM footprint).
            def resident(shape):
                return pl.BlockSpec(shape, lambda i: (0, 0),
                                    pipeline_mode=pl.Buffered(1))
        else:
            def resident(shape):
                return pl.BlockSpec(shape, lambda i: (0, 0))
        return [
            pl.BlockSpec((rows, D), lambda i: (i, 0)),            # activations
            resident((D, 3 * D)), resident((1, 3 * D)),           # in_proj (T), bias
            resident((D, D)), resident((1, D)),                   # out_proj (T), bias
            resident((1, D)), resident((1, D)),                   # norm1 w, b
            resident((1, D)), resident((1, D)),                   # norm2 w, b
            resident((D, Fdim)), resident((1, Fdim)),             # linear1 (T), bias
            resident((Fdim, D)), resident((1, D)),                # linear2 (T), bias
        ]

    def run(single_buffer_weights):
        return pl.pallas_call(
            kernel,
            out_shape=jax.ShapeDtypeStruct((B * S, D), src.dtype),
            grid=grid,
            in_specs=build_specs(single_buffer_weights),
            out_specs=pl.BlockSpec((rows, D), lambda i: (i, 0)),
            compiler_params=pltpu.CompilerParams(
                dimension_semantics=("parallel",),
                vmem_limit_bytes=_vmem_limit_bytes()),
        )(x,
          wqkv, row2d(bqkv),
          wo, row2d(params["out_proj_b"]),
          row2d(params["norm1_w"]), row2d(params["norm1_b"]),
          row2d(params["norm2_w"]), row2d(params["norm2_b"]),
          w1, row2d(params["linear1_b"]),
          w2, row2d(params["linear2_b"]))

    try:
        out = run(single_buffer_weights=True)
    except Exception:
        # Fallback for Pallas versions that reject Buffered(1) single-buffering.
        out = run(single_buffer_weights=False)

    return jnp.transpose(out.reshape(B, S, D), (1, 0, 2))        # back to (S, B, D)


def reference(src, params, nhead, eps=1e-5):
    """Pure-JAX f32 reference of the same forward pass."""
    x = src.astype(jnp.float32)
    S, B, D = x.shape
    Dh = D // nhead

    def ln(v, w, b):
        mu = v.mean(-1, keepdims=True)
        var = ((v - mu) ** 2).mean(-1, keepdims=True)
        return (v - mu) / jnp.sqrt(var + eps) * w + b

    y = ln(x, params["norm1_w"], params["norm1_b"])
    qkv = y @ params["in_proj_w"].T + params["in_proj_b"]
    q, k, v = qkv[..., :D], qkv[..., D:2 * D], qkv[..., 2 * D:]

    def split(t):  # (S,B,D) -> (B,H,S,Dh)
        return t.reshape(S, B, nhead, Dh).transpose(1, 2, 0, 3)

    qh, kh, vh = split(q), split(k), split(v)
    s = jnp.einsum('bhqd,bhkd->bhqk', qh, kh) / (Dh ** 0.5)
    p = jax.nn.softmax(s, axis=-1)
    o = jnp.einsum('bhqk,bhkd->bhqd', p, vh)
    o = o.transpose(2, 0, 1, 3).reshape(S, B, D)
    attn = o @ params["out_proj_w"].T + params["out_proj_b"]
    x = x + attn
    y2 = ln(x, params["norm2_w"], params["norm2_b"])
    h1 = jnp.maximum(y2 @ params["linear1_w"].T + params["linear1_b"], 0.0)
    ff = h1 @ params["linear2_w"].T + params["linear2_b"]
    return x + ff


if __name__ == "__main__":
    S, B, D, H, FF = 8, 2, 32, 4, 64

    key = jax.random.PRNGKey(0)
    keys = jax.random.split(key, 16)

    params = {
        "in_proj_w":  0.1 * jax.random.normal(keys[0], (3 * D, D), jnp.float32),
        "in_proj_b":  0.05 * jax.random.normal(keys[1], (3 * D,), jnp.float32),
        "out_proj_w": 0.1 * jax.random.normal(keys[2], (D, D), jnp.float32),
        "out_proj_b": 0.05 * jax.random.normal(keys[3], (D,), jnp.float32),
        "norm1_w": jnp.ones((D,), jnp.float32),
        "norm1_b": jnp.zeros((D,), jnp.float32),
        "norm2_w": jnp.ones((D,), jnp.float32),
        "norm2_b": jnp.zeros((D,), jnp.float32),
        "linear1_w": 0.1 * jax.random.normal(keys[4], (FF, D), jnp.float32),
        "linear1_b": 0.05 * jax.random.normal(keys[5], (FF,), jnp.float32),
        "linear2_w": 0.1 * jax.random.normal(keys[6], (D, FF), jnp.float32),
        "linear2_b": 0.05 * jax.random.normal(keys[7], (D,), jnp.float32),
    }

    src = jax.random.normal(keys[8], (S, B, D), jnp.float32)

    out = multi_stream_encoder_layer(src, params, nhead=H)
    out = jax.block_until_ready(out)

    ref = jax.block_until_ready(reference(src, params, H))
    assert out.shape == (S, B, D)
    # bf16 MXU inputs -> loosened tolerance vs. the f32 reference.
    assert jnp.allclose(out, ref, atol=2e-2, rtol=2e-2), \
        f"max abs err {jnp.max(jnp.abs(out - ref))}"

    print("KERNEL_OK")
</pallas_src>

<mosaic_0001>
module attributes {stable_mosaic.version = 11 : i64} {
  func.func @encoder_layer_kernel(%arg0: i32, %arg1: memref<8x32xf32, #tpu.memory_space<vmem>>, %arg2: memref<32x96xbf16, #tpu.memory_space<vmem>>, %arg3: memref<1x96xf32, #tpu.memory_space<vmem>>, %arg4: memref<32x32xbf16, #tpu.memory_space<vmem>>, %arg5: memref<1x32xf32, #tpu.memory_space<vmem>>, %arg6: memref<1x32xf32, #tpu.memory_space<vmem>>, %arg7: memref<1x32xf32, #tpu.memory_space<vmem>>, %arg8: memref<1x32xf32, #tpu.memory_space<vmem>>, %arg9: memref<1x32xf32, #tpu.memory_space<vmem>>, %arg10: memref<32x64xbf16, #tpu.memory_space<vmem>>, %arg11: memref<1x64xf32, #tpu.memory_space<vmem>>, %arg12: memref<64x32xbf16, #tpu.memory_space<vmem>>, %arg13: memref<1x32xf32, #tpu.memory_space<vmem>>, %arg14: memref<8x32xf32, #tpu.memory_space<vmem>>) attributes {dimension_semantics = [#tpu.dimension_semantics<parallel>], iteration_bounds = array<i64: 2>, scalar_prefetch = 0 : i64, scratch_operands = 0 : i64, tpu.core_type = #tpu.core_type<tc>, window_params = [{transform_indices = @transform_0, window_bounds = array<i64: 8, 32>}, {pipeline_mode = #tpu.pipeline_mode<synchronous>, transform_indices = @transform_1, window_bounds = array<i64: 32, 96>}, {pipeline_mode = #tpu.pipeline_mode<synchronous>, transform_indices = @transform_2, window_bounds = array<i64: 1, 96>}, {pipeline_mode = #tpu.pipeline_mode<synchronous>, transform_indices = @transform_3, window_bounds = array<i64: 32, 32>}, {pipeline_mode = #tpu.pipeline_mode<synchronous>, transform_indices = @transform_4, window_bounds = array<i64: 1, 32>}, {pipeline_mode = #tpu.pipeline_mode<synchronous>, transform_indices = @transform_5, window_bounds = array<i64: 1, 32>}, {pipeline_mode = #tpu.pipeline_mode<synchronous>, transform_indices = @transform_6, window_bounds = array<i64: 1, 32>}, {pipeline_mode = #tpu.pipeline_mode<synchronous>, transform_indices = @transform_7, window_bounds = array<i64: 1, 32>}, {pipeline_mode = #tpu.pipeline_mode<synchronous>, transform_indices = @transform_8, window_bounds = array<i64: 1, 32>}, {pipeline_mode = #tpu.pipeline_mode<synchronous>, transform_indices = @transform_9, window_bounds = array<i64: 32, 64>}, {pipeline_mode = #tpu.pipeline_mode<synchronous>, transform_indices = @transform_10, window_bounds = array<i64: 1, 64>}, {pipeline_mode = #tpu.pipeline_mode<synchronous>, transform_indices = @transform_11, window_bounds = array<i64: 64, 32>}, {pipeline_mode = #tpu.pipeline_mode<synchronous>, transform_indices = @transform_12, window_bounds = array<i64: 1, 32>}, {transform_indices = @transform_13, window_bounds = array<i64: 8, 32>}]} {
    %c0 = arith.constant 0 : index
    %c0_0 = arith.constant 0 : index
    %0 = vector.load %arg1[%c0, %c0_0] : memref<8x32xf32, #tpu.memory_space<vmem>>, vector<8x32xf32>
    %cst = arith.constant dense<0.000000e+00> : vector<8xf32>
    %1 = vector.multi_reduction <add>, %0, %cst [1] : vector<8x32xf32> to vector<8xf32>
    %2 = vector.shape_cast %1 : vector<8xf32> to vector<8x1xf32>
    %cst_1 = arith.constant 3.200000e+01 : f32
    %3 = vector.broadcast %cst_1 : f32 to vector<8x1xf32>
    %4 = arith.divf %2, %3 : vector<8x1xf32>
    %5 = vector.broadcast %4 : vector<8x1xf32> to vector<8x32xf32>
    %6 = arith.subf %0, %5 : vector<8x32xf32>
    %7 = arith.mulf %6, %6 : vector<8x32xf32>
    %cst_2 = arith.constant dense<0.000000e+00> : vector<8xf32>
    %8 = vector.multi_reduction <add>, %7, %cst_2 [1] : vector<8x32xf32> to vector<8xf32>
    %9 = vector.shape_cast %8 : vector<8xf32> to vector<8x1xf32>
    %cst_3 = arith.constant 3.200000e+01 : f32
    %10 = vector.broadcast %cst_3 : f32 to vector<8x1xf32>
    %11 = arith.divf %9, %10 : vector<8x1xf32>
    %12 = vector.broadcast %4 : vector<8x1xf32> to vector<8x32xf32>
    %13 = arith.subf %0, %12 : vector<8x32xf32>
    %cst_4 = arith.constant 9.99999974E-6 : f32
    %14 = vector.broadcast %cst_4 : f32 to vector<8x1xf32>
    %15 = arith.addf %11, %14 : vector<8x1xf32>
    %16 = math.rsqrt %15 : vector<8x1xf32>
    %17 = vector.broadcast %16 : vector<8x1xf32> to vector<8x32xf32>
    %18 = arith.mulf %13, %17 : vector<8x32xf32>
    %c0_5 = arith.constant 0 : index
    %c0_6 = arith.constant 0 : index
    %19 = vector.load %arg6[%c0_5, %c0_6] : memref<1x32xf32, #tpu.memory_space<vmem>>, vector<1x32xf32>
    %20 = vector.broadcast %19 : vector<1x32xf32> to vector<8x32xf32>
    %21 = arith.mulf %18, %20 : vector<8x32xf32>
    %c0_7 = arith.constant 0 : index
    %c0_8 = arith.constant 0 : index
    %22 = vector.load %arg7[%c0_7, %c0_8] : memref<1x32xf32, #tpu.memory_space<vmem>>, vector<1x32xf32>
    %23 = vector.broadcast %22 : vector<1x32xf32> to vector<8x32xf32>
    %24 = arith.addf %21, %23 : vector<8x32xf32>
    %25 = arith.truncf %24 : vector<8x32xf32> to vector<8x32xbf16>
    %c0_9 = arith.constant 0 : index
    %c0_10 = arith.constant 0 : index
    %26 = vector.load %arg2[%c0_9, %c0_10] : memref<32x96xbf16, #tpu.memory_space<vmem>>, vector<32x96xbf16>
    %cst_11 = arith.constant dense<0.000000e+00> : vector<8x96xf32>
    %27 = tpu.matmul %25, %26, %cst_11 {dimension_numbers = #tpu.dot_dimension_numbers<[1], [0], [0], [1], [0, 0, 1, 1], [], []>} : vector<8x32xbf16>, vector<32x96xbf16>, vector<8x96xf32> -> vector<8x96xf32>
    %c0_12 = arith.constant 0 : index
    %c0_13 = arith.constant 0 : index
    %28 = vector.load %arg3[%c0_12, %c0_13] : memref<1x96xf32, #tpu.memory_space<vmem>>, vector<1x96xf32>
    %29 = vector.broadcast %28 : vector<1x96xf32> to vector<8x96xf32>
    %30 = arith.addf %27, %29 : vector<8x96xf32>
    %31 = vector.extract_strided_slice %30 {offsets = [0, 0], sizes = [8, 32], strides = [1, 1]} : vector<8x96xf32> to vector<8x32xf32>
    %32 = arith.truncf %31 : vector<8x32xf32> to vector<8x32xbf16>
    %33 = vector.shape_cast %32 : vector<8x32xbf16> to vector<1x8x32xbf16>
    %34 = vector.extract_strided_slice %33 {offsets = [0, 0, 0], sizes = [1, 8, 8], strides = [1, 1, 1]} : vector<1x8x32xbf16> to vector<1x8x8xbf16>
    %35 = vector.extract_strided_slice %33 {offsets = [0, 0, 8], sizes = [1, 8, 8], strides = [1, 1, 1]} : vector<1x8x32xbf16> to vector<1x8x8xbf16>
    %36 = vector.extract_strided_slice %33 {offsets = [0, 0, 16], sizes = [1, 8, 8], strides = [1, 1, 1]} : vector<1x8x32xbf16> to vector<1x8x8xbf16>
    %37 = vector.extract_strided_slice %33 {offsets = [0, 0, 24], sizes = [1, 8, 8], strides = [1, 1, 1]} : vector<1x8x32xbf16> to vector<1x8x8xbf16>
    %38 = tpu.concatenate %34, %35, %36, %37 in 0 : vector<1x8x8xbf16>, vector<1x8x8xbf16>, vector<1x8x8xbf16>, vector<1x8x8xbf16> -> vector<4x8x8xbf16>
    %39 = vector.extract_strided_slice %30 {offsets = [0, 32], sizes = [8, 32], strides = [1, 1]} : vector<8x96xf32> to vector<8x32xf32>
    %40 = arith.truncf %39 : vector<8x32xf32> to vector<8x32xbf16>
    %41 = vector.shape_cast %40 : vector<8x32xbf16> to vector<1x8x32xbf16>
    %42 = vector.extract_strided_slice %41 {offsets = [0, 0, 0], sizes = [1, 8, 8], strides = [1, 1, 1]} : vector<1x8x32xbf16> to vector<1x8x8xbf16>
    %43 = vector.extract_strided_slice %41 {offsets = [0, 0, 8], sizes = [1, 8, 8], strides = [1, 1, 1]} : vector<1x8x32xbf16> to vector<1x8x8xbf16>
    %44 = vector.extract_strided_slice %41 {offsets = [0, 0, 16], sizes = [1, 8, 8], strides = [1, 1, 1]} : vector<1x8x32xbf16> to vector<1x8x8xbf16>
    %45 = vector.extract_strided_slice %41 {offsets = [0, 0, 24], sizes = [1, 8, 8], strides = [1, 1, 1]} : vector<1x8x32xbf16> to vector<1x8x8xbf16>
    %46 = tpu.concatenate %42, %43, %44, %45 in 0 : vector<1x8x8xbf16>, vector<1x8x8xbf16>, vector<1x8x8xbf16>, vector<1x8x8xbf16> -> vector<4x8x8xbf16>
    %47 = vector.extract_strided_slice %30 {offsets = [0, 64], sizes = [8, 32], strides = [1, 1]} : vector<8x96xf32> to vector<8x32xf32>
    %48 = arith.truncf %47 : vector<8x32xf32> to vector<8x32xbf16>
    %49 = vector.shape_cast %48 : vector<8x32xbf16> to vector<1x8x32xbf16>
    %50 = vector.extract_strided_slice %49 {offsets = [0, 0, 0], sizes = [1, 8, 8], strides = [1, 1, 1]} : vector<1x8x32xbf16> to vector<1x8x8xbf16>
    %51 = vector.extract_strided_slice %49 {offsets = [0, 0, 8], sizes = [1, 8, 8], strides = [1, 1, 1]} : vector<1x8x32xbf16> to vector<1x8x8xbf16>
    %52 = vector.extract_strided_slice %49 {offsets = [0, 0, 16], sizes = [1, 8, 8], strides = [1, 1, 1]} : vector<1x8x32xbf16> to vector<1x8x8xbf16>
    %53 = vector.extract_strided_slice %49 {offsets = [0, 0, 24], sizes = [1, 8, 8], strides = [1, 1, 1]} : vector<1x8x32xbf16> to vector<1x8x8xbf16>
    %54 = tpu.concatenate %50, %51, %52, %53 in 0 : vector<1x8x8xbf16>, vector<1x8x8xbf16>, vector<1x8x8xbf16>, vector<1x8x8xbf16> -> vector<4x8x8xbf16>
    "tpu.trace_start"() <{level = 10 : i32, message = "bqd,bkd->bqk"}> : () -> ()
    %cst_14 = arith.constant dense<0.000000e+00> : vector<4x8x8xf32>
    %55 = tpu.matmul %38, %46, %cst_14 {dimension_numbers = #tpu.dot_dimension_numbers<[2], [2], [1], [1], [0, 0, 0, 1, 1, 1], [0], [0]>} : vector<4x8x8xbf16>, vector<4x8x8xbf16>, vector<4x8x8xf32> -> vector<4x8x8xf32>
    "tpu.trace_stop"() : () -> ()
    %cst_15 = arith.constant dense<0xFF800000> : vector<4x8xf32>
    %56 = vector.multi_reduction <maximumf>, %55, %cst_15 [2] : vector<4x8x8xf32> to vector<4x8xf32>
    %57 = vector.shape_cast %56 : vector<4x8xf32> to vector<4x8x1xf32>
    %58 = vector.broadcast %57 : vector<4x8x1xf32> to vector<4x8x8xf32>
    %59 = arith.subf %55, %58 : vector<4x8x8xf32>
    %60 = math.exp %59 : vector<4x8x8xf32>
    %cst_16 = arith.constant dense<0.000000e+00> : vector<4x8xf32>
    %61 = vector.multi_reduction <add>, %60, %cst_16 [2] : vector<4x8x8xf32> to vector<4x8xf32>
    %62 = vector.shape_cast %61 : vector<4x8xf32> to vector<4x8x1xf32>
    %63 = tpu.reciprocal %62 {approx = true} : vector<4x8x1xf32> -> vector<4x8x1xf32>
    %64 = vector.broadcast %63 : vector<4x8x1xf32> to vector<4x8x8xf32>
    %65 = arith.mulf %60, %64 : vector<4x8x8xf32>
    %66 = arith.truncf %65 : vector<4x8x8xf32> to vector<4x8x8xbf16>
    "tpu.trace_start"() <{level = 10 : i32, message = "bqk,bkd->bqd"}> : () -> ()
    %cst_17 = arith.constant dense<0.000000e+00> : vector<4x8x8xf32>
    %67 = tpu.matmul %66, %54, %cst_17 {dimension_numbers = #tpu.dot_dimension_numbers<[2], [1], [1], [2], [0, 0, 0, 1, 1, 2], [0], [0]>} : vector<4x8x8xbf16>, vector<4x8x8xbf16>, vector<4x8x8xf32> -> vector<4x8x8xf32>
    "tpu.trace_stop"() : () -> ()
    %68 = vector.extract_strided_slice %67 {offsets = [0, 0, 0], sizes = [1, 8, 8], strides = [1, 1, 1]} : vector<4x8x8xf32> to vector<1x8x8xf32>
    %69 = vector.extract_strided_slice %67 {offsets = [1, 0, 0], sizes = [1, 8, 8], strides = [1, 1, 1]} : vector<4x8x8xf32> to vector<1x8x8xf32>
    %70 = vector.extract_strided_slice %67 {offsets = [2, 0, 0], sizes = [1, 8, 8], strides = [1, 1, 1]} : vector<4x8x8xf32> to vector<1x8x8xf32>
    %71 = vector.extract_strided_slice %67 {offsets = [3, 0, 0], sizes = [1, 8, 8], strides = [1, 1, 1]} : vector<4x8x8xf32> to vector<1x8x8xf32>
    %72 = tpu.concatenate %68, %69, %70, %71 in 2 : vector<1x8x8xf32>, vector<1x8x8xf32>, vector<1x8x8xf32>, vector<1x8x8xf32> -> vector<1x8x32xf32>
    %73 = vector.shape_cast %72 : vector<1x8x32xf32> to vector<8x32xf32>
    %74 = arith.truncf %73 : vector<8x32xf32> to vector<8x32xbf16>
    %c0_18 = arith.constant 0 : index
    %c0_19 = arith.constant 0 : index
    %75 = vector.load %arg4[%c0_18, %c0_19] : memref<32x32xbf16, #tpu.memory_space<vmem>>, vector<32x32xbf16>
    %cst_20 = arith.constant dense<0.000000e+00> : vector<8x32xf32>
    %76 = tpu.matmul %74, %75, %cst_20 {dimension_numbers = #tpu.dot_dimension_numbers<[1], [0], [0], [1], [0, 0, 1, 1], [], []>} : vector<8x32xbf16>, vector<32x32xbf16>, vector<8x32xf32> -> vector<8x32xf32>
    %c0_21 = arith.constant 0 : index
    %c0_22 = arith.constant 0 : index
    %77 = vector.load %arg5[%c0_21, %c0_22] : memref<1x32xf32, #tpu.memory_space<vmem>>, vector<1x32xf32>
    %78 = vector.broadcast %77 : vector<1x32xf32> to vector<8x32xf32>
    %79 = arith.addf %76, %78 : vector<8x32xf32>
    %c0_23 = arith.constant 0 : index
    %c0_24 = arith.constant 0 : index
    %80 = vector.load %arg1[%c0_23, %c0_24] : memref<8x32xf32, #tpu.memory_space<vmem>>, vector<8x32xf32>
    %81 = arith.addf %80, %79 : vector<8x32xf32>
    %cst_25 = arith.constant dense<0.000000e+00> : vector<8xf32>
    %82 = vector.multi_reduction <add>, %81, %cst_25 [1] : vector<8x32xf32> to vector<8xf32>
    %83 = vector.shape_cast %82 : vector<8xf32> to vector<8x1xf32>
    %cst_26 = arith.constant 3.200000e+01 : f32
    %84 = vector.broadcast %cst_26 : f32 to vector<8x1xf32>
    %85 = arith.divf %83, %84 : vector<8x1xf32>
    %86 = vector.broadcast %85 : vector<8x1xf32> to vector<8x32xf32>
    %87 = arith.subf %81, %86 : vector<8x32xf32>
    %88 = arith.mulf %87, %87 : vector<8x32xf32>
    %cst_27 = arith.constant dense<0.000000e+00> : vector<8xf32>
    %89 = vector.multi_reduction <add>, %88, %cst_27 [1] : vector<8x32xf32> to vector<8xf32>
    %90 = vector.shape_cast %89 : vector<8xf32> to vector<8x1xf32>
    %cst_28 = arith.constant 3.200000e+01 : f32
    %91 = vector.broadcast %cst_28 : f32 to vector<8x1xf32>
    %92 = arith.divf %90, %91 : vector<8x1xf32>
    %93 = vector.broadcast %85 : vector<8x1xf32> to vector<8x32xf32>
    %94 = arith.subf %81, %93 : vector<8x32xf32>
    %cst_29 = arith.constant 9.99999974E-6 : f32
    %95 = vector.broadcast %cst_29 : f32 to vector<8x1xf32>
    %96 = arith.addf %92, %95 : vector<8x1xf32>
    %97 = math.rsqrt %96 : vector<8x1xf32>
    %98 = vector.broadcast %97 : vector<8x1xf32> to vector<8x32xf32>
    %99 = arith.mulf %94, %98 : vector<8x32xf32>
    %c0_30 = arith.constant 0 : index
    %c0_31 = arith.constant 0 : index
    %100 = vector.load %arg8[%c0_30, %c0_31] : memref<1x32xf32, #tpu.memory_space<vmem>>, vector<1x32xf32>
    %101 = vector.broadcast %100 : vector<1x32xf32> to vector<8x32xf32>
    %102 = arith.mulf %99, %101 : vector<8x32xf32>
    %c0_32 = arith.constant 0 : index
    %c0_33 = arith.constant 0 : index
    %103 = vector.load %arg9[%c0_32, %c0_33] : memref<1x32xf32, #tpu.memory_space<vmem>>, vector<1x32xf32>
    %104 = vector.broadcast %103 : vector<1x32xf32> to vector<8x32xf32>
    %105 = arith.addf %102, %104 : vector<8x32xf32>
    %106 = arith.truncf %105 : vector<8x32xf32> to vector<8x32xbf16>
    %c0_34 = arith.constant 0 : index
    %c0_35 = arith.constant 0 : index
    %107 = vector.load %arg10[%c0_34, %c0_35] : memref<32x64xbf16, #tpu.memory_space<vmem>>, vector<32x64xbf16>
    %cst_36 = arith.constant dense<0.000000e+00> : vector<8x64xf32>
    %108 = tpu.matmul %106, %107, %cst_36 {dimension_numbers = #tpu.dot_dimension_numbers<[1], [0], [0], [1], [0, 0, 1, 1], [], []>} : vector<8x32xbf16>, vector<32x64xbf16>, vector<8x64xf32> -> vector<8x64xf32>
    %c0_37 = arith.constant 0 : index
    %c0_38 = arith.constant 0 : index
    %109 = vector.load %arg11[%c0_37, %c0_38] : memref<1x64xf32, #tpu.memory_space<vmem>>, vector<1x64xf32>
    %110 = vector.broadcast %109 : vector<1x64xf32> to vector<8x64xf32>
    %111 = arith.addf %108, %110 : vector<8x64xf32>
    %cst_39 = arith.constant 0.000000e+00 : f32
    %112 = vector.broadcast %cst_39 : f32 to vector<8x64xf32>
    %113 = arith.maximumf %111, %112 : vector<8x64xf32>
    %114 = arith.truncf %113 : vector<8x64xf32> to vector<8x64xbf16>
    %c0_40 = arith.constant 0 : index
    %c0_41 = arith.constant 0 : index
    %115 = vector.load %arg12[%c0_40, %c0_41] : memref<64x32xbf16, #tpu.memory_space<vmem>>, vector<64x32xbf16>
    %cst_42 = arith.constant dense<0.000000e+00> : vector<8x32xf32>
    %116 = tpu.matmul %114, %115, %cst_42 {dimension_numbers = #tpu.dot_dimension_numbers<[1], [0], [0], [1], [0, 0, 1, 1], [], []>} : vector<8x64xbf16>, vector<64x32xbf16>, vector<8x32xf32> -> vector<8x32xf32>
    %c0_43 = arith.constant 0 : index
    %c0_44 = arith.constant 0 : index
    %117 = vector.load %arg13[%c0_43, %c0_44] : memref<1x32xf32, #tpu.memory_space<vmem>>, vector<1x32xf32>
    %118 = vector.broadcast %117 : vector<1x32xf32> to vector<8x32xf32>
    %119 = arith.addf %116, %118 : vector<8x32xf32>
    %120 = arith.addf %81, %119 : vector<8x32xf32>
    %c0_45 = arith.constant 0 : index
    %c0_46 = arith.constant 0 : index
    %121 = vector.load %arg14[%c0_45, %c0_46] : memref<8x32xf32, #tpu.memory_space<vmem>>, vector<8x32xf32>
    tpu.vector_store %arg14[%c0_45, %c0_46], %120 {strides = array<i32>} : memref<8x32xf32, #tpu.memory_space<vmem>>, vector<8x32xf32>,
    return
  }
  func.func @transform_0(%arg0: i32) -> (i32, i32) {
    %c0_i32 = arith.constant 0 : i32
    %c0_i32_0 = arith.constant 0 : i32
    return %arg0, %c0_i32 : i32, i32
  }
  func.func @transform_1(%arg0: i32) -> (i32, i32) {
    %c0_i32 = arith.constant 0 : i32
    %c0_i32_0 = arith.constant 0 : i32
    %c0_i32_1 = arith.constant 0 : i32
    return %c0_i32, %c0_i32_0 : i32, i32
  }
  func.func @transform_2(%arg0: i32) -> (i32, i32) {
    %c0_i32 = arith.constant 0 : i32
    %c0_i32_0 = arith.constant 0 : i32
    %c0_i32_1 = arith.constant 0 : i32
    return %c0_i32, %c0_i32_0 : i32, i32
  }
  func.func @transform_3(%arg0: i32) -> (i32, i32) {
    %c0_i32 = arith.constant 0 : i32
    %c0_i32_0 = arith.constant 0 : i32
    %c0_i32_1 = arith.constant 0 : i32
    return %c0_i32, %c0_i32_0 : i32, i32
  }
  func.func @transform_4(%arg0: i32) -> (i32, i32) {
    %c0_i32 = arith.constant 0 : i32
    %c0_i32_0 = arith.constant 0 : i32
    %c0_i32_1 = arith.constant 0 : i32
    return %c0_i32, %c0_i32_0 : i32, i32
  }
  func.func @transform_5(%arg0: i32) -> (i32, i32) {
    %c0_i32 = arith.constant 0 : i32
    %c0_i32_0 = arith.constant 0 : i32
    %c0_i32_1 = arith.constant 0 : i32
    return %c0_i32, %c0_i32_0 : i32, i32
  }
  func.func @transform_6(%arg0: i32) -> (i32, i32) {
    %c0_i32 = arith.constant 0 : i32
    %c0_i32_0 = arith.constant 0 : i32
    %c0_i32_1 = arith.constant 0 : i32
    return %c0_i32, %c0_i32_0 : i32, i32
  }
  func.func @transform_7(%arg0: i32) -> (i32, i32) {
    %c0_i32 = arith.constant 0 : i32
    %c0_i32_0 = arith.constant 0 : i32
    %c0_i32_1 = arith.constant 0 : i32
    return %c0_i32, %c0_i32_0 : i32, i32
  }
  func.func @transform_8(%arg0: i32) -> (i32, i32) {
    %c0_i32 = arith.constant 0 : i32
    %c0_i32_0 = arith.constant 0 : i32
    %c0_i32_1 = arith.constant 0 : i32
    return %c0_i32, %c0_i32_0 : i32, i32
  }
  func.func @transform_9(%arg0: i32) -> (i32, i32) {
    %c0_i32 = arith.constant 0 : i32
    %c0_i32_0 = arith.constant 0 : i32
    %c0_i32_1 = arith.constant 0 : i32
    return %c0_i32, %c0_i32_0 : i32, i32
  }
  func.func @transform_10(%arg0: i32) -> (i32, i32) {
    %c0_i32 = arith.constant 0 : i32
    %c0_i32_0 = arith.constant 0 : i32
    %c0_i32_1 = arith.constant 0 : i32
    return %c0_i32, %c0_i32_0 : i32, i32
  }
  func.func @transform_11(%arg0: i32) -> (i32, i32) {
    %c0_i32 = arith.constant 0 : i32
    %c0_i32_0 = arith.constant 0 : i32
    %c0_i32_1 = arith.constant 0 : i32
    return %c0_i32, %c0_i32_0 : i32, i32
  }
  func.func @transform_12(%arg0: i32) -> (i32, i32) {
    %c0_i32 = arith.constant 0 : i32
    %c0_i32_0 = arith.constant 0 : i32
    %c0_i32_1 = arith.constant 0 : i32
    return %c0_i32, %c0_i32_0 : i32, i32
  }
  func.func @transform_13(%arg0: i32) -> (i32, i32) {
    %c0_i32 = arith.constant 0 : i32
    %c0_i32_0 = arith.constant 0 : i32
    return %arg0, %c0_i32 : i32, i32
  }
}

module attributes {stable_mosaic.version = 11 : i64} {
  func.func @encoder_layer_kernel(%arg0: i32, %arg1: memref<8x32xf32, #tpu.memory_space<vmem>>, %arg2: memref<32x96xbf16, #tpu.memory_space<vmem>>, %arg3: memref<1x96xf32, #tpu.memory_space<vmem>>, %arg4: memref<32x32xbf16, #tpu.memory_space<vmem>>, %arg5: memref<1x32xf32, #tpu.memory_space<vmem>>, %arg6: memref<1x32xf32, #tpu.memory_space<vmem>>, %arg7: memref<1x32xf32, #tpu.memory_space<vmem>>, %arg8: memref<1x32xf32, #tpu.memory_space<vmem>>, %arg9: memref<1x32xf32, #tpu.memory_space<vmem>>, %arg10: memref<32x64xbf16, #tpu.memory_space<vmem>>, %arg11: memref<1x64xf32, #tpu.memory_space<vmem>>, %arg12: memref<64x32xbf16, #tpu.memory_space<vmem>>, %arg13: memref<1x32xf32, #tpu.memory_space<vmem>>, %arg14: memref<8x32xf32, #tpu.memory_space<vmem>>) attributes {dimension_semantics = [#tpu.dimension_semantics<parallel>], iteration_bounds = array<i64: 2>, scalar_prefetch = 0 : i64, scratch_operands = 0 : i64, tpu.core_type = #tpu.core_type<tc>, window_params = [{transform_indices = @transform_0, window_bounds = array<i64: 8, 32>}, {pipeline_mode = #tpu.pipeline_mode<synchronous>, transform_indices = @transform_1, window_bounds = array<i64: 32, 96>}, {pipeline_mode = #tpu.pipeline_mode<synchronous>, transform_indices = @transform_2, window_bounds = array<i64: 1, 96>}, {pipeline_mode = #tpu.pipeline_mode<synchronous>, transform_indices = @transform_3, window_bounds = array<i64: 32, 32>}, {pipeline_mode = #tpu.pipeline_mode<synchronous>, transform_indices = @transform_4, window_bounds = array<i64: 1, 32>}, {pipeline_mode = #tpu.pipeline_mode<synchronous>, transform_indices = @transform_5, window_bounds = array<i64: 1, 32>}, {pipeline_mode = #tpu.pipeline_mode<synchronous>, transform_indices = @transform_6, window_bounds = array<i64: 1, 32>}, {pipeline_mode = #tpu.pipeline_mode<synchronous>, transform_indices = @transform_7, window_bounds = array<i64: 1, 32>}, {pipeline_mode = #tpu.pipeline_mode<synchronous>, transform_indices = @transform_8, window_bounds = array<i64: 1, 32>}, {pipeline_mode = #tpu.pipeline_mode<synchronous>, transform_indices = @transform_9, window_bounds = array<i64: 32, 64>}, {pipeline_mode = #tpu.pipeline_mode<synchronous>, transform_indices = @transform_10, window_bounds = array<i64: 1, 64>}, {pipeline_mode = #tpu.pipeline_mode<synchronous>, transform_indices = @transform_11, window_bounds = array<i64: 64, 32>}, {pipeline_mode = #tpu.pipeline_mode<synchronous>, transform_indices = @transform_12, window_bounds = array<i64: 1, 32>}, {transform_indices = @transform_13, window_bounds = array<i64: 8, 32>}]} {
    %c0 = arith.constant 0 : index
    %c0_0 = arith.constant 0 : index
    %0 = vector.load %arg1[%c0, %c0_0] : memref<8x32xf32, #tpu.memory_space<vmem>>, vector<8x32xf32>
    %cst = arith.constant dense<0.000000e+00> : vector<8xf32>
    %1 = vector.multi_reduction <add>, %0, %cst [1] : vector<8x32xf32> to vector<8xf32>
    %2 = vector.shape_cast %1 : vector<8xf32> to vector<8x1xf32>
    %cst_1 = arith.constant 3.200000e+01 : f32
    %3 = vector.broadcast %cst_1 : f32 to vector<8x1xf32>
    %4 = arith.divf %2, %3 : vector<8x1xf32>
    %5 = vector.broadcast %4 : vector<8x1xf32> to vector<8x32xf32>
    %6 = arith.subf %0, %5 : vector<8x32xf32>
    %7 = arith.mulf %6, %6 : vector<8x32xf32>
    %cst_2 = arith.constant dense<0.000000e+00> : vector<8xf32>
    %8 = vector.multi_reduction <add>, %7, %cst_2 [1] : vector<8x32xf32> to vector<8xf32>
    %9 = vector.shape_cast %8 : vector<8xf32> to vector<8x1xf32>
    %cst_3 = arith.constant 3.200000e+01 : f32
    %10 = vector.broadcast %cst_3 : f32 to vector<8x1xf32>
    %11 = arith.divf %9, %10 : vector<8x1xf32>
    %12 = vector.broadcast %4 : vector<8x1xf32> to vector<8x32xf32>
    %13 = arith.subf %0, %12 : vector<8x32xf32>
    %cst_4 = arith.constant 9.99999974E-6 : f32
    %14 = vector.broadcast %cst_4 : f32 to vector<8x1xf32>
    %15 = arith.addf %11, %14 : vector<8x1xf32>
    %16 = math.rsqrt %15 : vector<8x1xf32>
    %17 = vector.broadcast %16 : vector<8x1xf32> to vector<8x32xf32>
    %18 = arith.mulf %13, %17 : vector<8x32xf32>
    %c0_5 = arith.constant 0 : index
    %c0_6 = arith.constant 0 : index
    %19 = vector.load %arg6[%c0_5, %c0_6] : memref<1x32xf32, #tpu.memory_space<vmem>>, vector<1x32xf32>
    %20 = vector.broadcast %19 : vector<1x32xf32> to vector<8x32xf32>
    %21 = arith.mulf %18, %20 : vector<8x32xf32>
    %c0_7 = arith.constant 0 : index
    %c0_8 = arith.constant 0 : index
    %22 = vector.load %arg7[%c0_7, %c0_8] : memref<1x32xf32, #tpu.memory_space<vmem>>, vector<1x32xf32>
    %23 = vector.broadcast %22 : vector<1x32xf32> to vector<8x32xf32>
    %24 = arith.addf %21, %23 : vector<8x32xf32>
    %25 = arith.truncf %24 : vector<8x32xf32> to vector<8x32xbf16>
    %c0_9 = arith.constant 0 : index
    %c0_10 = arith.constant 0 : index
    %26 = vector.load %arg2[%c0_9, %c0_10] : memref<32x96xbf16, #tpu.memory_space<vmem>>, vector<32x96xbf16>
    %cst_11 = arith.constant dense<0.000000e+00> : vector<8x96xf32>
    %27 = tpu.matmul %25, %26, %cst_11 {dimension_numbers = #tpu.dot_dimension_numbers<[1], [0], [0], [1], [0, 0, 1, 1], [], []>} : vector<8x32xbf16>, vector<32x96xbf16>, vector<8x96xf32> -> vector<8x96xf32>
    %c0_12 = arith.constant 0 : index
    %c0_13 = arith.constant 0 : index
    %28 = vector.load %arg3[%c0_12, %c0_13] : memref<1x96xf32, #tpu.memory_space<vmem>>, vector<1x96xf32>
    %29 = vector.broadcast %28 : vector<1x96xf32> to vector<8x96xf32>
    %30 = arith.addf %27, %29 : vector<8x96xf32>
    %31 = vector.extract_strided_slice %30 {offsets = [0, 0], sizes = [8, 32], strides = [1, 1]} : vector<8x96xf32> to vector<8x32xf32>
    %32 = arith.truncf %31 : vector<8x32xf32> to vector<8x32xbf16>
    %33 = vector.shape_cast %32 : vector<8x32xbf16> to vector<1x8x32xbf16>
    %34 = vector.extract_strided_slice %33 {offsets = [0, 0, 0], sizes = [1, 8, 8], strides = [1, 1, 1]} : vector<1x8x32xbf16> to vector<1x8x8xbf16>
    %35 = vector.extract_strided_slice %33 {offsets = [0, 0, 8], sizes = [1, 8, 8], strides = [1, 1, 1]} : vector<1x8x32xbf16> to vector<1x8x8xbf16>
    %36 = vector.extract_strided_slice %33 {offsets = [0, 0, 16], sizes = [1, 8, 8], strides = [1, 1, 1]} : vector<1x8x32xbf16> to vector<1x8x8xbf16>
    %37 = vector.extract_strided_slice %33 {offsets = [0, 0, 24], sizes = [1, 8, 8], strides = [1, 1, 1]} : vector<1x8x32xbf16> to vector<1x8x8xbf16>
    %38 = tpu.concatenate %34, %35, %36, %37 in 0 : vector<1x8x8xbf16>, vector<1x8x8xbf16>, vector<1x8x8xbf16>, vector<1x8x8xbf16> -> vector<4x8x8xbf16>
    %39 = vector.extract_strided_slice %30 {offsets = [0, 32], sizes = [8, 32], strides = [1, 1]} : vector<8x96xf32> to vector<8x32xf32>
    %40 = arith.truncf %39 : vector<8x32xf32> to vector<8x32xbf16>
    %41 = vector.shape_cast %40 : vector<8x32xbf16> to vector<1x8x32xbf16>
    %42 = vector.extract_strided_slice %41 {offsets = [0, 0, 0], sizes = [1, 8, 8], strides = [1, 1, 1]} : vector<1x8x32xbf16> to vector<1x8x8xbf16>
    %43 = vector.extract_strided_slice %41 {offsets = [0, 0, 8], sizes = [1, 8, 8], strides = [1, 1, 1]} : vector<1x8x32xbf16> to vector<1x8x8xbf16>
    %44 = vector.extract_strided_slice %41 {offsets = [0, 0, 16], sizes = [1, 8, 8], strides = [1, 1, 1]} : vector<1x8x32xbf16> to vector<1x8x8xbf16>
    %45 = vector.extract_strided_slice %41 {offsets = [0, 0, 24], sizes = [1, 8, 8], strides = [1, 1, 1]} : vector<1x8x32xbf16> to vector<1x8x8xbf16>
    %46 = tpu.concatenate %42, %43, %44, %45 in 0 : vector<1x8x8xbf16>, vector<1x8x8xbf16>, vector<1x8x8xbf16>, vector<1x8x8xbf16> -> vector<4x8x8xbf16>
    %47 = vector.extract_strided_slice %30 {offsets = [0, 64], sizes = [8, 32], strides = [1, 1]} : vector<8x96xf32> to vector<8x32xf32>
    %48 = arith.truncf %47 : vector<8x32xf32> to vector<8x32xbf16>
    %49 = vector.shape_cast %48 : vector<8x32xbf16> to vector<1x8x32xbf16>
    %50 = vector.extract_strided_slice %49 {offsets = [0, 0, 0], sizes = [1, 8, 8], strides = [1, 1, 1]} : vector<1x8x32xbf16> to vector<1x8x8xbf16>
    %51 = vector.extract_strided_slice %49 {offsets = [0, 0, 8], sizes = [1, 8, 8], strides = [1, 1, 1]} : vector<1x8x32xbf16> to vector<1x8x8xbf16>
    %52 = vector.extract_strided_slice %49 {offsets = [0, 0, 16], sizes = [1, 8, 8], strides = [1, 1, 1]} : vector<1x8x32xbf16> to vector<1x8x8xbf16>
    %53 = vector.extract_strided_slice %49 {offsets = [0, 0, 24], sizes = [1, 8, 8], strides = [1, 1, 1]} : vector<1x8x32xbf16> to vector<1x8x8xbf16>
    %54 = tpu.concatenate %50, %51, %52, %53 in 0 : vector<1x8x8xbf16>, vector<1x8x8xbf16>, vector<1x8x8xbf16>, vector<1x8x8xbf16> -> vector<4x8x8xbf16>
    "tpu.trace_start"() <{level = 10 : i32, message = "bqd,bkd->bqk"}> : () -> ()
    %cst_14 = arith.constant dense<0.000000e+00> : vector<4x8x8xf32>
    %55 = tpu.matmul %38, %46, %cst_14 {dimension_numbers = #tpu.dot_dimension_numbers<[2], [2], [1], [1], [0, 0, 0, 1, 1, 1], [0], [0]>} : vector<4x8x8xbf16>, vector<4x8x8xbf16>, vector<4x8x8xf32> -> vector<4x8x8xf32>
    "tpu.trace_stop"() : () -> ()
    %cst_15 = arith.constant dense<0xFF800000> : vector<4x8xf32>
    %56 = vector.multi_reduction <maximumf>, %55, %cst_15 [2] : vector<4x8x8xf32> to vector<4x8xf32>
    %57 = vector.shape_cast %56 : vector<4x8xf32> to vector<4x8x1xf32>
    %58 = vector.broadcast %57 : vector<4x8x1xf32> to vector<4x8x8xf32>
    %59 = arith.subf %55, %58 : vector<4x8x8xf32>
    %60 = math.exp %59 : vector<4x8x8xf32>
    %cst_16 = arith.constant dense<0.000000e+00> : vector<4x8xf32>
    %61 = vector.multi_reduction <add>, %60, %cst_16 [2] : vector<4x8x8xf32> to vector<4x8xf32>
    %62 = vector.shape_cast %61 : vector<4x8xf32> to vector<4x8x1xf32>
    %63 = tpu.reciprocal %62 {approx = true} : vector<4x8x1xf32> -> vector<4x8x1xf32>
    %64 = vector.broadcast %63 : vector<4x8x1xf32> to vector<4x8x8xf32>
    %65 = arith.mulf %60, %64 : vector<4x8x8xf32>
    %66 = arith.truncf %65 : vector<4x8x8xf32> to vector<4x8x8xbf16>
    "tpu.trace_start"() <{level = 10 : i32, message = "bqk,bkd->bqd"}> : () -> ()
    %cst_17 = arith.constant dense<0.000000e+00> : vector<4x8x8xf32>
    %67 = tpu.matmul %66, %54, %cst_17 {dimension_numbers = #tpu.dot_dimension_numbers<[2], [1], [1], [2], [0, 0, 0, 1, 1, 2], [0], [0]>} : vector<4x8x8xbf16>, vector<4x8x8xbf16>, vector<4x8x8xf32> -> vector<4x8x8xf32>
    "tpu.trace_stop"() : () -> ()
    %68 = vector.extract_strided_slice %67 {offsets = [0, 0, 0], sizes = [1, 8, 8], strides = [1, 1, 1]} : vector<4x8x8xf32> to vector<1x8x8xf32>
    %69 = vector.extract_strided_slice %67 {offsets = [1, 0, 0], sizes = [1, 8, 8], strides = [1, 1, 1]} : vector<4x8x8xf32> to vector<1x8x8xf32>
    %70 = vector.extract_strided_slice %67 {offsets = [2, 0, 0], sizes = [1, 8, 8], strides = [1, 1, 1]} : vector<4x8x8xf32> to vector<1x8x8xf32>
    %71 = vector.extract_strided_slice %67 {offsets = [3, 0, 0], sizes = [1, 8, 8], strides = [1, 1, 1]} : vector<4x8x8xf32> to vector<1x8x8xf32>
    %72 = tpu.concatenate %68, %69, %70, %71 in 2 : vector<1x8x8xf32>, vector<1x8x8xf32>, vector<1x8x8xf32>, vector<1x8x8xf32> -> vector<1x8x32xf32>
    %73 = vector.shape_cast %72 : vector<1x8x32xf32> to vector<8x32xf32>
    %74 = arith.truncf %73 : vector<8x32xf32> to vector<8x32xbf16>
    %c0_18 = arith.constant 0 : index
    %c0_19 = arith.constant 0 : index
    %75 = vector.load %arg4[%c0_18, %c0_19] : memref<32x32xbf16, #tpu.memory_space<vmem>>, vector<32x32xbf16>
    %cst_20 = arith.constant dense<0.000000e+00> : vector<8x32xf32>
    %76 = tpu.matmul %74, %75, %cst_20 {dimension_numbers = #tpu.dot_dimension_numbers<[1], [0], [0], [1], [0, 0, 1, 1], [], []>} : vector<8x32xbf16>, vector<32x32xbf16>, vector<8x32xf32> -> vector<8x32xf32>
    %c0_21 = arith.constant 0 : index
    %c0_22 = arith.constant 0 : index
    %77 = vector.load %arg5[%c0_21, %c0_22] : memref<1x32xf32, #tpu.memory_space<vmem>>, vector<1x32xf32>
    %78 = vector.broadcast %77 : vector<1x32xf32> to vector<8x32xf32>
    %79 = arith.addf %76, %78 : vector<8x32xf32>
    %c0_23 = arith.constant 0 : index
    %c0_24 = arith.constant 0 : index
    %80 = vector.load %arg1[%c0_23, %c0_24] : memref<8x32xf32, #tpu.memory_space<vmem>>, vector<8x32xf32>
    %81 = arith.addf %80, %79 : vector<8x32xf32>
    %cst_25 = arith.constant dense<0.000000e+00> : vector<8xf32>
    %82 = vector.multi_reduction <add>, %81, %cst_25 [1] : vector<8x32xf32> to vector<8xf32>
    %83 = vector.shape_cast %82 : vector<8xf32> to vector<8x1xf32>
    %cst_26 = arith.constant 3.200000e+01 : f32
    %84 = vector.broadcast %cst_26 : f32 to vector<8x1xf32>
    %85 = arith.divf %83, %84 : vector<8x1xf32>
    %86 = vector.broadcast %85 : vector<8x1xf32> to vector<8x32xf32>
    %87 = arith.subf %81, %86 : vector<8x32xf32>
    %88 = arith.mulf %87, %87 : vector<8x32xf32>
    %cst_27 = arith.constant dense<0.000000e+00> : vector<8xf32>
    %89 = vector.multi_reduction <add>, %88, %cst_27 [1] : vector<8x32xf32> to vector<8xf32>
    %90 = vector.shape_cast %89 : vector<8xf32> to vector<8x1xf32>
    %cst_28 = arith.constant 3.200000e+01 : f32
    %91 = vector.broadcast %cst_28 : f32 to vector<8x1xf32>
    %92 = arith.divf %90, %91 : vector<8x1xf32>
    %93 = vector.broadcast %85 : vector<8x1xf32> to vector<8x32xf32>
    %94 = arith.subf %81, %93 : vector<8x32xf32>
    %cst_29 = arith.constant 9.99999974E-6 : f32
    %95 = vector.broadcast %cst_29 : f32 to vector<8x1xf32>
    %96 = arith.addf %92, %95 : vector<8x1xf32>
    %97 = math.rsqrt %96 : vector<8x1xf32>
    %98 = vector.broadcast %97 : vector<8x1xf32> to vector<8x32xf32>
    %99 = arith.mulf %94, %98 : vector<8x32xf32>
    %c0_30 = arith.constant 0 : index
    %c0_31 = arith.constant 0 : index
    %100 = vector.load %arg8[%c0_30, %c0_31] : memref<1x32xf32, #tpu.memory_space<vmem>>, vector<1x32xf32>
    %101 = vector.broadcast %100 : vector<1x32xf32> to vector<8x32xf32>
    %102 = arith.mulf %99, %101 : vector<8x32xf32>
    %c0_32 = arith.constant 0 : index
    %c0_33 = arith.constant 0 : index
    %103 = vector.load %arg9[%c0_32, %c0_33] : memref<1x32xf32, #tpu.memory_space<vmem>>, vector<1x32xf32>
    %104 = vector.broadcast %103 : vector<1x32xf32> to vector<8x32xf32>
    %105 = arith.addf %102, %104 : vector<8x32xf32>
    %106 = arith.truncf %105 : vector<8x32xf32> to vector<8x32xbf16>
    %c0_34 = arith.constant 0 : index
    %c0_35 = arith.constant 0 : index
    %107 = vector.load %arg10[%c0_34, %c0_35] : memref<32x64xbf16, #tpu.memory_space<vmem>>, vector<32x64xbf16>
    %cst_36 = arith.constant dense<0.000000e+00> : vector<8x64xf32>
    %108 = tpu.matmul %106, %107, %cst_36 {dimension_numbers = #tpu.dot_dimension_numbers<[1], [0], [0], [1], [0, 0, 1, 1], [], []>} : vector<8x32xbf16>, vector<32x64xbf16>, vector<8x64xf32> -> vector<8x64xf32>
    %c0_37 = arith.constant 0 : index
    %c0_38 = arith.constant 0 : index
    %109 = vector.load %arg11[%c0_37, %c0_38] : memref<1x64xf32, #tpu.memory_space<vmem>>, vector<1x64xf32>
    %110 = vector.broadcast %109 : vector<1x64xf32> to vector<8x64xf32>
    %111 = arith.addf %108, %110 : vector<8x64xf32>
    %cst_39 = arith.constant 0.000000e+00 : f32
    %112 = vector.broadcast %cst_39 : f32 to vector<8x64xf32>
    %113 = arith.maximumf %111, %112 : vector<8x64xf32>
    %114 = arith.truncf %113 : vector<8x64xf32> to vector<8x64xbf16>
    %c0_40 = arith.constant 0 : index
    %c0_41 = arith.constant 0 : index
    %115 = vector.load %arg12[%c0_40, %c0_41] : memref<64x32xbf16, #tpu.memory_space<vmem>>, vector<64x32xbf16>
    %cst_42 = arith.constant dense<0.000000e+00> : vector<8x32xf32>
    %116 = tpu.matmul %114, %115, %cst_42 {dimension_numbers = #tpu.dot_dimension_numbers<[1], [0], [0], [1], [0, 0, 1, 1], [], []>} : vector<8x64xbf16>, vector<64x32xbf16>, vector<8x32xf32> -> vector<8x32xf32>
    %c0_43 = arith.constant 0 : index
    %c0_44 = arith.constant 0 : index
    %117 = vector.load %arg13[%c0_43, %c0_44] : memref<1x32xf32, #tpu.memory_space<vmem>>, vector<1x32xf32>
    %118 = vector.broadcast %117 : vector<1x32xf32> to vector<8x32xf32>
    %119 = arith.addf %116, %118 : vector<8x32xf32>
    %120 = arith.addf %81, %119 : vector<8x32xf32>
    %c0_45 = arith.constant 0 : index
    %c0_46 = arith.constant 0 : index
    %121 = vector.load %arg14[%c0_45, %c0_46] : memref<8x32xf32, #tpu.memory_space<vmem>>, vector<8x32xf32>
    tpu.vector_store %arg14[%c0_45, %c0_46], %120 {strides = array<i32>} : memref<8x32xf32, #tpu.memory_space<vmem>>, vector<8x32xf32>,
    return
  }
  func.func @transform_0(%arg0: i32) -> (i32, i32) {
    %c0_i32 = arith.constant 0 : i32
    %c0_i32_0 = arith.constant 0 : i32
    return %arg0, %c0_i32 : i32, i32
  }
  func.func @transform_1(%arg0: i32) -> (i32, i32) {
    %c0_i32 = arith.constant 0 : i32
    %c0_i32_0 = arith.constant 0 : i32
    %c0_i32_1 = arith.constant 0 : i32
    return %c0_i32, %c0_i32_0 : i32, i32
  }
  func.func @transform_2(%arg0: i32) -> (i32, i32) {
    %c0_i32 = arith.constant 0 : i32
    %c0_i32_0 = arith.constant 0 : i32
    %c0_i32_1 = arith.constant 0 : i32
    return %c0_i32, %c0_i32_0 : i32, i32
  }
  func.func @transform_3(%arg0: i32) -> (i32, i32) {
    %c0_i32 = arith.constant 0 : i32
    %c0_i32_0 = arith.constant 0 : i32
    %c0_i32_1 = arith.constant 0 : i32
    return %c0_i32, %c0_i32_0 : i32, i32
  }
  func.func @transform_4(%arg0: i32) -> (i32, i32) {
    %c0_i32 = arith.constant 0 : i32
    %c0_i32_0 = arith.constant 0 : i32
    %c0_i32_1 = arith.constant 0 : i32
    return %c0_i32, %c0_i32_0 : i32, i32
  }
  func.func @transform_5(%arg0: i32) -> (i32, i32) {
    %c0_i32 = arith.constant 0 : i32
    %c0_i32_0 = arith.constant 0 : i32
    %c0_i32_1 = arith.constant 0 : i32
    return %c0_i32, %c0_i32_0 : i32, i32
  }
  func.func @transform_6(%arg0: i32) -> (i32, i32) {
    %c0_i32 = arith.constant 0 : i32
    %c0_i32_0 = arith.constant 0 : i32
    %c0_i32_1 = arith.constant 0 : i32
    return %c0_i32, %c0_i32_0 : i32, i32
  }
  func.func @transform_7(%arg0: i32) -> (i32, i32) {
    %c0_i32 = arith.constant 0 : i32
    %c0_i32_0 = arith.constant 0 : i32
    %c0_i32_1 = arith.constant 0 : i32
    return %c0_i32, %c0_i32_0 : i32, i32
  }
  func.func @transform_8(%arg0: i32) -> (i32, i32) {
    %c0_i32 = arith.constant 0 : i32
    %c0_i32_0 = arith.constant 0 : i32
    %c0_i32_1 = arith.constant 0 : i32
    return %c0_i32, %c0_i32_0 : i32, i32
  }
  func.func @transform_9(%arg0: i32) -> (i32, i32) {
    %c0_i32 = arith.constant 0 : i32
    %c0_i32_0 = arith.constant 0 : i32
    %c0_i32_1 = arith.constant 0 : i32
    return %c0_i32, %c0_i32_0 : i32, i32
  }
  func.func @transform_10(%arg0: i32) -> (i32, i32) {
    %c0_i32 = arith.constant 0 : i32
    %c0_i32_0 = arith.constant 0 : i32
    %c0_i32_1 = arith.constant 0 : i32
    return %c0_i32, %c0_i32_0 : i32, i32
  }
  func.func @transform_11(%arg0: i32) -> (i32, i32) {
    %c0_i32 = arith.constant 0 : i32
    %c0_i32_0 = arith.constant 0 : i32
    %c0_i32_1 = arith.constant 0 : i32
    return %c0_i32, %c0_i32_0 : i32, i32
  }
  func.func @transform_12(%arg0: i32) -> (i32, i32) {
    %c0_i32 = arith.constant 0 : i32
    %c0_i32_0 = arith.constant 0 : i32
    %c0_i32_1 = arith.constant 0 : i32
    return %c0_i32, %c0_i32_0 : i32, i32
  }
  func.func @transform_13(%arg0: i32) -> (i32, i32) {
    %c0_i32 = arith.constant 0 : i32
    %c0_i32_0 = arith.constant 0 : i32
    return %arg0, %c0_i32 : i32, i32
  }
}

</mosaic_0001>

<llo_original>
// kernel: tpu_custom_call.1
$region0: #{tpu_custom_call.1}
  #allocation0 [shape = 'u32[]', space=smem, size = 0x4, offset = 0x4, fixed_abs, tag = 'smem constant byte address 0x4 - core index']
  #allocation1 [shape = 'u32[144,128]{1,0:T(1,128)}', space=vmem, size = 0x12000, scoped, tag = 'internal scratch']
  %s0 = inlined_call_operand.vmem [shape: f32[16,32], index: 0, kind: input, shape index: {}]
  %s1 = inlined_call_operand.vmem [shape: bf16[32,96], index: 1, kind: input, shape index: {}]
  %s2 = inlined_call_operand.vmem [shape: f32[1,96], index: 2, kind: input, shape index: {}]
  %s3 = inlined_call_operand.vmem [shape: bf16[32,32], index: 3, kind: input, shape index: {}]
  %s4 = inlined_call_operand.vmem [shape: f32[1,32], index: 4, kind: input, shape index: {}]
  %s5 = inlined_call_operand.hbm [shape: f32[1,32], index: 5, kind: input, shape index: {}]
  %s6 = inlined_call_operand.hbm [shape: f32[1,32], index: 6, kind: input, shape index: {}]
  %s7 = inlined_call_operand.hbm [shape: f32[1,32], index: 7, kind: input, shape index: {}]
  %s8 = inlined_call_operand.hbm [shape: f32[1,32], index: 8, kind: input, shape index: {}]
  %s9 = inlined_call_operand.vmem [shape: bf16[32,64], index: 9, kind: input, shape index: {}]
  %s10 = inlined_call_operand.vmem [shape: f32[1,64], index: 10, kind: input, shape index: {}]
  %s11 = inlined_call_operand.vmem [shape: bf16[64,32], index: 11, kind: input, shape index: {}]
  %s12 = inlined_call_operand.vmem [shape: f32[1,32], index: 12, kind: input, shape index: {}]
  %s13 = inlined_call_operand.hbm [shape: f32[16,32], index: 13, kind: output, shape index: {}]
  %s14 = sld [smem:[#allocation0]]
  $region101: #{tpu_custom_call.1} parent=0
    _
  %s16 = ssub.s32 1, %s14
  %s17 = scalar_select 0, %s16, %s14
  $region1: #{tpu_custom_call.1} parent=0
    #allocation2 [shape = 'u8[512]{0}', space=vmem, size = 0x400, scoped, tag = 'input window, operand 5, single buffered']
    #allocation3 [shape = 's32[2]{0}', space=sflag, size = 0x8, scoped, tag = 'scoped memory for tpu_custom_call.1']
    #allocation4 [shape = 's32[2]{0}', space=sflag, size = 0x8, scoped, tag = 'scoped memory for tpu_custom_call.1']
    #allocation5 [shape = 'u8[512]{0}', space=vmem, size = 0x400, scoped, tag = 'input window, operand 6, single buffered']
    #allocation6 [shape = 's32[1]{0}', space=sflag, size = 0x4, scoped, tag = 'scoped memory for tpu_custom_call.1']
    #allocation7 [shape = 'u8[512]{0}', space=vmem, size = 0x400, scoped, tag = 'input window, operand 7, single buffered']
    #allocation8 [shape = 'u8[512]{0}', space=vmem, size = 0x400, scoped, tag = 'input window, operand 8, single buffered']
    #allocation9 [shape = 's32[1]{0}', space=sflag, size = 0x4, scoped, tag = 'scoped memory for tpu_custom_call.1']
    #allocation10 [shape = 'u8[8192]{0}', space=vmem, size = 0x2000, scoped, tag = 'output window, operand 0']
    %18 = vsyncpa [#allocation3], 0
    %19 = vsyncpa [#allocation6], 0
    %20 = vsyncpa [#allocation9], 0
    %21 = vsyncpa [#allocation4], 0
    %s22 = scalar_lea.sflag [#allocation4], 1
    %23 = vsyncpa %s22, 0
    loop: start=0, step=1, limit=4
    $region2: #{tpu_custom_call.1} parent=1 // loop_pre_header
      _
    $region3: #{tpu_custom_call.1} parent=1 // loop_header
      %s25 = sphi 0, %s29
      %p26 = scmp.ge.s32.totalorder %s25, 4
      %s35 = sphi 0, %s37
      %s38 = sphi 0, %s35
      %s39 = sphi 0, %s38
      %s55 = sphi 0, %s39
      %s59 = sphi 0, %s59
      %s61 = sphi 0, %s59
      %s62 = sphi 0, %s61
      %s76 = sphi 0, %s62
      %s80 = sphi 0, %s80
      %s82 = sphi 0, %s80
      %s83 = sphi 0, %s82
      %s97 = sphi 0, %s83
      %s101 = sphi 0, %s101
      %s103 = sphi 0, %s101
      %s104 = sphi 0, %s103
      %s118 = sphi 0, %s104
      %s122 = sphi 0, %s122
      %s124 = sphi 0, %s122
      %s125 = sphi 0, %s124
      %s139 = sphi 0, %s125
      %s143 = sphi 0, %s143
      %s145 = sphi 0, %s143
      %s146 = sphi 0, %s145
      %s160 = sphi 0, %s146
      %s164 = sphi 0, %s164
      %s166 = sphi 0, %s164
      %s167 = sphi 0, %s166
      %s181 = sphi 0, %s167
      %s185 = sphi 0, %s185
      %s187 = sphi 0, %s185
      %s188 = sphi 0, %s187
      %s202 = sphi 0, %s188
      %s206 = sphi 0, %s206
      %s208 = sphi 0, %s206
      %s209 = sphi 0, %s208
      %s223 = sphi 0, %s209
      %s227 = sphi 0, %s227
      %s229 = sphi 0, %s227
      %s230 = sphi 0, %s229
      %s244 = sphi 0, %s230
      %s248 = sphi 0, %s248
      %s250 = sphi 0, %s248
      %s251 = sphi 0, %s250
      %s265 = sphi 0, %s251
      %s269 = sphi 0, %s269
      %s271 = sphi 0, %s269
      %s272 = sphi 0, %s271
      %s286 = sphi 0, %s272
      %s290 = sphi 0, %s290
      %s292 = sphi 0, %s290
      %s293 = sphi 0, %s292
      %s307 = sphi 0, %s293
      %s313 = sphi 0, %s315
      %s316 = sphi 0, %s313
      %s317 = sphi 0, %s316
      %s333 = sphi 0, %s317
    $region4: #{tpu_custom_call.1} parent=1 // loop_header_branch
      %28 = sbr.rel (%p26) target = $region8
    $region5: #{tpu_custom_call.1} parent=1 // loop_body
      %s30 = ssub.s32 %s25, 1
      %s31 = ssub.s32 %s25, 2
      %s32 = sadd.s32 %s25, 1
      %s33 = ssub.s32 %s25, %s32
      %p34 = scmp.eq.s32.totalorder %s33, 0
      %s36 = sadd.s32 %s35, 1
      %s37 = scalar_select %p34, %s35, %s36
      %p40 = pneg %p34
      %p41 = scmp.eq.s32.totalorder %s25, 1
      %p42 = por %p40, %p41
      %p43 = scmp.ne.s32.totalorder %s35, %s38
      %p44 = scmp.eq.s32.totalorder %s25, 0
      %p45 = por %p43, %p44
      %p46 = scmp.ne.s32.totalorder %s35, %s38
      %p47 = scmp.eq.s32.totalorder %s30, 1
      %p48 = por %p46, %p47
      %p49 = scmp.ne.s32.totalorder %s38, %s39
      %p50 = scmp.eq.s32.totalorder %s30, 0
      %p51 = por %p49, %p50
      %p52 = scmp.ne.s32.totalorder %s38, %s39
      %p53 = scmp.eq.s32.totalorder %s31, 1
      %p54 = por %p52, %p53
      %p56 = scmp.ne.s32.totalorder %s39, %s55
      %p57 = scmp.eq.s32.totalorder %s31, 0
      %p58 = por %p56, %p57
      %s60 = sadd.s32 %s59, 1
      %p63 = scmp.eq.s32.totalorder %s25, 1
      %p64 = scmp.ne.s32.totalorder %s59, %s61
      %p65 = scmp.eq.s32.totalorder %s25, 0
      %p66 = por %p64, %p65
      %p67 = scmp.ne.s32.totalorder %s59, %s61
      %p68 = scmp.eq.s32.totalorder %s30, 1
      %p69 = por %p67, %p68
      %p70 = scmp.ne.s32.totalorder %s61, %s62
      %p71 = scmp.eq.s32.totalorder %s30, 0
      %p72 = por %p70, %p71
      %p73 = scmp.ne.s32.totalorder %s61, %s62
      %p74 = scmp.eq.s32.totalorder %s31, 1
      %p75 = por %p73, %p74
      %p77 = scmp.ne.s32.totalorder %s62, %s76
      %p78 = scmp.eq.s32.totalorder %s31, 0
      %p79 = por %p77, %p78
      %s81 = sadd.s32 %s80, 1
      %p84 = scmp.eq.s32.totalorder %s25, 1
      %p85 = scmp.ne.s32.totalorder %s80, %s82
      %p86 = scmp.eq.s32.totalorder %s25, 0
      %p87 = por %p85, %p86
      %p88 = scmp.ne.s32.totalorder %s80, %s82
      %p89 = scmp.eq.s32.totalorder %s30, 1
      %p90 = por %p88, %p89
      %p91 = scmp.ne.s32.totalorder %s82, %s83
      %p92 = scmp.eq.s32.totalorder %s30, 0
      %p93 = por %p91, %p92
      %p94 = scmp.ne.s32.totalorder %s82, %s83
      %p95 = scmp.eq.s32.totalorder %s31, 1
      %p96 = por %p94, %p95
      %p98 = scmp.ne.s32.totalorder %s83, %s97
      %p99 = scmp.eq.s32.totalorder %s31, 0
      %p100 = por %p98, %p99
      %s102 = sadd.s32 %s101, 1
      %p105 = scmp.eq.s32.totalorder %s25, 1
      %p106 = scmp.ne.s32.totalorder %s101, %s103
      %p107 = scmp.eq.s32.totalorder %s25, 0
      %p108 = por %p106, %p107
      %p109 = scmp.ne.s32.totalorder %s101, %s103
      %p110 = scmp.eq.s32.totalorder %s30, 1
      %p111 = por %p109, %p110
      %p112 = scmp.ne.s32.totalorder %s103, %s104
      %p113 = scmp.eq.s32.totalorder %s30, 0
      %p114 = por %p112, %p113
      %p115 = scmp.ne.s32.totalorder %s103, %s104
      %p116 = scmp.eq.s32.totalorder %s31, 1
      %p117 = por %p115, %p116
      %p119 = scmp.ne.s32.totalorder %s104, %s118
      %p120 = scmp.eq.s32.totalorder %s31, 0
      %p121 = por %p119, %p120
      %s123 = sadd.s32 %s122, 1
      %p126 = scmp.eq.s32.totalorder %s25, 1
      %p127 = scmp.ne.s32.totalorder %s122, %s124
      %p128 = scmp.eq.s32.totalorder %s25, 0
      %p129 = por %p127, %p128
      %p130 = scmp.ne.s32.totalorder %s122, %s124
      %p131 = scmp.eq.s32.totalorder %s30, 1
      %p132 = por %p130, %p131
      %p133 = scmp.ne.s32.totalorder %s124, %s125
      %p134 = scmp.eq.s32.totalorder %s30, 0
      %p135 = por %p133, %p134
      %p136 = scmp.ne.s32.totalorder %s124, %s125
      %p137 = scmp.eq.s32.totalorder %s31, 1
      %p138 = por %p136, %p137
      %p140 = scmp.ne.s32.totalorder %s125, %s139
      %p141 = scmp.eq.s32.totalorder %s31, 0
      %p142 = por %p140, %p141
      %s144 = sadd.s32 %s143, 1
      %p147 = scmp.eq.s32.totalorder %s25, 1
      %p148 = scmp.ne.s32.totalorder %s143, %s145
      %p149 = scmp.eq.s32.totalorder %s25, 0
      %p150 = por %p148, %p149
      %p151 = scmp.ne.s32.totalorder %s143, %s145
      %p152 = scmp.eq.s32.totalorder %s30, 1
      %p153 = por %p151, %p152
      %p154 = scmp.ne.s32.totalorder %s145, %s146
      %p155 = scmp.eq.s32.totalorder %s30, 0
      %p156 = por %p154, %p155
      %p157 = scmp.ne.s32.totalorder %s145, %s146
      %p158 = scmp.eq.s32.totalorder %s31, 1
      %p159 = por %p157, %p158
      %p161 = scmp.ne.s32.totalorder %s146, %s160
      %p162 = scmp.eq.s32.totalorder %s31, 0
      %p163 = por %p161, %p162
      %s165 = sadd.s32 %s164, 1
      %p168 = scmp.eq.s32.totalorder %s25, 1
      %p169 = scmp.ne.s32.totalorder %s164, %s166
      %p170 = scmp.eq.s32.totalorder %s25, 0
      %p171 = por %p169, %p170
      %p172 = scmp.ne.s32.totalorder %s164, %s166
      %p173 = scmp.eq.s32.totalorder %s30, 1
      %p174 = por %p172, %p173
      %p175 = scmp.ne.s32.totalorder %s166, %s167
      %p176 = scmp.eq.s32.totalorder %s30, 0
      %p177 = por %p175, %p176
      %p178 = scmp.ne.s32.totalorder %s166, %s167
      %p179 = scmp.eq.s32.totalorder %s31, 1
      %p180 = por %p178, %p179
      %p182 = scmp.ne.s32.totalorder %s167, %s181
      %p183 = scmp.eq.s32.totalorder %s31, 0
      %p184 = por %p182, %p183
      %s186 = sadd.s32 %s185, 1
      %p189 = scmp.eq.s32.totalorder %s25, 1
      %p190 = scmp.ne.s32.totalorder %s185, %s187
      %p191 = scmp.eq.s32.totalorder %s25, 0
      %p192 = por %p190, %p191
      %p193 = scmp.ne.s32.totalorder %s185, %s187
      %p194 = scmp.eq.s32.totalorder %s30, 1
      %p195 = por %p193, %p194
      %p196 = scmp.ne.s32.totalorder %s187, %s188
      %p197 = scmp.eq.s32.totalorder %s30, 0
      %p198 = por %p196, %p197
      %p199 = scmp.ne.s32.totalorder %s187, %s188
      %p200 = scmp.eq.s32.totalorder %s31, 1
      %p201 = por %p199, %p200
      %p203 = scmp.ne.s32.totalorder %s188, %s202
      %p204 = scmp.eq.s32.totalorder %s31, 0
      %p205 = por %p203, %p204
      %s207 = sadd.s32 %s206, 1
      %p210 = scmp.eq.s32.totalorder %s25, 1
      %p211 = scmp.ne.s32.totalorder %s206, %s208
      %p212 = scmp.eq.s32.totalorder %s25, 0
      %p213 = por %p211, %p212
      %p214 = scmp.ne.s32.totalorder %s206, %s208
      %p215 = scmp.eq.s32.totalorder %s30, 1
      %p216 = por %p214, %p215
      %p217 = scmp.ne.s32.totalorder %s208, %s209
      %p218 = scmp.eq.s32.totalorder %s30, 0
      %p219 = por %p217, %p218
      %p220 = scmp.ne.s32.totalorder %s208, %s209
      %p221 = scmp.eq.s32.totalorder %s31, 1
      %p222 = por %p220, %p221
      %p224 = scmp.ne.s32.totalorder %s209, %s223
      %p225 = scmp.eq.s32.totalorder %s31, 0
      %p226 = por %p224, %p225
      %s228 = sadd.s32 %s227, 1
      %p231 = scmp.eq.s32.totalorder %s25, 1
      %p232 = scmp.ne.s32.totalorder %s227, %s229
      %p233 = scmp.eq.s32.totalorder %s25, 0
      %p234 = por %p232, %p233
      %p235 = scmp.ne.s32.totalorder %s227, %s229
      %p236 = scmp.eq.s32.totalorder %s30, 1
      %p237 = por %p235, %p236
      %p238 = scmp.ne.s32.totalorder %s229, %s230
      %p239 = scmp.eq.s32.totalorder %s30, 0
      %p240 = por %p238, %p239
      %p241 = scmp.ne.s32.totalorder %s229, %s230
      %p242 = scmp.eq.s32.totalorder %s31, 1
      %p243 = por %p241, %p242
      %p245 = scmp.ne.s32.totalorder %s230, %s244
      %p246 = scmp.eq.s32.totalorder %s31, 0
      %p247 = por %p245, %p246
      %s249 = sadd.s32 %s248, 1
      %p252 = scmp.eq.s32.totalorder %s25, 1
      %p253 = scmp.ne.s32.totalorder %s248, %s250
      %p254 = scmp.eq.s32.totalorder %s25, 0
      %p255 = por %p253, %p254
      %p256 = scmp.ne.s32.totalorder %s248, %s250
      %p257 = scmp.eq.s32.totalorder %s30, 1
      %p258 = por %p256, %p257
      %p259 = scmp.ne.s32.totalorder %s250, %s251
      %p260 = scmp.eq.s32.totalorder %s30, 0
      %p261 = por %p259, %p260
      %p262 = scmp.ne.s32.totalorder %s250, %s251
      %p263 = scmp.eq.s32.totalorder %s31, 1
      %p264 = por %p262, %p263
      %p266 = scmp.ne.s32.totalorder %s251, %s265
      %p267 = scmp.eq.s32.totalorder %s31, 0
      %p268 = por %p266, %p267
      %s270 = sadd.s32 %s269, 1
      %p273 = scmp.eq.s32.totalorder %s25, 1
      %p274 = scmp.ne.s32.totalorder %s269, %s271
      %p275 = scmp.eq.s32.totalorder %s25, 0
      %p276 = por %p274, %p275
      %p277 = scmp.ne.s32.totalorder %s269, %s271
      %p278 = scmp.eq.s32.totalorder %s30, 1
      %p279 = por %p277, %p278
      %p280 = scmp.ne.s32.totalorder %s271, %s272
      %p281 = scmp.eq.s32.totalorder %s30, 0
      %p282 = por %p280, %p281
      %p283 = scmp.ne.s32.totalorder %s271, %s272
      %p284 = scmp.eq.s32.totalorder %s31, 1
      %p285 = por %p283, %p284
      %p287 = scmp.ne.s32.totalorder %s272, %s286
      %p288 = scmp.eq.s32.totalorder %s31, 0
      %p289 = por %p287, %p288
      %s291 = sadd.s32 %s290, 1
      %p294 = scmp.eq.s32.totalorder %s25, 1
      %p295 = scmp.ne.s32.totalorder %s290, %s292
      %p296 = scmp.eq.s32.totalorder %s25, 0
      %p297 = por %p295, %p296
      %p298 = scmp.ne.s32.totalorder %s290, %s292
      %p299 = scmp.eq.s32.totalorder %s30, 1
      %p300 = por %p298, %p299
      %p301 = scmp.ne.s32.totalorder %s292, %s293
      %p302 = scmp.eq.s32.totalorder %s30, 0
      %p303 = por %p301, %p302
      %p304 = scmp.ne.s32.totalorder %s292, %s293
      %p305 = scmp.eq.s32.totalorder %s31, 1
      %p306 = por %p304, %p305
      %p308 = scmp.ne.s32.totalorder %s293, %s307
      %p309 = scmp.eq.s32.totalorder %s31, 0
      %p310 = por %p308, %p309
      %s311 = ssub.s32 %s25, %s32
      %p312 = scmp.eq.s32.totalorder %s311, 0
      %s314 = sadd.s32 %s313, 1
      %s315 = scalar_select %p312, %s313, %s314
      %p318 = pneg %p312
      %p319 = scmp.eq.s32.totalorder %s25, 1
      %p320 = por %p318, %p319
      %p321 = scmp.ne.s32.totalorder %s313, %s316
      %p322 = scmp.eq.s32.totalorder %s25, 0
      %p323 = por %p321, %p322
      %p324 = scmp.ne.s32.totalorder %s313, %s316
      %p325 = scmp.eq.s32.totalorder %s30, 1
      %p326 = por %p324, %p325
      %p327 = scmp.ne.s32.totalorder %s316, %s317
      %p328 = scmp.eq.s32.totalorder %s30, 0
      %p329 = por %p327, %p328
      %p330 = scmp.ne.s32.totalorder %s316, %s317
      %p331 = scmp.eq.s32.totalorder %s31, 1
      %p332 = por %p330, %p331
      %p334 = scmp.ne.s32.totalorder %s317, %s333
      %p335 = scmp.eq.s32.totalorder %s31, 0
      %p336 = por %p334, %p335
      %p337 = scmp.le.s32.totalorder 1, %s25
      %p338 = scmp.lt.s32.totalorder %s25, 3
      %p339 = pnand %p337, %p338
      %p340 = pneg %p339
      // Predicated region
      $region9: #{tpu_custom_call.1} parent=5 // pred_check
        _
      $region10: #{tpu_custom_call.1} parent=5 // pred_check_branch
        %342 = sbr.rel (%p339) target = $region12
      $region11: #{tpu_custom_call.1} parent=5 // pred_region
        %s343 = ssub.s32 %s25, 1
        // Predicated region
        $region13: #{tpu_custom_call.1} parent=11 // pred_check
          %p344 = pneg %p72
        $region14: #{tpu_custom_call.1} parent=11 // pred_check_branch
          %346 = sbr.rel (%p344) target = $region16
        $region15: #{tpu_custom_call.1} parent=11 // pred_region
          _
        $region16: #{tpu_custom_call.1} parent=11 // pred_fallthru
          _
        // Predicated region
        $region17: #{tpu_custom_call.1} parent=11 // pred_check
          %p347 = pneg %p93
        $region18: #{tpu_custom_call.1} parent=11 // pred_check_branch
          %349 = sbr.rel (%p347) target = $region20
        $region19: #{tpu_custom_call.1} parent=11 // pred_region
          _
        $region20: #{tpu_custom_call.1} parent=11 // pred_fallthru
          _
        // Predicated region
        $region21: #{tpu_custom_call.1} parent=11 // pred_check
          %p350 = pneg %p114
        $region22: #{tpu_custom_call.1} parent=11 // pred_check_branch
          %352 = sbr.rel (%p350) target = $region24
        $region23: #{tpu_custom_call.1} parent=11 // pred_region
          _
        $region24: #{tpu_custom_call.1} parent=11 // pred_fallthru
          _
        // Predicated region
        $region25: #{tpu_custom_call.1} parent=11 // pred_check
          %p353 = pneg %p135
        $region26: #{tpu_custom_call.1} parent=11 // pred_check_branch
          %355 = sbr.rel (%p353) target = $region28
        $region27: #{tpu_custom_call.1} parent=11 // pred_region
          _
        $region28: #{tpu_custom_call.1} parent=11 // pred_fallthru
          _
        // Predicated region
        $region29: #{tpu_custom_call.1} parent=11 // pred_check
          %p356 = pneg %p156
        $region30: #{tpu_custom_call.1} parent=11 // pred_check_branch
          %358 = sbr.rel (%p356) target = $region32
        $region31: #{tpu_custom_call.1} parent=11 // pred_region
          %s360 = ssub.s32 16, 16
          %361 = vsyncadd [#allocation3], %s360
          %s363 = sshll.u32 [#allocation2], 4
          %s364 = int_to_ptr.vmem [resolvable:$true] %s363
          %366 = dma.hbm_to_vmem [thread:$0]  %s5, 16, %s364, [#allocation3]
        $region32: #{tpu_custom_call.1} parent=11 // pred_fallthru
          _
        // Predicated region
        $region33: #{tpu_custom_call.1} parent=11 // pred_check
          %p367 = pneg %p177
        $region34: #{tpu_custom_call.1} parent=11 // pred_check_branch
          %369 = sbr.rel (%p367) target = $region36
        $region35: #{tpu_custom_call.1} parent=11 // pred_region
          %s371 = ssub.s32 16, 16
          %372 = vsyncadd [#allocation6], %s371
          %s374 = sshll.u32 [#allocation5], 4
          %s375 = int_to_ptr.vmem [resolvable:$true] %s374
          %377 = dma.hbm_to_vmem [thread:$0]  %s6, 16, %s375, [#allocation6]
        $region36: #{tpu_custom_call.1} parent=11 // pred_fallthru
          _
        // Predicated region
        $region37: #{tpu_custom_call.1} parent=11 // pred_check
          %p378 = pneg %p198
        $region38: #{tpu_custom_call.1} parent=11 // pred_check_branch
          %380 = sbr.rel (%p378) target = $region40
        $region39: #{tpu_custom_call.1} parent=11 // pred_region
          %s382 = ssub.s32 16, 16
          %383 = vsyncadd [#allocation6], %s382
          %s385 = sshll.u32 [#allocation7], 4
          %s386 = int_to_ptr.vmem [resolvable:$true] %s385
          %388 = dma.hbm_to_vmem [thread:$0]  %s7, 16, %s386, [#allocation6]
        $region40: #{tpu_custom_call.1} parent=11 // pred_fallthru
          _
        // Predicated region
        $region41: #{tpu_custom_call.1} parent=11 // pred_check
          %p389 = pneg %p219
        $region42: #{tpu_custom_call.1} parent=11 // pred_check_branch
          %391 = sbr.rel (%p389) target = $region44
        $region43: #{tpu_custom_call.1} parent=11 // pred_region
          %s393 = ssub.s32 16, 16
          %394 = vsyncadd [#allocation9], %s393
          %s396 = sshll.u32 [#allocation8], 4
          %s397 = int_to_ptr.vmem [resolvable:$true] %s396
          %399 = dma.hbm_to_vmem [thread:$0]  %s8, 16, %s397, [#allocation9]
        $region44: #{tpu_custom_call.1} parent=11 // pred_fallthru
          _
        // Predicated region
        $region45: #{tpu_custom_call.1} parent=11 // pred_check
          %p400 = pneg %p240
        $region46: #{tpu_custom_call.1} parent=11 // pred_check_branch
          %402 = sbr.rel (%p400) target = $region48
        $region47: #{tpu_custom_call.1} parent=11 // pred_region
          _
        $region48: #{tpu_custom_call.1} parent=11 // pred_fallthru
          _
        // Predicated region
        $region49: #{tpu_custom_call.1} parent=11 // pred_check
          %p403 = pneg %p261
        $region50: #{tpu_custom_call.1} parent=11 // pred_check_branch
          %405 = sbr.rel (%p403) target = $region52
        $region51: #{tpu_custom_call.1} parent=11 // pred_region
          _
        $region52: #{tpu_custom_call.1} parent=11 // pred_fallthru
          _
        // Predicated region
        $region53: #{tpu_custom_call.1} parent=11 // pred_check
          %p406 = pneg %p282
        $region54: #{tpu_custom_call.1} parent=11 // pred_check_branch
          %408 = sbr.rel (%p406) target = $region56
        $region55: #{tpu_custom_call.1} parent=11 // pred_region
          _
        $region56: #{tpu_custom_call.1} parent=11 // pred_fallthru
          _
        // Predicated region
        $region57: #{tpu_custom_call.1} parent=11 // pred_check
          %p409 = pneg %p303
        $region58: #{tpu_custom_call.1} parent=11 // pred_check_branch
          %411 = sbr.rel (%p409) target = $region60
        $region59: #{tpu_custom_call.1} parent=11 // pred_region
          _
        $region60: #{tpu_custom_call.1} parent=11 // pred_fallthru
          _
      $region12: #{tpu_custom_call.1} parent=5 // pred_fallthru
        _
      %p412 = scmp.lt.s32.totalorder %s25, 2
      // Predicated region
      $region61: #{tpu_custom_call.1} parent=5 // pred_check
        %p413 = pneg %p412
      $region62: #{tpu_custom_call.1} parent=5 // pred_check_branch
        %415 = sbr.rel (%p413) target = $region64
      $region63: #{tpu_custom_call.1} parent=5 // pred_region
        // Predicated region
        $region65: #{tpu_custom_call.1} parent=63 // pred_check
          %p416 = pneg %p45
        $region66: #{tpu_custom_call.1} parent=63 // pred_check_branch
          %418 = sbr.rel (%p416) target = $region68
        $region67: #{tpu_custom_call.1} parent=63 // pred_region
          %p419 = scmp.lt.s32.totalorder %s25, 1
          %s420 = scalar_select %p419, %s25, 1
          %s421 = smul.addr %s420, 8
          %s422 = scalar_lea.vmem %s0, %s421
        $region68: #{tpu_custom_call.1} parent=63 // pred_fallthru
          _
      $region64: #{tpu_custom_call.1} parent=5 // pred_fallthru
        _
      %p423 = scmp.le.s32.totalorder 1, %s25
      %p424 = scmp.lt.s32.totalorder %s25, 3
      %p425 = pnand %p423, %p424
      %p426 = pneg %p425
      // Predicated region
      $region69: #{tpu_custom_call.1} parent=5 // pred_check
        _
      $region70: #{tpu_custom_call.1} parent=5 // pred_check_branch
        %428 = sbr.rel (%p425) target = $region72
      $region71: #{tpu_custom_call.1} parent=5 // pred_region
        %s429 = ssub.s32 %s25, 1
        // Predicated region
        $region73: #{tpu_custom_call.1} parent=71 // pred_check
          %p430 = pneg %p156
        $region74: #{tpu_custom_call.1} parent=71 // pred_check_branch
          %432 = sbr.rel (%p430) target = $region76
        $region75: #{tpu_custom_call.1} parent=71 // pred_region
          %433 = dma.done [#allocation3], 16
        $region76: #{tpu_custom_call.1} parent=71 // pred_fallthru
          _
        // Predicated region
        $region77: #{tpu_custom_call.1} parent=71 // pred_check
          %p434 = pneg %p177
        $region78: #{tpu_custom_call.1} parent=71 // pred_check_branch
          %436 = sbr.rel (%p434) target = $region80
        $region79: #{tpu_custom_call.1} parent=71 // pred_region
          %437 = dma.done [#allocation6], 16
        $region80: #{tpu_custom_call.1} parent=71 // pred_fallthru
          _
        // Predicated region
        $region81: #{tpu_custom_call.1} parent=71 // pred_check
          %p438 = pneg %p198
        $region82: #{tpu_custom_call.1} parent=71 // pred_check_branch
          %440 = sbr.rel (%p438) target = $region84
        $region83: #{tpu_custom_call.1} parent=71 // pred_region
          %441 = dma.done [#allocation6], 16
        $region84: #{tpu_custom_call.1} parent=71 // pred_fallthru
          _
        // Predicated region
        $region85: #{tpu_custom_call.1} parent=71 // pred_check
          %p442 = pneg %p219
        $region86: #{tpu_custom_call.1} parent=71 // pred_check_branch
          %444 = sbr.rel (%p442) target = $region88
        $region87: #{tpu_custom_call.1} parent=71 // pred_region
          %445 = dma.done [#allocation9], 16
        $region88: #{tpu_custom_call.1} parent=71 // pred_fallthru
          _
        %p446 = scmp.lt.s32.totalorder %s30, 1
        %s447 = scalar_select %p446, %s30, 1
        %s448 = smul.addr %s447, 8
        %s449 = scalar_lea.vmem %s0, %s448
        %p450 = pneg %p51
        %p451 = pneg %p48
        %p452 = pneg %p72
        %p453 = pneg %p69
        %p454 = pneg %p93
        %p455 = pneg %p90
        %p456 = pneg %p114
        %p457 = pneg %p111
        %p458 = pneg %p135
        %p459 = pneg %p132
        %p460 = pneg %p156
        %p461 = pneg %p153
        %p462 = pneg %p177
        %p463 = pneg %p174
        %p464 = pneg %p198
        %p465 = pneg %p195
        %p466 = pneg %p219
        %p467 = pneg %p216
        %p468 = pneg %p240
        %p469 = pneg %p237
        %p470 = pneg %p261
        %p471 = pneg %p258
        %p472 = pneg %p282
        %p473 = pneg %p279
        %p474 = pneg %p303
        %p475 = pneg %p300
        %p476 = pneg %p329
        %p477 = pneg %p326
        %s478 = sand.u32 %s316, 1
        %s479 = scalar_lea.sflag [#allocation4], %s478
        %s480 = sand.u32 %s316, 1
        %s481 = smul.addr %s480, 8
        %s482 = scalar_lea.vmem [#allocation10], %s481
        %p483 = scmp.lt.s32.totalorder %s30, 1
        %s484 = scalar_select %p483, %s30, 1
        %s485 = smul.addr %s484, 8
        %s486 = scalar_lea.vmem %s0, %s485
        %v488 = vld [vmem:[%s486] sm:$0xff]
        %vm489 = vcmask 261120
        %v490 = vsel %vm489, %v488, 0.0
        %491 = vadd.xlane.f32.xlu0 %v490
        %v492 = vpop.xlane.xlu0 %491
        %v493 = vrcp.pop 32.0
        %v494 = vmul.f32 %v492, %v493
        %v495 = vsub.f32 %v488, %v494
        %v496 = vmul.f32 %v495, %v495
        %v497 = vsel %vm489, %v496, 0.0
        %498 = vadd.xlane.f32.xlu0 %v497
        %v499 = vpop.xlane.xlu0 %498
        %v500 = vmul.f32 %v499, %v493
        %v501 = vadd.f32 %v500, 1e-05
        %v502 = vrsqrt.pop %v501
        %v503 = vmul.f32 %v495, %v502
        %v504 = vld [vmem:[#allocation2] sm:$0x1]
        %v506 = vlaneseq
        %v507 = vshrl.u32 %v506, 7
        %v508 = vsub.s32 0, %v507
        %v509 = vrot.slane %v504, %v508
        %v511 = vmul.f32 %v503, %v509
        %v512 = vld [vmem:[#allocation5] sm:$0x1]
        %v514 = vlaneseq
        %v515 = vshrl.u32 %v514, 7
        %v516 = vsub.s32 0, %v515
        %v517 = vrot.slane %v512, %v516
        %v519 = vadd.f32 %v511, %v517
        %v520 = vpack.c.bf16 %v519, %v519
        %v521 = vld [vmem:[%s1] sm:$0xf]
        %v522 = vld [vmem:[%s1 + $0x4] sm:$0xf]
        %v523 = vld [vmem:[%s1 + $0x8] sm:$0xf]
        %v524 = vld [vmem:[%s1 + $0xc] sm:$0xf]
        %v525 = vld [vmem:[%s2] sm:$0x1]
        %v527 = vlaneseq
        %v528 = vshrl.u32 %v527, 7
        %v529 = vsub.s32 0, %v528
        %v530 = vrot.slane %v525, %v529
        %v536 = vunpack.c.l.b16 %v521
        %v537 = vunpack.c.l.b16 %v522
        %v538 = vunpack.c.l.b16 %v523
        %v539 = vunpack.c.l.b16 %v524
        %v540 = vpack.c.b16 %v537, %v536
        %v541 = vpack.c.b16 %v539, %v538
        %v545 = vsel %vm489, %v520, 0
        %547 = vmatprep.subr.bf16.mxu0 0
        %548 = vmatpush1.bf16.msra.mxu0 %v540
        %549 = vmatprep.subr.bf16.mxu0 0
        %550 = vmatpush1.bf16.msra.mxu0 %v541
        %551 = vmatprep.subr.bf16.mxu0 0
        %552 = vmatpush1.bf16.msra.mxu0 0
        %553 = vmatprep.subr.bf16.mxu0 0
        %554 = vmatpush1.bf16.msra.mxu0 0
        %555 = vmatprep.subr.bf16.mxu0 0
        %556 = vmatpush1.bf16.msra.mxu0 0
        %557 = vmatprep.subr.bf16.mxu0 0
        %558 = vmatpush1.bf16.msra.mxu0 0
        %559 = vmatprep.subr.bf16.mxu0 0
        %560 = vmatpush1.bf16.msra.mxu0 0
        %561 = vmatprep.subr.bf16.mxu0 0
        %562 = vmatpush1.bf16.msra.mxu0 0
        %563 = vmatprep.subr.bf16.mxu0 0
        %564 = vmatpush1.bf16.msra.mxu0 0
        %565 = vmatprep.subr.bf16.mxu0 0
        %566 = vmatpush1.bf16.msra.mxu0 0
        %567 = vmatprep.subr.bf16.mxu0 0
        %568 = vmatpush1.bf16.msra.mxu0 0
        %569 = vmatprep.subr.bf16.mxu0 0
        %570 = vmatpush1.bf16.msra.mxu0 0
        %571 = vmatprep.subr.bf16.mxu0 0
        %572 = vmatpush1.bf16.msra.mxu0 0
        %573 = vmatprep.subr.bf16.mxu0 0
        %574 = vmatpush1.bf16.msra.mxu0 0
        %575 = vmatprep.subr.bf16.mxu0 0
        %576 = vmatpush1.bf16.msra.mxu0 0
        %577 = vmatprep.subr.bf16.mxu0 0
        %578 = vmatpush1.bf16.msra.mxu0 0
        %579 = vmatprep.mubr.bf16.mxu0 0
        %580 = vmatmul.mubr.bf16.gmra.mrb[0].mxu0 %v545
        %v581 = vpop.f32.mrb[0].mxu0
        %v582 = vadd.f32 %v530, %v581
        %v583 = vpop.f32.mrb[0].mxu0
        %v584 = vpop.f32.mrb[0].mxu0
        %v585 = vpop.f32.mrb[0].mxu0
        %586 = vdwg.mxu0
        %v587 = vpack.c.bf16 %v582, %v582
        %589 = vrot.lane.b32.xlu0 %v587, 120
        %v590 = vpop.permute.xlu0 %589
        %591 = vrot.lane.b32.xlu0 %v587, 112
        %v592 = vpop.permute.xlu0 %591
        %593 = vrot.lane.b32.xlu0 %v587, 104
        %v594 = vpop.permute.xlu0 %593
        %595 = vrot.lane.b32.xlu0 %v587, 96
        %v596 = vpop.permute.xlu0 %595
        %vm597 = vcmask 64512
        %v599 = vsel %vm597, %v587, 0
        %v602 = vsel %vm597, %v596, 0
        %604 = vmatprep.subr.bf16.mxu0 0
        %605 = vmatpush1.bf16.xpose.msra.mxu0 %v602
        %606 = vmatprep.subr.bf16.mxu0 0
        %607 = vmatpush1.bf16.xpose.msra.mxu0 0
        %608 = vmatprep.subr.bf16.mxu0 0
        %609 = vmatpush1.bf16.xpose.msra.mxu0 0
        %610 = vmatprep.subr.bf16.mxu0 0
        %611 = vmatpush1.bf16.xpose.msra.mxu0 0
        %612 = vmatprep.subr.bf16.mxu0 0
        %613 = vmatpush1.bf16.xpose.msra.mxu0 0
        %614 = vmatprep.subr.bf16.mxu0 0
        %615 = vmatpush1.bf16.xpose.msra.mxu0 0
        %616 = vmatprep.subr.bf16.mxu0 0
        %617 = vmatpush1.bf16.xpose.msra.mxu0 0
        %618 = vmatprep.subr.bf16.mxu0 0
        %619 = vmatpush1.bf16.xpose.msra.mxu0 0
        %620 = vmatprep.subr.bf16.mxu0 0
        %621 = vmatpush1.bf16.xpose.msra.mxu0 0
        %622 = vmatprep.subr.bf16.mxu0 0
        %623 = vmatpush1.bf16.xpose.msra.mxu0 0
        %624 = vmatprep.subr.bf16.mxu0 0
        %625 = vmatpush1.bf16.xpose.msra.mxu0 0
        %626 = vmatprep.subr.bf16.mxu0 0
        %627 = vmatpush1.bf16.xpose.msra.mxu0 0
        %628 = vmatprep.subr.bf16.mxu0 0
        %629 = vmatpush1.bf16.xpose.msra.mxu0 0
        %630 = vmatprep.subr.bf16.mxu0 0
        %631 = vmatpush1.bf16.xpose.msra.mxu0 0
        %632 = vmatprep.subr.bf16.mxu0 0
        %633 = vmatpush1.bf16.xpose.msra.mxu0 0
        %634 = vmatprep.subr.bf16.mxu0 0
        %635 = vmatpush1.bf16.xpose.msra.mxu0 0
        %636 = vmatprep.mubr.bf16.mxu0 0
        %637 = vmatmul.mubr.bf16.gmra.mrb[0].mxu0 %v599
        %v638 = vpop.f32.mrb[0].mxu0
        %v639 = vadd.f32 0.0, %v638
        %v640 = vpop.f32.mrb[0].mxu0
        %v641 = vpop.f32.mrb[0].mxu0
        %v642 = vpop.f32.mrb[0].mxu0
        %643 = vdwg.mxu0
        %644 = vrot.lane.b32.xlu0 %v590, 96
        %v645 = vpop.permute.xlu0 %644
        %v647 = vsel %vm597, %v590, 0
        %v650 = vsel %vm597, %v645, 0
        %652 = vmatprep.subr.bf16.mxu0 0
        %653 = vmatpush1.bf16.xpose.msra.mxu0 %v650
        %654 = vmatprep.subr.bf16.mxu0 0
        %655 = vmatpush1.bf16.xpose.msra.mxu0 0
        %656 = vmatprep.subr.bf16.mxu0 0
        %657 = vmatpush1.bf16.xpose.msra.mxu0 0
        %658 = vmatprep.subr.bf16.mxu0 0
        %659 = vmatpush1.bf16.xpose.msra.mxu0 0
        %660 = vmatprep.subr.bf16.mxu0 0
        %661 = vmatpush1.bf16.xpose.msra.mxu0 0
        %662 = vmatprep.subr.bf16.mxu0 0
        %663 = vmatpush1.bf16.xpose.msra.mxu0 0
        %664 = vmatprep.subr.bf16.mxu0 0
        %665 = vmatpush1.bf16.xpose.msra.mxu0 0
        %666 = vmatprep.subr.bf16.mxu0 0
        %667 = vmatpush1.bf16.xpose.msra.mxu0 0
        %668 = vmatprep.subr.bf16.mxu0 0
        %669 = vmatpush1.bf16.xpose.msra.mxu0 0
        %670 = vmatprep.subr.bf16.mxu0 0
        %671 = vmatpush1.bf16.xpose.msra.mxu0 0
        %672 = vmatprep.subr.bf16.mxu0 0
        %673 = vmatpush1.bf16.xpose.msra.mxu0 0
        %674 = vmatprep.subr.bf16.mxu0 0
        %675 = vmatpush1.bf16.xpose.msra.mxu0 0
        %676 = vmatprep.subr.bf16.mxu0 0
        %677 = vmatpush1.bf16.xpose.msra.mxu0 0
        %678 = vmatprep.subr.bf16.mxu0 0
        %679 = vmatpush1.bf16.xpose.msra.mxu0 0
        %680 = vmatprep.subr.bf16.mxu0 0
        %681 = vmatpush1.bf16.xpose.msra.mxu0 0
        %682 = vmatprep.subr.bf16.mxu0 0
        %683 = vmatpush1.bf16.xpose.msra.mxu0 0
        %684 = vmatprep.mubr.bf16.mxu0 0
        %685 = vmatmul.mubr.bf16.gmra.mrb[0].mxu0 %v647
        %v686 = vpop.f32.mrb[0].mxu0
        %v687 = vadd.f32 0.0, %v686
        %v688 = vpop.f32.mrb[0].mxu0
        %v689 = vpop.f32.mrb[0].mxu0
        %v690 = vpop.f32.mrb[0].mxu0
        %691 = vdwg.mxu0
        %692 = vrot.lane.b32.xlu0 %v592, 96
        %v693 = vpop.permute.xlu0 %692
        %v695 = vsel %vm597, %v592, 0
        %v698 = vsel %vm597, %v693, 0
        %700 = vmatprep.subr.bf16.mxu0 0
        %701 = vmatpush1.bf16.xpose.msra.mxu0 %v698
        %702 = vmatprep.subr.bf16.mxu0 0
        %703 = vmatpush1.bf16.xpose.msra.mxu0 0
        %704 = vmatprep.subr.bf16.mxu0 0
        %705 = vmatpush1.bf16.xpose.msra.mxu0 0
        %706 = vmatprep.subr.bf16.mxu0 0
        %707 = vmatpush1.bf16.xpose.msra.mxu0 0
        %708 = vmatprep.subr.bf16.mxu0 0
        %709 = vmatpush1.bf16.xpose.msra.mxu0 0
        %710 = vmatprep.subr.bf16.mxu0 0
        %711 = vmatpush1.bf16.xpose.msra.mxu0 0
        %712 = vmatprep.subr.bf16.mxu0 0
        %713 = vmatpush1.bf16.xpose.msra.mxu0 0
        %714 = vmatprep.subr.bf16.mxu0 0
        %715 = vmatpush1.bf16.xpose.msra.mxu0 0
        %716 = vmatprep.subr.bf16.mxu0 0
        %717 = vmatpush1.bf16.xpose.msra.mxu0 0
        %718 = vmatprep.subr.bf16.mxu0 0
        %719 = vmatpush1.bf16.xpose.msra.mxu0 0
        %720 = vmatprep.subr.bf16.mxu0 0
        %721 = vmatpush1.bf16.xpose.msra.mxu0 0
        %722 = vmatprep.subr.bf16.mxu0 0
        %723 = vmatpush1.bf16.xpose.msra.mxu0 0
        %724 = vmatprep.subr.bf16.mxu0 0
        %725 = vmatpush1.bf16.xpose.msra.mxu0 0
        %726 = vmatprep.subr.bf16.mxu0 0
        %727 = vmatpush1.bf16.xpose.msra.mxu0 0
        %728 = vmatprep.subr.bf16.mxu0 0
        %729 = vmatpush1.bf16.xpose.msra.mxu0 0
        %730 = vmatprep.subr.bf16.mxu0 0
        %731 = vmatpush1.bf16.xpose.msra.mxu0 0
        %732 = vmatprep.mubr.bf16.mxu0 0
        %733 = vmatmul.mubr.bf16.gmra.mrb[0].mxu0 %v695
        %v734 = vpop.f32.mrb[0].mxu0
        %v735 = vadd.f32 0.0, %v734
        %v736 = vpop.f32.mrb[0].mxu0
        %v737 = vpop.f32.mrb[0].mxu0
        %v738 = vpop.f32.mrb[0].mxu0
        %739 = vdwg.mxu0
        %740 = vrot.lane.b32.xlu0 %v594, 96
        %v741 = vpop.permute.xlu0 %740
        %v743 = vsel %vm597, %v594, 0
        %v746 = vsel %vm597, %v741, 0
        %748 = vmatprep.subr.bf16.mxu0 0
        %749 = vmatpush1.bf16.xpose.msra.mxu0 %v746
        %750 = vmatprep.subr.bf16.mxu0 0
        %751 = vmatpush1.bf16.xpose.msra.mxu0 0
        %752 = vmatprep.subr.bf16.mxu0 0
        %753 = vmatpush1.bf16.xpose.msra.mxu0 0
        %754 = vmatprep.subr.bf16.mxu0 0
        %755 = vmatpush1.bf16.xpose.msra.mxu0 0
        %756 = vmatprep.subr.bf16.mxu0 0
        %757 = vmatpush1.bf16.xpose.msra.mxu0 0
        %758 = vmatprep.subr.bf16.mxu0 0
        %759 = vmatpush1.bf16.xpose.msra.mxu0 0
        %760 = vmatprep.subr.bf16.mxu0 0
        %761 = vmatpush1.bf16.xpose.msra.mxu0 0
        %762 = vmatprep.subr.bf16.mxu0 0
        %763 = vmatpush1.bf16.xpose.msra.mxu0 0
        %764 = vmatprep.subr.bf16.mxu0 0
        %765 = vmatpush1.bf16.xpose.msra.mxu0 0
        %766 = vmatprep.subr.bf16.mxu0 0
        %767 = vmatpush1.bf16.xpose.msra.mxu0 0
        %768 = vmatprep.subr.bf16.mxu0 0
        %769 = vmatpush1.bf16.xpose.msra.mxu0 0
        %770 = vmatprep.subr.bf16.mxu0 0
        %771 = vmatpush1.bf16.xpose.msra.mxu0 0
        %772 = vmatprep.subr.bf16.mxu0 0
        %773 = vmatpush1.bf16.xpose.msra.mxu0 0
        %774 = vmatprep.subr.bf16.mxu0 0
        %775 = vmatpush1.bf16.xpose.msra.mxu0 0
        %776 = vmatprep.subr.bf16.mxu0 0
        %777 = vmatpush1.bf16.xpose.msra.mxu0 0
        %778 = vmatprep.subr.bf16.mxu0 0
        %779 = vmatpush1.bf16.xpose.msra.mxu0 0
        %780 = vmatprep.mubr.bf16.mxu0 0
        %781 = vmatmul.mubr.bf16.gmra.mrb[0].mxu0 %v743
        %v782 = vpop.f32.mrb[0].mxu0
        %v783 = vadd.f32 0.0, %v782
        %v784 = vpop.f32.mrb[0].mxu0
        %v785 = vpop.f32.mrb[0].mxu0
        %v786 = vpop.f32.mrb[0].mxu0
        %787 = vdwg.mxu0
        %v788 = vsel %vm597, %v639, -inf
        %789 = vmax.xlane.f32.xlu0 %v788
        %v790 = vpop.xlane.xlu0 %789
        %v791 = vsel %vm597, %v687, -inf
        %792 = vmax.xlane.f32.xlu0 %v791
        %v793 = vpop.xlane.xlu0 %792
        %v794 = vsel %vm597, %v735, -inf
        %795 = vmax.xlane.f32.xlu0 %v794
        %v796 = vpop.xlane.xlu0 %795
        %v797 = vsel %vm597, %v783, -inf
        %798 = vmax.xlane.f32.xlu0 %v797
        %v799 = vpop.xlane.xlu0 %798
        %v800 = vsub.f32 %v639, %v790
        %v801 = vsub.f32 %v687, %v793
        %v802 = vsub.f32 %v735, %v796
        %v803 = vsub.f32 %v783, %v799
        %v804 = vmul.f32 %v800, 1.442695
        %v805 = vpow.pop %v804
        %v806 = vmul.f32 %v801, 1.442695
        %v807 = vpow.pop %v806
        %v808 = vmul.f32 %v802, 1.442695
        %v809 = vpow.pop %v808
        %v810 = vmul.f32 %v803, 1.442695
        %v811 = vpow.pop %v810
        %v812 = vsel %vm597, %v805, 0.0
        %813 = vadd.xlane.f32.xlu0 %v812
        %v814 = vpop.xlane.xlu0 %813
        %v815 = vsel %vm597, %v807, 0.0
        %816 = vadd.xlane.f32.xlu0 %v815
        %v817 = vpop.xlane.xlu0 %816
        %v818 = vsel %vm597, %v809, 0.0
        %819 = vadd.xlane.f32.xlu0 %v818
        %v820 = vpop.xlane.xlu0 %819
        %v821 = vsel %vm597, %v811, 0.0
        %822 = vadd.xlane.f32.xlu0 %v821
        %v823 = vpop.xlane.xlu0 %822
        %v824 = vrcp.pop %v814
        %v825 = vrcp.pop %v817
        %v826 = vrcp.pop %v820
        %v827 = vrcp.pop %v823
        %v828 = vmul.f32 %v805, %v824
        %v829 = vmul.f32 %v807, %v825
        %v830 = vmul.f32 %v809, %v826
        %v831 = vmul.f32 %v811, %v827
        %v832 = vpack.c.bf16 %v828, %v828
        %v833 = vpack.c.bf16 %v829, %v829
        %v834 = vpack.c.bf16 %v830, %v830
        %v835 = vpack.c.bf16 %v831, %v831
        %836 = vrot.lane.b32.xlu0 %v587, 64
        %v837 = vpop.permute.xlu0 %836
        %v839 = vsel %vm597, %v832, 0
        %vm841 = vcmask 1043456
        %v843 = vsel %vm841, %v837, 0
        %845 = vmatprep.subr.bf16.mxu0 0
        %846 = vmatpush1.bf16.msra.mxu0 %v843
        %847 = vmatprep.subr.bf16.mxu0 0
        %848 = vmatpush1.bf16.msra.mxu0 0
        %849 = vmatprep.subr.bf16.mxu0 0
        %850 = vmatpush1.bf16.msra.mxu0 0
        %851 = vmatprep.subr.bf16.mxu0 0
        %852 = vmatpush1.bf16.msra.mxu0 0
        %853 = vmatprep.subr.bf16.mxu0 0
        %854 = vmatpush1.bf16.msra.mxu0 0
        %855 = vmatprep.subr.bf16.mxu0 0
        %856 = vmatpush1.bf16.msra.mxu0 0
        %857 = vmatprep.subr.bf16.mxu0 0
        %858 = vmatpush1.bf16.msra.mxu0 0
        %859 = vmatprep.subr.bf16.mxu0 0
        %860 = vmatpush1.bf16.msra.mxu0 0
        %861 = vmatprep.subr.bf16.mxu0 0
        %862 = vmatpush1.bf16.msra.mxu0 0
        %863 = vmatprep.subr.bf16.mxu0 0
        %864 = vmatpush1.bf16.msra.mxu0 0
        %865 = vmatprep.subr.bf16.mxu0 0
        %866 = vmatpush1.bf16.msra.mxu0 0
        %867 = vmatprep.subr.bf16.mxu0 0
        %868 = vmatpush1.bf16.msra.mxu0 0
        %869 = vmatprep.subr.bf16.mxu0 0
        %870 = vmatpush1.bf16.msra.mxu0 0
        %871 = vmatprep.subr.bf16.mxu0 0
        %872 = vmatpush1.bf16.msra.mxu0 0
        %873 = vmatprep.subr.bf16.mxu0 0
        %874 = vmatpush1.bf16.msra.mxu0 0
        %875 = vmatprep.subr.bf16.mxu0 0
        %876 = vmatpush1.bf16.msra.mxu0 0
        %877 = vmatprep.mubr.bf16.mxu0 0
        %878 = vmatmul.mubr.bf16.gmra.mrb[0].mxu0 %v839
        %v879 = vpop.f32.mrb[0].mxu0
        %v880 = vadd.f32 0.0, %v879
        %v881 = vpop.f32.mrb[0].mxu0
        %v882 = vpop.f32.mrb[0].mxu0
        %v883 = vpop.f32.mrb[0].mxu0
        %884 = vdwg.mxu0
        %885 = vrot.lane.b32.xlu0 %v590, 64
        %v886 = vpop.permute.xlu0 %885
        %v888 = vsel %vm597, %v833, 0
        %v891 = vsel %vm841, %v886, 0
        %893 = vmatprep.subr.bf16.mxu0 0
        %894 = vmatpush1.bf16.msra.mxu0 %v891
        %895 = vmatprep.subr.bf16.mxu0 0
        %896 = vmatpush1.bf16.msra.mxu0 0
        %897 = vmatprep.subr.bf16.mxu0 0
        %898 = vmatpush1.bf16.msra.mxu0 0
        %899 = vmatprep.subr.bf16.mxu0 0
        %900 = vmatpush1.bf16.msra.mxu0 0
        %901 = vmatprep.subr.bf16.mxu0 0
        %902 = vmatpush1.bf16.msra.mxu0 0
        %903 = vmatprep.subr.bf16.mxu0 0
        %904 = vmatpush1.bf16.msra.mxu0 0
        %905 = vmatprep.subr.bf16.mxu0 0
        %906 = vmatpush1.bf16.msra.mxu0 0
        %907 = vmatprep.subr.bf16.mxu0 0
        %908 = vmatpush1.bf16.msra.mxu0 0
        %909 = vmatprep.subr.bf16.mxu0 0
        %910 = vmatpush1.bf16.msra.mxu0 0
        %911 = vmatprep.subr.bf16.mxu0 0
        %912 = vmatpush1.bf16.msra.mxu0 0
        %913 = vmatprep.subr.bf16.mxu0 0
        %914 = vmatpush1.bf16.msra.mxu0 0
        %915 = vmatprep.subr.bf16.mxu0 0
        %916 = vmatpush1.bf16.msra.mxu0 0
        %917 = vmatprep.subr.bf16.mxu0 0
        %918 = vmatpush1.bf16.msra.mxu0 0
        %919 = vmatprep.subr.bf16.mxu0 0
        %920 = vmatpush1.bf16.msra.mxu0 0
        %921 = vmatprep.subr.bf16.mxu0 0
        %922 = vmatpush1.bf16.msra.mxu0 0
        %923 = vmatprep.subr.bf16.mxu0 0
        %924 = vmatpush1.bf16.msra.mxu0 0
        %925 = vmatprep.mubr.bf16.mxu0 0
        %926 = vmatmul.mubr.bf16.gmra.mrb[0].mxu0 %v888
        %v927 = vpop.f32.mrb[0].mxu0
        %v928 = vadd.f32 0.0, %v927
        %v929 = vpop.f32.mrb[0].mxu0
        %v930 = vpop.f32.mrb[0].mxu0
        %v931 = vpop.f32.mrb[0].mxu0
        %932 = vdwg.mxu0
        %933 = vrot.lane.b32.xlu0 %v592, 64
        %v934 = vpop.permute.xlu0 %933
        %v936 = vsel %vm597, %v834, 0
        %v939 = vsel %vm841, %v934, 0
        %941 = vmatprep.subr.bf16.mxu0 0
        %942 = vmatpush1.bf16.msra.mxu0 %v939
        %943 = vmatprep.subr.bf16.mxu0 0
        %944 = vmatpush1.bf16.msra.mxu0 0
        %945 = vmatprep.subr.bf16.mxu0 0
        %946 = vmatpush1.bf16.msra.mxu0 0
        %947 = vmatprep.subr.bf16.mxu0 0
        %948 = vmatpush1.bf16.msra.mxu0 0
        %949 = vmatprep.subr.bf16.mxu0 0
        %950 = vmatpush1.bf16.msra.mxu0 0
        %951 = vmatprep.subr.bf16.mxu0 0
        %952 = vmatpush1.bf16.msra.mxu0 0
        %953 = vmatprep.subr.bf16.mxu0 0
        %954 = vmatpush1.bf16.msra.mxu0 0
        %955 = vmatprep.subr.bf16.mxu0 0
        %956 = vmatpush1.bf16.msra.mxu0 0
        %957 = vmatprep.subr.bf16.mxu0 0
        %958 = vmatpush1.bf16.msra.mxu0 0
        %959 = vmatprep.subr.bf16.mxu0 0
        %960 = vmatpush1.bf16.msra.mxu0 0
        %961 = vmatprep.subr.bf16.mxu0 0
        %962 = vmatpush1.bf16.msra.mxu0 0
        %963 = vmatprep.subr.bf16.mxu0 0
        %964 = vmatpush1.bf16.msra.mxu0 0
        %965 = vmatprep.subr.bf16.mxu0 0
        %966 = vmatpush1.bf16.msra.mxu0 0
        %967 = vmatprep.subr.bf16.mxu0 0
        %968 = vmatpush1.bf16.msra.mxu0 0
        %969 = vmatprep.subr.bf16.mxu0 0
        %970 = vmatpush1.bf16.msra.mxu0 0
        %971 = vmatprep.subr.bf16.mxu0 0
        %972 = vmatpush1.bf16.msra.mxu0 0
        %973 = vmatprep.mubr.bf16.mxu0 0
        %974 = vmatmul.mubr.bf16.gmra.mrb[0].mxu0 %v936
        %v975 = vpop.f32.mrb[0].mxu0
        %v976 = vadd.f32 0.0, %v975
        %v977 = vpop.f32.mrb[0].mxu0
        %v978 = vpop.f32.mrb[0].mxu0
        %v979 = vpop.f32.mrb[0].mxu0
        %980 = vdwg.mxu0
        %981 = vrot.lane.b32.xlu0 %v594, 64
        %v982 = vpop.permute.xlu0 %981
        %v984 = vsel %vm597, %v835, 0
        %v987 = vsel %vm841, %v982, 0
        %989 = vmatprep.subr.bf16.mxu0 0
        %990 = vmatpush1.bf16.msra.mxu0 %v987
        %991 = vmatprep.subr.bf16.mxu0 0
        %992 = vmatpush1.bf16.msra.mxu0 0
        %993 = vmatprep.subr.bf16.mxu0 0
        %994 = vmatpush1.bf16.msra.mxu0 0
        %995 = vmatprep.subr.bf16.mxu0 0
        %996 = vmatpush1.bf16.msra.mxu0 0
        %997 = vmatprep.subr.bf16.mxu0 0
        %998 = vmatpush1.bf16.msra.mxu0 0
        %999 = vmatprep.subr.bf16.mxu0 0
        %1000 = vmatpush1.bf16.msra.mxu0 0
        %1001 = vmatprep.subr.bf16.mxu0 0
        %1002 = vmatpush1.bf16.msra.mxu0 0
        %1003 = vmatprep.subr.bf16.mxu0 0
        %1004 = vmatpush1.bf16.msra.mxu0 0
        %1005 = vmatprep.subr.bf16.mxu0 0
        %1006 = vmatpush1.bf16.msra.mxu0 0
        %1007 = vmatprep.subr.bf16.mxu0 0
        %1008 = vmatpush1.bf16.msra.mxu0 0
        %1009 = vmatprep.subr.bf16.mxu0 0
        %1010 = vmatpush1.bf16.msra.mxu0 0
        %1011 = vmatprep.subr.bf16.mxu0 0
        %1012 = vmatpush1.bf16.msra.mxu0 0
        %1013 = vmatprep.subr.bf16.mxu0 0
        %1014 = vmatpush1.bf16.msra.mxu0 0
        %1015 = vmatprep.subr.bf16.mxu0 0
        %1016 = vmatpush1.bf16.msra.mxu0 0
        %1017 = vmatprep.subr.bf16.mxu0 0
        %1018 = vmatpush1.bf16.msra.mxu0 0
        %1019 = vmatprep.subr.bf16.mxu0 0
        %1020 = vmatpush1.bf16.msra.mxu0 0
        %1021 = vmatprep.mubr.bf16.mxu0 0
        %1022 = vmatmul.mubr.bf16.gmra.mrb[0].mxu0 %v984
        %v1023 = vpop.f32.mrb[0].mxu0
        %v1024 = vadd.f32 0.0, %v1023
        %v1025 = vpop.f32.mrb[0].mxu0
        %v1026 = vpop.f32.mrb[0].mxu0
        %v1027 = vpop.f32.mrb[0].mxu0
        %1028 = vdwg.mxu0
        %1030 = vrot.lane.b32.xlu0 %v928, 8
        %v1031 = vpop.permute.xlu0 %1030
        %1034 = vrot.lane.b32.xlu0 %v976, 16
        %v1035 = vpop.permute.xlu0 %1034
        %1038 = vrot.lane.b32.xlu0 %v1024, 24
        %v1039 = vpop.permute.xlu0 %1038
        %v1041 = vsel %vm597, %v880, %v1031
        %vm1042 = vcmask 130048
        %v1043 = vsel %vm1042, %v1041, %v1035
        %vm1044 = vcmask 195584
        %v1045 = vsel %vm1044, %v1043, %v1039
        %v1046 = vpack.c.bf16 %v1045, %v1045
        %v1047 = vld [vmem:[%s3] sm:$0xf]
        %v1048 = vld [vmem:[%s3 + $0x4] sm:$0xf]
        %v1049 = vld [vmem:[%s3 + $0x8] sm:$0xf]
        %v1050 = vld [vmem:[%s3 + $0xc] sm:$0xf]
        %v1051 = vld [vmem:[%s4] sm:$0x1]
        %v1053 = vlaneseq
        %v1054 = vshrl.u32 %v1053, 7
        %v1055 = vsub.s32 0, %v1054
        %v1056 = vrot.slane %v1051, %v1055
        %v1062 = vunpack.c.l.b16 %v1047
        %v1063 = vunpack.c.l.b16 %v1048
        %v1064 = vunpack.c.l.b16 %v1049
        %v1065 = vunpack.c.l.b16 %v1050
        %v1066 = vpack.c.b16 %v1063, %v1062
        %v1067 = vpack.c.b16 %v1065, %v1064
        %v1071 = vsel %vm489, %v1046, 0
        %1073 = vmatprep.subr.bf16.mxu0 0
        %1074 = vmatpush1.bf16.msra.mxu0 %v1066
        %1075 = vmatprep.subr.bf16.mxu0 0
        %1076 = vmatpush1.bf16.msra.mxu0 %v1067
        %1077 = vmatprep.subr.bf16.mxu0 0
        %1078 = vmatpush1.bf16.msra.mxu0 0
        %1079 = vmatprep.subr.bf16.mxu0 0
        %1080 = vmatpush1.bf16.msra.mxu0 0
        %1081 = vmatprep.subr.bf16.mxu0 0
        %1082 = vmatpush1.bf16.msra.mxu0 0
        %1083 = vmatprep.subr.bf16.mxu0 0
        %1084 = vmatpush1.bf16.msra.mxu0 0
        %1085 = vmatprep.subr.bf16.mxu0 0
        %1086 = vmatpush1.bf16.msra.mxu0 0
        %1087 = vmatprep.subr.bf16.mxu0 0
        %1088 = vmatpush1.bf16.msra.mxu0 0
        %1089 = vmatprep.subr.bf16.mxu0 0
        %1090 = vmatpush1.bf16.msra.mxu0 0
        %1091 = vmatprep.subr.bf16.mxu0 0
        %1092 = vmatpush1.bf16.msra.mxu0 0
        %1093 = vmatprep.subr.bf16.mxu0 0
        %1094 = vmatpush1.bf16.msra.mxu0 0
        %1095 = vmatprep.subr.bf16.mxu0 0
        %1096 = vmatpush1.bf16.msra.mxu0 0
        %1097 = vmatprep.subr.bf16.mxu0 0
        %1098 = vmatpush1.bf16.msra.mxu0 0
        %1099 = vmatprep.subr.bf16.mxu0 0
        %1100 = vmatpush1.bf16.msra.mxu0 0
        %1101 = vmatprep.subr.bf16.mxu0 0
        %1102 = vmatpush1.bf16.msra.mxu0 0
        %1103 = vmatprep.subr.bf16.mxu0 0
        %1104 = vmatpush1.bf16.msra.mxu0 0
        %1105 = vmatprep.mubr.bf16.mxu0 0
        %1106 = vmatmul.mubr.bf16.gmra.mrb[0].mxu0 %v1071
        %v1107 = vpop.f32.mrb[0].mxu0
        %v1108 = vadd.f32 %v1056, %v1107
        %v1109 = vpop.f32.mrb[0].mxu0
        %v1110 = vpop.f32.mrb[0].mxu0
        %v1111 = vpop.f32.mrb[0].mxu0
        %1112 = vdwg.mxu0
        %v1113 = vld [vmem:[%s486] sm:$0xff]
        %v1114 = vadd.f32 %v1113, %v1108
        %v1115 = vsel %vm489, %v1114, 0.0
        %1116 = vadd.xlane.f32.xlu0 %v1115
        %v1117 = vpop.xlane.xlu0 %1116
        %v1118 = vmul.f32 %v1117, %v493
        %v1119 = vsub.f32 %v1114, %v1118
        %v1120 = vmul.f32 %v1119, %v1119
        %v1121 = vsel %vm489, %v1120, 0.0
        %1122 = vadd.xlane.f32.xlu0 %v1121
        %v1123 = vpop.xlane.xlu0 %1122
        %v1124 = vmul.f32 %v1123, %v493
        %v1125 = vadd.f32 %v1124, 1e-05
        %v1126 = vrsqrt.pop %v1125
        %v1127 = vmul.f32 %v1119, %v1126
        %v1128 = vld [vmem:[#allocation7] sm:$0x1]
        %v1130 = vlaneseq
        %v1131 = vshrl.u32 %v1130, 7
        %v1132 = vsub.s32 0, %v1131
        %v1133 = vrot.slane %v1128, %v1132
        %v1135 = vmul.f32 %v1127, %v1133
        %v1136 = vld [vmem:[#allocation8] sm:$0x1]
        %v1138 = vlaneseq
        %v1139 = vshrl.u32 %v1138, 7
        %v1140 = vsub.s32 0, %v1139
        %v1141 = vrot.slane %v1136, %v1140
        %v1143 = vadd.f32 %v1135, %v1141
        %v1144 = vpack.c.bf16 %v1143, %v1143
        %v1145 = vld [vmem:[%s9] sm:$0xf]
        %v1146 = vld [vmem:[%s9 + $0x4] sm:$0xf]
        %v1147 = vld [vmem:[%s9 + $0x8] sm:$0xf]
        %v1148 = vld [vmem:[%s9 + $0xc] sm:$0xf]
        %v1149 = vld [vmem:[%s10] sm:$0x1]
        %v1151 = vlaneseq
        %v1152 = vshrl.u32 %v1151, 7
        %v1153 = vsub.s32 0, %v1152
        %v1154 = vrot.slane %v1149, %v1153
        %v1160 = vunpack.c.l.b16 %v1145
        %v1161 = vunpack.c.l.b16 %v1146
        %v1162 = vunpack.c.l.b16 %v1147
        %v1163 = vunpack.c.l.b16 %v1148
        %v1164 = vpack.c.b16 %v1161, %v1160
        %v1165 = vpack.c.b16 %v1163, %v1162
        %v1169 = vsel %vm489, %v1144, 0
        %1171 = vmatprep.subr.bf16.mxu0 0
        %1172 = vmatpush1.bf16.msra.mxu0 %v1164
        %1173 = vmatprep.subr.bf16.mxu0 0
        %1174 = vmatpush1.bf16.msra.mxu0 %v1165
        %1175 = vmatprep.subr.bf16.mxu0 0
        %1176 = vmatpush1.bf16.msra.mxu0 0
        %1177 = vmatprep.subr.bf16.mxu0 0
        %1178 = vmatpush1.bf16.msra.mxu0 0
        %1179 = vmatprep.subr.bf16.mxu0 0
        %1180 = vmatpush1.bf16.msra.mxu0 0
        %1181 = vmatprep.subr.bf16.mxu0 0
        %1182 = vmatpush1.bf16.msra.mxu0 0
        %1183 = vmatprep.subr.bf16.mxu0 0
        %1184 = vmatpush1.bf16.msra.mxu0 0
        %1185 = vmatprep.subr.bf16.mxu0 0
        %1186 = vmatpush1.bf16.msra.mxu0 0
        %1187 = vmatprep.subr.bf16.mxu0 0
        %1188 = vmatpush1.bf16.msra.mxu0 0
        %1189 = vmatprep.subr.bf16.mxu0 0
        %1190 = vmatpush1.bf16.msra.mxu0 0
        %1191 = vmatprep.subr.bf16.mxu0 0
        %1192 = vmatpush1.bf16.msra.mxu0 0
        %1193 = vmatprep.subr.bf16.mxu0 0
        %1194 = vmatpush1.bf16.msra.mxu0 0
        %1195 = vmatprep.subr.bf16.mxu0 0
        %1196 = vmatpush1.bf16.msra.mxu0 0
        %1197 = vmatprep.subr.bf16.mxu0 0
        %1198 = vmatpush1.bf16.msra.mxu0 0
        %1199 = vmatprep.subr.bf16.mxu0 0
        %1200 = vmatpush1.bf16.msra.mxu0 0
        %1201 = vmatprep.subr.bf16.mxu0 0
        %1202 = vmatpush1.bf16.msra.mxu0 0
        %1203 = vmatprep.mubr.bf16.mxu0 0
        %1204 = vmatmul.mubr.bf16.gmra.mrb[0].mxu0 %v1169
        %v1205 = vpop.f32.mrb[0].mxu0
        %v1206 = vadd.f32 %v1154, %v1205
        %v1207 = vpop.f32.mrb[0].mxu0
        %v1208 = vpop.f32.mrb[0].mxu0
        %v1209 = vpop.f32.mrb[0].mxu0
        %1210 = vdwg.mxu0
        %v1211 = vmax.f32 %v1206, 0.0
        %v1212 = vpack.c.bf16 %v1211, %v1211
        %v1213 = vld [vmem:[%s11] sm:$0xf]
        %v1214 = vld [vmem:[%s11 + $0x4] sm:$0xf]
        %v1215 = vld [vmem:[%s11 + $0x8] sm:$0xf]
        %v1216 = vld [vmem:[%s11 + $0xc] sm:$0xf]
        %v1217 = vld [vmem:[%s11 + $0x10] sm:$0xf]
        %v1218 = vld [vmem:[%s11 + $0x14] sm:$0xf]
        %v1219 = vld [vmem:[%s11 + $0x18] sm:$0xf]
        %v1220 = vld [vmem:[%s11 + $0x1c] sm:$0xf]
        %v1221 = vld [vmem:[%s12] sm:$0x1]
        %v1223 = vlaneseq
        %v1224 = vshrl.u32 %v1223, 7
        %v1225 = vsub.s32 0, %v1224
        %v1226 = vrot.slane %v1221, %v1225
        %v1236 = vunpack.c.l.b16 %v1213
        %v1237 = vunpack.c.l.b16 %v1214
        %v1238 = vunpack.c.l.b16 %v1215
        %v1239 = vunpack.c.l.b16 %v1216
        %v1240 = vunpack.c.l.b16 %v1217
        %v1241 = vunpack.c.l.b16 %v1218
        %v1242 = vunpack.c.l.b16 %v1219
        %v1243 = vunpack.c.l.b16 %v1220
        %v1244 = vpack.c.b16 %v1237, %v1236
        %v1245 = vpack.c.b16 %v1239, %v1238
        %v1246 = vpack.c.b16 %v1241, %v1240
        %v1247 = vpack.c.b16 %v1243, %v1242
        %vm1252 = vcmask 523264
        %v1254 = vsel %vm1252, %v1212, 0
        %1256 = vmatprep.subr.bf16.mxu0 0
        %1257 = vmatpush1.bf16.msra.mxu0 %v1244
        %1258 = vmatprep.subr.bf16.mxu0 0
        %1259 = vmatpush1.bf16.msra.mxu0 %v1245
        %1260 = vmatprep.subr.bf16.mxu0 0
        %1261 = vmatpush1.bf16.msra.mxu0 %v1246
        %1262 = vmatprep.subr.bf16.mxu0 0
        %1263 = vmatpush1.bf16.msra.mxu0 %v1247
        %1264 = vmatprep.subr.bf16.mxu0 0
        %1265 = vmatpush1.bf16.msra.mxu0 0
        %1266 = vmatprep.subr.bf16.mxu0 0
        %1267 = vmatpush1.bf16.msra.mxu0 0
        %1268 = vmatprep.subr.bf16.mxu0 0
        %1269 = vmatpush1.bf16.msra.mxu0 0
        %1270 = vmatprep.subr.bf16.mxu0 0
        %1271 = vmatpush1.bf16.msra.mxu0 0
        %1272 = vmatprep.subr.bf16.mxu0 0
        %1273 = vmatpush1.bf16.msra.mxu0 0
        %1274 = vmatprep.subr.bf16.mxu0 0
        %1275 = vmatpush1.bf16.msra.mxu0 0
        %1276 = vmatprep.subr.bf16.mxu0 0
        %1277 = vmatpush1.bf16.msra.mxu0 0
        %1278 = vmatprep.subr.bf16.mxu0 0
        %1279 = vmatpush1.bf16.msra.mxu0 0
        %1280 = vmatprep.subr.bf16.mxu0 0
        %1281 = vmatpush1.bf16.msra.mxu0 0
        %1282 = vmatprep.subr.bf16.mxu0 0
        %1283 = vmatpush1.bf16.msra.mxu0 0
        %1284 = vmatprep.subr.bf16.mxu0 0
        %1285 = vmatpush1.bf16.msra.mxu0 0
        %1286 = vmatprep.subr.bf16.mxu0 0
        %1287 = vmatpush1.bf16.msra.mxu0 0
        %1288 = vmatprep.mubr.bf16.mxu0 0
        %1289 = vmatmul.mubr.bf16.gmra.mrb[0].mxu0 %v1254
        %v1290 = vpop.f32.mrb[0].mxu0
        %v1291 = vadd.f32 %v1226, %v1290
        %v1292 = vpop.f32.mrb[0].mxu0
        %v1293 = vpop.f32.mrb[0].mxu0
        %v1294 = vpop.f32.mrb[0].mxu0
        %1295 = vdwg.mxu0
        %v1296 = vadd.f32 %v1114, %v1291
        %1297 = vst.msk [vmem:[%s482] sm:$0xff] %vm489, %v1296
        %s1298 = sand.u32 %s316, 1
        %s1299 = scalar_lea.sflag [#allocation4], %s1298
        %s1300 = sand.u32 %s316, 1
        %s1301 = smul.addr %s1300, 8
        %s1302 = scalar_lea.vmem [#allocation10], %s1301
        // Predicated region
        $region89: #{tpu_custom_call.1} parent=71 // pred_check
          %p1303 = pneg %p326
        $region90: #{tpu_custom_call.1} parent=71 // pred_check_branch
          %1305 = sbr.rel (%p1303) target = $region92
        $region91: #{tpu_custom_call.1} parent=71 // pred_region
          %s1307 = ssub.s32 128, 128
          %1308 = vsyncadd %s1299, %s1307
          %s1309 = smul.addr %s30, 128
          %s1310 = scalar_lea.hbm %s13, %s1309
          %s1312 = sshll.u32 %s1302, 4
          %s1313 = int_to_ptr.vmem [resolvable:$true] %s1312
          %1315 = dma.vmem_to_hbm [thread:$0]  %s1313, 128, %s1310, %s1299
        $region92: #{tpu_custom_call.1} parent=71 // pred_fallthru
          _
      $region72: #{tpu_custom_call.1} parent=5 // pred_fallthru
        _
      %p1316 = scmp.le.s32.totalorder 2, %s25
      // Predicated region
      $region93: #{tpu_custom_call.1} parent=5 // pred_check
        %p1317 = pneg %p1316
      $region94: #{tpu_custom_call.1} parent=5 // pred_check_branch
        %1319 = sbr.rel (%p1317) target = $region96
      $region95: #{tpu_custom_call.1} parent=5 // pred_region
        %s1320 = ssub.s32 %s25, 2
        // Predicated region
        $region97: #{tpu_custom_call.1} parent=95 // pred_check
          %p1321 = pneg %p332
        $region98: #{tpu_custom_call.1} parent=95 // pred_check_branch
          %1323 = sbr.rel (%p1321) target = $region100
        $region99: #{tpu_custom_call.1} parent=95 // pred_region
          %s1324 = sand.u32 %s317, 1
          %s1325 = scalar_lea.sflag [#allocation4], %s1324
          %s1326 = sand.u32 %s317, 1
          %s1327 = smul.addr %s1326, 8
          %s1328 = scalar_lea.vmem [#allocation10], %s1327
          %1329 = dma.done %s1325, 128
        $region100: #{tpu_custom_call.1} parent=95 // pred_fallthru
          _
      $region96: #{tpu_custom_call.1} parent=5 // pred_fallthru
        _
    $region6: #{tpu_custom_call.1} parent=1 // loop_footer
      %s29 = sadd.s32 1, %s25
    $region7: #{tpu_custom_call.1} parent=1 // loop_footer_branch
      %24 = sbr.rel target = $region3
    $region8: #{tpu_custom_call.1} parent=1 // loop_exit
      _
    %1330 = vsyncpa [#allocation3], 1
    %s1331 = scalar_lea.sflag [#allocation3], 1
    %1332 = vsyncpa %s1331, 1
    %1333 = vsyncpa [#allocation6], 1
    %1334 = vsyncpa [#allocation9], 1
    %1335 = vsyncpa [#allocation4], 1
    %s1336 = scalar_lea.sflag [#allocation4], 1
    %1337 = vsyncpa %s1336, 1

// kernel: tpu_custom_call.1
$region0: #{tpu_custom_call.1}
  #allocation0 [shape = 'u32[]', space=smem, size = 0x4, offset = 0x4, fixed_abs, tag = 'smem constant byte address 0x4 - core index']
  #allocation1 [shape = 'u32[144,128]{1,0:T(1,128)}', space=vmem, size = 0x12000, scoped, tag = 'internal scratch']
  %s0 = inlined_call_operand.vmem [shape: f32[16,32], index: 0, kind: input, shape index: {}]
  %s1 = inlined_call_operand.vmem [shape: bf16[32,96], index: 1, kind: input, shape index: {}]
  %s2 = inlined_call_operand.vmem [shape: f32[1,96], index: 2, kind: input, shape index: {}]
  %s3 = inlined_call_operand.vmem [shape: bf16[32,32], index: 3, kind: input, shape index: {}]
  %s4 = inlined_call_operand.vmem [shape: f32[1,32], index: 4, kind: input, shape index: {}]
  %s5 = inlined_call_operand.hbm [shape: f32[1,32], index: 5, kind: input, shape index: {}]
  %s6 = inlined_call_operand.hbm [shape: f32[1,32], index: 6, kind: input, shape index: {}]
  %s7 = inlined_call_operand.hbm [shape: f32[1,32], index: 7, kind: input, shape index: {}]
  %s8 = inlined_call_operand.hbm [shape: f32[1,32], index: 8, kind: input, shape index: {}]
  %s9 = inlined_call_operand.vmem [shape: bf16[32,64], index: 9, kind: input, shape index: {}]
  %s10 = inlined_call_operand.vmem [shape: f32[1,64], index: 10, kind: input, shape index: {}]
  %s11 = inlined_call_operand.vmem [shape: bf16[64,32], index: 11, kind: input, shape index: {}]
  %s12 = inlined_call_operand.vmem [shape: f32[1,32], index: 12, kind: input, shape index: {}]
  %s13 = inlined_call_operand.hbm [shape: f32[16,32], index: 13, kind: output, shape index: {}]
  %s14 = sld [smem:[#allocation0]]
  $region101: #{tpu_custom_call.1} parent=0
    _
  %s16 = ssub.s32 1, %s14
  %s17 = scalar_select 0, %s16, %s14
  $region1: #{tpu_custom_call.1} parent=0
    #allocation2 [shape = 'u8[512]{0}', space=vmem, size = 0x400, scoped, tag = 'input window, operand 5, single buffered']
    #allocation3 [shape = 's32[2]{0}', space=sflag, size = 0x8, scoped, tag = 'scoped memory for tpu_custom_call.1']
    #allocation4 [shape = 's32[2]{0}', space=sflag, size = 0x8, scoped, tag = 'scoped memory for tpu_custom_call.1']
    #allocation5 [shape = 'u8[512]{0}', space=vmem, size = 0x400, scoped, tag = 'input window, operand 6, single buffered']
    #allocation6 [shape = 's32[1]{0}', space=sflag, size = 0x4, scoped, tag = 'scoped memory for tpu_custom_call.1']
    #allocation7 [shape = 'u8[512]{0}', space=vmem, size = 0x400, scoped, tag = 'input window, operand 7, single buffered']
    #allocation8 [shape = 'u8[512]{0}', space=vmem, size = 0x400, scoped, tag = 'input window, operand 8, single buffered']
    #allocation9 [shape = 's32[1]{0}', space=sflag, size = 0x4, scoped, tag = 'scoped memory for tpu_custom_call.1']
    #allocation10 [shape = 'u8[8192]{0}', space=vmem, size = 0x2000, scoped, tag = 'output window, operand 0']
    %18 = vsyncpa [#allocation3], 0
    %19 = vsyncpa [#allocation6], 0
    %20 = vsyncpa [#allocation9], 0
    %21 = vsyncpa [#allocation4], 0
    %s22 = scalar_lea.sflag [#allocation4], 1
    %23 = vsyncpa %s22, 0
    loop: start=0, step=1, limit=4
    $region2: #{tpu_custom_call.1} parent=1 // loop_pre_header
      _
    $region3: #{tpu_custom_call.1} parent=1 // loop_header
      %s25 = sphi 0, %s29
      %p26 = scmp.ge.s32.totalorder %s25, 4
      %s35 = sphi 0, %s37
      %s38 = sphi 0, %s35
      %s39 = sphi 0, %s38
      %s55 = sphi 0, %s39
      %s59 = sphi 0, %s59
      %s61 = sphi 0, %s59
      %s62 = sphi 0, %s61
      %s76 = sphi 0, %s62
      %s80 = sphi 0, %s80
      %s82 = sphi 0, %s80
      %s83 = sphi 0, %s82
      %s97 = sphi 0, %s83
      %s101 = sphi 0, %s101
      %s103 = sphi 0, %s101
      %s104 = sphi 0, %s103
      %s118 = sphi 0, %s104
      %s122 = sphi 0, %s122
      %s124 = sphi 0, %s122
      %s125 = sphi 0, %s124
      %s139 = sphi 0, %s125
      %s143 = sphi 0, %s143
      %s145 = sphi 0, %s143
      %s146 = sphi 0, %s145
      %s160 = sphi 0, %s146
      %s164 = sphi 0, %s164
      %s166 = sphi 0, %s164
      %s167 = sphi 0, %s166
      %s181 = sphi 0, %s167
      %s185 = sphi 0, %s185
      %s187 = sphi 0, %s185
      %s188 = sphi 0, %s187
      %s202 = sphi 0, %s188
      %s206 = sphi 0, %s206
      %s208 = sphi 0, %s206
      %s209 = sphi 0, %s208
      %s223 = sphi 0, %s209
      %s227 = sphi 0, %s227
      %s229 = sphi 0, %s227
      %s230 = sphi 0, %s229
      %s244 = sphi 0, %s230
      %s248 = sphi 0, %s248
      %s250 = sphi 0, %s248
      %s251 = sphi 0, %s250
      %s265 = sphi 0, %s251
      %s269 = sphi 0, %s269
      %s271 = sphi 0, %s269
      %s272 = sphi 0, %s271
      %s286 = sphi 0, %s272
      %s290 = sphi 0, %s290
      %s292 = sphi 0, %s290
      %s293 = sphi 0, %s292
      %s307 = sphi 0, %s293
      %s313 = sphi 0, %s315
      %s316 = sphi 0, %s313
      %s317 = sphi 0, %s316
      %s333 = sphi 0, %s317
    $region4: #{tpu_custom_call.1} parent=1 // loop_header_branch
      %28 = sbr.rel (%p26) target = $region8
    $region5: #{tpu_custom_call.1} parent=1 // loop_body
      %s30 = ssub.s32 %s25, 1
      %s31 = ssub.s32 %s25, 2
      %s32 = sadd.s32 %s25, 1
      %s33 = ssub.s32 %s25, %s32
      %p34 = scmp.eq.s32.totalorder %s33, 0
      %s36 = sadd.s32 %s35, 1
      %s37 = scalar_select %p34, %s35, %s36
      %p40 = pneg %p34
      %p41 = scmp.eq.s32.totalorder %s25, 1
      %p42 = por %p40, %p41
      %p43 = scmp.ne.s32.totalorder %s35, %s38
      %p44 = scmp.eq.s32.totalorder %s25, 0
      %p45 = por %p43, %p44
      %p46 = scmp.ne.s32.totalorder %s35, %s38
      %p47 = scmp.eq.s32.totalorder %s30, 1
      %p48 = por %p46, %p47
      %p49 = scmp.ne.s32.totalorder %s38, %s39
      %p50 = scmp.eq.s32.totalorder %s30, 0
      %p51 = por %p49, %p50
      %p52 = scmp.ne.s32.totalorder %s38, %s39
      %p53 = scmp.eq.s32.totalorder %s31, 1
      %p54 = por %p52, %p53
      %p56 = scmp.ne.s32.totalorder %s39, %s55
      %p57 = scmp.eq.s32.totalorder %s31, 0
      %p58 = por %p56, %p57
      %s60 = sadd.s32 %s59, 1
      %p63 = scmp.eq.s32.totalorder %s25, 1
      %p64 = scmp.ne.s32.totalorder %s59, %s61
      %p65 = scmp.eq.s32.totalorder %s25, 0
      %p66 = por %p64, %p65
      %p67 = scmp.ne.s32.totalorder %s59, %s61
      %p68 = scmp.eq.s32.totalorder %s30, 1
      %p69 = por %p67, %p68
      %p70 = scmp.ne.s32.totalorder %s61, %s62
      %p71 = scmp.eq.s32.totalorder %s30, 0
      %p72 = por %p70, %p71
      %p73 = scmp.ne.s32.totalorder %s61, %s62
      %p74 = scmp.eq.s32.totalorder %s31, 1
      %p75 = por %p73, %p74
      %p77 = scmp.ne.s32.totalorder %s62, %s76
      %p78 = scmp.eq.s32.totalorder %s31, 0
      %p79 = por %p77, %p78
      %s81 = sadd.s32 %s80, 1
      %p84 = scmp.eq.s32.totalorder %s25, 1
      %p85 = scmp.ne.s32.totalorder %s80, %s82
      %p86 = scmp.eq.s32.totalorder %s25, 0
      %p87 = por %p85, %p86
      %p88 = scmp.ne.s32.totalorder %s80, %s82
      %p89 = scmp.eq.s32.totalorder %s30, 1
      %p90 = por %p88, %p89
      %p91 = scmp.ne.s32.totalorder %s82, %s83
      %p92 = scmp.eq.s32.totalorder %s30, 0
      %p93 = por %p91, %p92
      %p94 = scmp.ne.s32.totalorder %s82, %s83
      %p95 = scmp.eq.s32.totalorder %s31, 1
      %p96 = por %p94, %p95
      %p98 = scmp.ne.s32.totalorder %s83, %s97
      %p99 = scmp.eq.s32.totalorder %s31, 0
      %p100 = por %p98, %p99
      %s102 = sadd.s32 %s101, 1
      %p105 = scmp.eq.s32.totalorder %s25, 1
      %p106 = scmp.ne.s32.totalorder %s101, %s103
      %p107 = scmp.eq.s32.totalorder %s25, 0
      %p108 = por %p106, %p107
      %p109 = scmp.ne.s32.totalorder %s101, %s103
      %p110 = scmp.eq.s32.totalorder %s30, 1
      %p111 = por %p109, %p110
      %p112 = scmp.ne.s32.totalorder %s103, %s104
      %p113 = scmp.eq.s32.totalorder %s30, 0
      %p114 = por %p112, %p113
      %p115 = scmp.ne.s32.totalorder %s103, %s104
      %p116 = scmp.eq.s32.totalorder %s31, 1
      %p117 = por %p115, %p116
      %p119 = scmp.ne.s32.totalorder %s104, %s118
      %p120 = scmp.eq.s32.totalorder %s31, 0
      %p121 = por %p119, %p120
      %s123 = sadd.s32 %s122, 1
      %p126 = scmp.eq.s32.totalorder %s25, 1
      %p127 = scmp.ne.s32.totalorder %s122, %s124
      %p128 = scmp.eq.s32.totalorder %s25, 0
      %p129 = por %p127, %p128
      %p130 = scmp.ne.s32.totalorder %s122, %s124
      %p131 = scmp.eq.s32.totalorder %s30, 1
      %p132 = por %p130, %p131
      %p133 = scmp.ne.s32.totalorder %s124, %s125
      %p134 = scmp.eq.s32.totalorder %s30, 0
      %p135 = por %p133, %p134
      %p136 = scmp.ne.s32.totalorder %s124, %s125
      %p137 = scmp.eq.s32.totalorder %s31, 1
      %p138 = por %p136, %p137
      %p140 = scmp.ne.s32.totalorder %s125, %s139
      %p141 = scmp.eq.s32.totalorder %s31, 0
      %p142 = por %p140, %p141
      %s144 = sadd.s32 %s143, 1
      %p147 = scmp.eq.s32.totalorder %s25, 1
      %p148 = scmp.ne.s32.totalorder %s143, %s145
      %p149 = scmp.eq.s32.totalorder %s25, 0
      %p150 = por %p148, %p149
      %p151 = scmp.ne.s32.totalorder %s143, %s145
      %p152 = scmp.eq.s32.totalorder %s30, 1
      %p153 = por %p151, %p152
      %p154 = scmp.ne.s32.totalorder %s145, %s146
      %p155 = scmp.eq.s32.totalorder %s30, 0
      %p156 = por %p154, %p155
      %p157 = scmp.ne.s32.totalorder %s145, %s146
      %p158 = scmp.eq.s32.totalorder %s31, 1
      %p159 = por %p157, %p158
      %p161 = scmp.ne.s32.totalorder %s146, %s160
      %p162 = scmp.eq.s32.totalorder %s31, 0
      %p163 = por %p161, %p162
      %s165 = sadd.s32 %s164, 1
      %p168 = scmp.eq.s32.totalorder %s25, 1
      %p169 = scmp.ne.s32.totalorder %s164, %s166
      %p170 = scmp.eq.s32.totalorder %s25, 0
      %p171 = por %p169, %p170
      %p172 = scmp.ne.s32.totalorder %s164, %s166
      %p173 = scmp.eq.s32.totalorder %s30, 1
      %p174 = por %p172, %p173
      %p175 = scmp.ne.s32.totalorder %s166, %s167
      %p176 = scmp.eq.s32.totalorder %s30, 0
      %p177 = por %p175, %p176
      %p178 = scmp.ne.s32.totalorder %s166, %s167
      %p179 = scmp.eq.s32.totalorder %s31, 1
      %p180 = por %p178, %p179
      %p182 = scmp.ne.s32.totalorder %s167, %s181
      %p183 = scmp.eq.s32.totalorder %s31, 0
      %p184 = por %p182, %p183
      %s186 = sadd.s32 %s185, 1
      %p189 = scmp.eq.s32.totalorder %s25, 1
      %p190 = scmp.ne.s32.totalorder %s185, %s187
      %p191 = scmp.eq.s32.totalorder %s25, 0
      %p192 = por %p190, %p191
      %p193 = scmp.ne.s32.totalorder %s185, %s187
      %p194 = scmp.eq.s32.totalorder %s30, 1
      %p195 = por %p193, %p194
      %p196 = scmp.ne.s32.totalorder %s187, %s188
      %p197 = scmp.eq.s32.totalorder %s30, 0
      %p198 = por %p196, %p197
      %p199 = scmp.ne.s32.totalorder %s187, %s188
      %p200 = scmp.eq.s32.totalorder %s31, 1
      %p201 = por %p199, %p200
      %p203 = scmp.ne.s32.totalorder %s188, %s202
      %p204 = scmp.eq.s32.totalorder %s31, 0
      %p205 = por %p203, %p204
      %s207 = sadd.s32 %s206, 1
      %p210 = scmp.eq.s32.totalorder %s25, 1
      %p211 = scmp.ne.s32.totalorder %s206, %s208
      %p212 = scmp.eq.s32.totalorder %s25, 0
      %p213 = por %p211, %p212
      %p214 = scmp.ne.s32.totalorder %s206, %s208
      %p215 = scmp.eq.s32.totalorder %s30, 1
      %p216 = por %p214, %p215
      %p217 = scmp.ne.s32.totalorder %s208, %s209
      %p218 = scmp.eq.s32.totalorder %s30, 0
      %p219 = por %p217, %p218
      %p220 = scmp.ne.s32.totalorder %s208, %s209
      %p221 = scmp.eq.s32.totalorder %s31, 1
      %p222 = por %p220, %p221
      %p224 = scmp.ne.s32.totalorder %s209, %s223
      %p225 = scmp.eq.s32.totalorder %s31, 0
      %p226 = por %p224, %p225
      %s228 = sadd.s32 %s227, 1
      %p231 = scmp.eq.s32.totalorder %s25, 1
      %p232 = scmp.ne.s32.totalorder %s227, %s229
      %p233 = scmp.eq.s32.totalorder %s25, 0
      %p234 = por %p232, %p233
      %p235 = scmp.ne.s32.totalorder %s227, %s229
      %p236 = scmp.eq.s32.totalorder %s30, 1
      %p237 = por %p235, %p236
      %p238 = scmp.ne.s32.totalorder %s229, %s230
      %p239 = scmp.eq.s32.totalorder %s30, 0
      %p240 = por %p238, %p239
      %p241 = scmp.ne.s32.totalorder %s229, %s230
      %p242 = scmp.eq.s32.totalorder %s31, 1
      %p243 = por %p241, %p242
      %p245 = scmp.ne.s32.totalorder %s230, %s244
      %p246 = scmp.eq.s32.totalorder %s31, 0
      %p247 = por %p245, %p246
      %s249 = sadd.s32 %s248, 1
      %p252 = scmp.eq.s32.totalorder %s25, 1
      %p253 = scmp.ne.s32.totalorder %s248, %s250
      %p254 = scmp.eq.s32.totalorder %s25, 0
      %p255 = por %p253, %p254
      %p256 = scmp.ne.s32.totalorder %s248, %s250
      %p257 = scmp.eq.s32.totalorder %s30, 1
      %p258 = por %p256, %p257
      %p259 = scmp.ne.s32.totalorder %s250, %s251
      %p260 = scmp.eq.s32.totalorder %s30, 0
      %p261 = por %p259, %p260
      %p262 = scmp.ne.s32.totalorder %s250, %s251
      %p263 = scmp.eq.s32.totalorder %s31, 1
      %p264 = por %p262, %p263
      %p266 = scmp.ne.s32.totalorder %s251, %s265
      %p267 = scmp.eq.s32.totalorder %s31, 0
      %p268 = por %p266, %p267
      %s270 = sadd.s32 %s269, 1
      %p273 = scmp.eq.s32.totalorder %s25, 1
      %p274 = scmp.ne.s32.totalorder %s269, %s271
      %p275 = scmp.eq.s32.totalorder %s25, 0
      %p276 = por %p274, %p275
      %p277 = scmp.ne.s32.totalorder %s269, %s271
      %p278 = scmp.eq.s32.totalorder %s30, 1
      %p279 = por %p277, %p278
      %p280 = scmp.ne.s32.totalorder %s271, %s272
      %p281 = scmp.eq.s32.totalorder %s30, 0
      %p282 = por %p280, %p281
      %p283 = scmp.ne.s32.totalorder %s271, %s272
      %p284 = scmp.eq.s32.totalorder %s31, 1
      %p285 = por %p283, %p284
      %p287 = scmp.ne.s32.totalorder %s272, %s286
      %p288 = scmp.eq.s32.totalorder %s31, 0
      %p289 = por %p287, %p288
      %s291 = sadd.s32 %s290, 1
      %p294 = scmp.eq.s32.totalorder %s25, 1
      %p295 = scmp.ne.s32.totalorder %s290, %s292
      %p296 = scmp.eq.s32.totalorder %s25, 0
      %p297 = por %p295, %p296
      %p298 = scmp.ne.s32.totalorder %s290, %s292
      %p299 = scmp.eq.s32.totalorder %s30, 1
      %p300 = por %p298, %p299
      %p301 = scmp.ne.s32.totalorder %s292, %s293
      %p302 = scmp.eq.s32.totalorder %s30, 0
      %p303 = por %p301, %p302
      %p304 = scmp.ne.s32.totalorder %s292, %s293
      %p305 = scmp.eq.s32.totalorder %s31, 1
      %p306 = por %p304, %p305
      %p308 = scmp.ne.s32.totalorder %s293, %s307
      %p309 = scmp.eq.s32.totalorder %s31, 0
      %p310 = por %p308, %p309
      %s311 = ssub.s32 %s25, %s32
      %p312 = scmp.eq.s32.totalorder %s311, 0
      %s314 = sadd.s32 %s313, 1
      %s315 = scalar_select %p312, %s313, %s314
      %p318 = pneg %p312
      %p319 = scmp.eq.s32.totalorder %s25, 1
      %p320 = por %p318, %p319
      %p321 = scmp.ne.s32.totalorder %s313, %s316
      %p322 = scmp.eq.s32.totalorder %s25, 0
      %p323 = por %p321, %p322
      %p324 = scmp.ne.s32.totalorder %s313, %s316
      %p325 = scmp.eq.s32.totalorder %s30, 1
      %p326 = por %p324, %p325
      %p327 = scmp.ne.s32.totalorder %s316, %s317
      %p328 = scmp.eq.s32.totalorder %s30, 0
      %p329 = por %p327, %p328
      %p330 = scmp.ne.s32.totalorder %s316, %s317
      %p331 = scmp.eq.s32.totalorder %s31, 1
      %p332 = por %p330, %p331
      %p334 = scmp.ne.s32.totalorder %s317, %s333
      %p335 = scmp.eq.s32.totalorder %s31, 0
      %p336 = por %p334, %p335
      %p337 = scmp.le.s32.totalorder 1, %s25
      %p338 = scmp.lt.s32.totalorder %s25, 3
      %p339 = pnand %p337, %p338
      %p340 = pneg %p339
      // Predicated region
      $region9: #{tpu_custom_call.1} parent=5 // pred_check
        _
      $region10: #{tpu_custom_call.1} parent=5 // pred_check_branch
        %342 = sbr.rel (%p339) target = $region12
      $region11: #{tpu_custom_call.1} parent=5 // pred_region
        %s343 = ssub.s32 %s25, 1
        // Predicated region
        $region13: #{tpu_custom_call.1} parent=11 // pred_check
          %p344 = pneg %p72
        $region14: #{tpu_custom_call.1} parent=11 // pred_check_branch
          %346 = sbr.rel (%p344) target = $region16
        $region15: #{tpu_custom_call.1} parent=11 // pred_region
          _
        $region16: #{tpu_custom_call.1} parent=11 // pred_fallthru
          _
        // Predicated region
        $region17: #{tpu_custom_call.1} parent=11 // pred_check
          %p347 = pneg %p93
        $region18: #{tpu_custom_call.1} parent=11 // pred_check_branch
          %349 = sbr.rel (%p347) target = $region20
        $region19: #{tpu_custom_call.1} parent=11 // pred_region
          _
        $region20: #{tpu_custom_call.1} parent=11 // pred_fallthru
          _
        // Predicated region
        $region21: #{tpu_custom_call.1} parent=11 // pred_check
          %p350 = pneg %p114
        $region22: #{tpu_custom_call.1} parent=11 // pred_check_branch
          %352 = sbr.rel (%p350) target = $region24
        $region23: #{tpu_custom_call.1} parent=11 // pred_region
          _
        $region24: #{tpu_custom_call.1} parent=11 // pred_fallthru
          _
        // Predicated region
        $region25: #{tpu_custom_call.1} parent=11 // pred_check
          %p353 = pneg %p135
        $region26: #{tpu_custom_call.1} parent=11 // pred_check_branch
          %355 = sbr.rel (%p353) target = $region28
        $region27: #{tpu_custom_call.1} parent=11 // pred_region
          _
        $region28: #{tpu_custom_call.1} parent=11 // pred_fallthru
          _
        // Predicated region
        $region29: #{tpu_custom_call.1} parent=11 // pred_check
          %p356 = pneg %p156
        $region30: #{tpu_custom_call.1} parent=11 // pred_check_branch
          %358 = sbr.rel (%p356) target = $region32
        $region31: #{tpu_custom_call.1} parent=11 // pred_region
          %s360 = ssub.s32 16, 16
          %361 = vsyncadd [#allocation3], %s360
          %s363 = sshll.u32 [#allocation2], 4
          %s364 = int_to_ptr.vmem [resolvable:$true] %s363
          %366 = dma.hbm_to_vmem [thread:$0]  %s5, 16, %s364, [#allocation3]
        $region32: #{tpu_custom_call.1} parent=11 // pred_fallthru
          _
        // Predicated region
        $region33: #{tpu_custom_call.1} parent=11 // pred_check
          %p367 = pneg %p177
        $region34: #{tpu_custom_call.1} parent=11 // pred_check_branch
          %369 = sbr.rel (%p367) target = $region36
        $region35: #{tpu_custom_call.1} parent=11 // pred_region
          %s371 = ssub.s32 16, 16
          %372 = vsyncadd [#allocation6], %s371
          %s374 = sshll.u32 [#allocation5], 4
          %s375 = int_to_ptr.vmem [resolvable:$true] %s374
          %377 = dma.hbm_to_vmem [thread:$0]  %s6, 16, %s375, [#allocation6]
        $region36: #{tpu_custom_call.1} parent=11 // pred_fallthru
          _
        // Predicated region
        $region37: #{tpu_custom_call.1} parent=11 // pred_check
          %p378 = pneg %p198
        $region38: #{tpu_custom_call.1} parent=11 // pred_check_branch
          %380 = sbr.rel (%p378) target = $region40
        $region39: #{tpu_custom_call.1} parent=11 // pred_region
          %s382 = ssub.s32 16, 16
          %383 = vsyncadd [#allocation6], %s382
          %s385 = sshll.u32 [#allocation7], 4
          %s386 = int_to_ptr.vmem [resolvable:$true] %s385
          %388 = dma.hbm_to_vmem [thread:$0]  %s7, 16, %s386, [#allocation6]
        $region40: #{tpu_custom_call.1} parent=11 // pred_fallthru
          _
        // Predicated region
        $region41: #{tpu_custom_call.1} parent=11 // pred_check
          %p389 = pneg %p219
        $region42: #{tpu_custom_call.1} parent=11 // pred_check_branch
          %391 = sbr.rel (%p389) target = $region44
        $region43: #{tpu_custom_call.1} parent=11 // pred_region
          %s393 = ssub.s32 16, 16
          %394 = vsyncadd [#allocation9], %s393
          %s396 = sshll.u32 [#allocation8], 4
          %s397 = int_to_ptr.vmem [resolvable:$true] %s396
          %399 = dma.hbm_to_vmem [thread:$0]  %s8, 16, %s397, [#allocation9]
        $region44: #{tpu_custom_call.1} parent=11 // pred_fallthru
          _
        // Predicated region
        $region45: #{tpu_custom_call.1} parent=11 // pred_check
          %p400 = pneg %p240
        $region46: #{tpu_custom_call.1} parent=11 // pred_check_branch
          %402 = sbr.rel (%p400) target = $region48
        $region47: #{tpu_custom_call.1} parent=11 // pred_region
          _
        $region48: #{tpu_custom_call.1} parent=11 // pred_fallthru
          _
        // Predicated region
        $region49: #{tpu_custom_call.1} parent=11 // pred_check
          %p403 = pneg %p261
        $region50: #{tpu_custom_call.1} parent=11 // pred_check_branch
          %405 = sbr.rel (%p403) target = $region52
        $region51: #{tpu_custom_call.1} parent=11 // pred_region
          _
        $region52: #{tpu_custom_call.1} parent=11 // pred_fallthru
          _
        // Predicated region
        $region53: #{tpu_custom_call.1} parent=11 // pred_check
          %p406 = pneg %p282
        $region54: #{tpu_custom_call.1} parent=11 // pred_check_branch
          %408 = sbr.rel (%p406) target = $region56
        $region55: #{tpu_custom_call.1} parent=11 // pred_region
          _
        $region56: #{tpu_custom_call.1} parent=11 // pred_fallthru
          _
        // Predicated region
        $region57: #{tpu_custom_call.1} parent=11 // pred_check
          %p409 = pneg %p303
        $region58: #{tpu_custom_call.1} parent=11 // pred_check_branch
          %411 = sbr.rel (%p409) target = $region60
        $region59: #{tpu_custom_call.1} parent=11 // pred_region
          _
        $region60: #{tpu_custom_call.1} parent=11 // pred_fallthru
          _
      $region12: #{tpu_custom_call.1} parent=5 // pred_fallthru
        _
      %p412 = scmp.lt.s32.totalorder %s25, 2
      // Predicated region
      $region61: #{tpu_custom_call.1} parent=5 // pred_check
        %p413 = pneg %p412
      $region62: #{tpu_custom_call.1} parent=5 // pred_check_branch
        %415 = sbr.rel (%p413) target = $region64
      $region63: #{tpu_custom_call.1} parent=5 // pred_region
        // Predicated region
        $region65: #{tpu_custom_call.1} parent=63 // pred_check
          %p416 = pneg %p45
        $region66: #{tpu_custom_call.1} parent=63 // pred_check_branch
          %418 = sbr.rel (%p416) target = $region68
        $region67: #{tpu_custom_call.1} parent=63 // pred_region
          %p419 = scmp.lt.s32.totalorder %s25, 1
          %s420 = scalar_select %p419, %s25, 1
          %s421 = smul.addr %s420, 8
          %s422 = scalar_lea.vmem %s0, %s421
        $region68: #{tpu_custom_call.1} parent=63 // pred_fallthru
          _
      $region64: #{tpu_custom_call.1} parent=5 // pred_fallthru
        _
      %p423 = scmp.le.s32.totalorder 1, %s25
      %p424 = scmp.lt.s32.totalorder %s25, 3
      %p425 = pnand %p423, %p424
      %p426 = pneg %p425
      // Predicated region
      $region69: #{tpu_custom_call.1} parent=5 // pred_check
        _
      $region70: #{tpu_custom_call.1} parent=5 // pred_check_branch
        %428 = sbr.rel (%p425) target = $region72
      $region71: #{tpu_custom_call.1} parent=5 // pred_region
        %s429 = ssub.s32 %s25, 1
        // Predicated region
        $region73: #{tpu_custom_call.1} parent=71 // pred_check
          %p430 = pneg %p156
        $region74: #{tpu_custom_call.1} parent=71 // pred_check_branch
          %432 = sbr.rel (%p430) target = $region76
        $region75: #{tpu_custom_call.1} parent=71 // pred_region
          %433 = dma.done [#allocation3], 16
        $region76: #{tpu_custom_call.1} parent=71 // pred_fallthru
          _
        // Predicated region
        $region77: #{tpu_custom_call.1} parent=71 // pred_check
          %p434 = pneg %p177
        $region78: #{tpu_custom_call.1} parent=71 // pred_check_branch
          %436 = sbr.rel (%p434) target = $region80
        $region79: #{tpu_custom_call.1} parent=71 // pred_region
          %437 = dma.done [#allocation6], 16
        $region80: #{tpu_custom_call.1} parent=71 // pred_fallthru
          _
        // Predicated region
        $region81: #{tpu_custom_call.1} parent=71 // pred_check
          %p438 = pneg %p198
        $region82: #{tpu_custom_call.1} parent=71 // pred_check_branch
          %440 = sbr.rel (%p438) target = $region84
        $region83: #{tpu_custom_call.1} parent=71 // pred_region
          %441 = dma.done [#allocation6], 16
        $region84: #{tpu_custom_call.1} parent=71 // pred_fallthru
          _
        // Predicated region
        $region85: #{tpu_custom_call.1} parent=71 // pred_check
          %p442 = pneg %p219
        $region86: #{tpu_custom_call.1} parent=71 // pred_check_branch
          %444 = sbr.rel (%p442) target = $region88
        $region87: #{tpu_custom_call.1} parent=71 // pred_region
          %445 = dma.done [#allocation9], 16
        $region88: #{tpu_custom_call.1} parent=71 // pred_fallthru
          _
        %p446 = scmp.lt.s32.totalorder %s30, 1
        %s447 = scalar_select %p446, %s30, 1
        %s448 = smul.addr %s447, 8
        %s449 = scalar_lea.vmem %s0, %s448
        %p450 = pneg %p51
        %p451 = pneg %p48
        %p452 = pneg %p72
        %p453 = pneg %p69
        %p454 = pneg %p93
        %p455 = pneg %p90
        %p456 = pneg %p114
        %p457 = pneg %p111
        %p458 = pneg %p135
        %p459 = pneg %p132
        %p460 = pneg %p156
        %p461 = pneg %p153
        %p462 = pneg %p177
        %p463 = pneg %p174
        %p464 = pneg %p198
        %p465 = pneg %p195
        %p466 = pneg %p219
        %p467 = pneg %p216
        %p468 = pneg %p240
        %p469 = pneg %p237
        %p470 = pneg %p261
        %p471 = pneg %p258
        %p472 = pneg %p282
        %p473 = pneg %p279
        %p474 = pneg %p303
        %p475 = pneg %p300
        %p476 = pneg %p329
        %p477 = pneg %p326
        %s478 = sand.u32 %s316, 1
        %s479 = scalar_lea.sflag [#allocation4], %s478
        %s480 = sand.u32 %s316, 1
        %s481 = smul.addr %s480, 8
        %s482 = scalar_lea.vmem [#allocation10], %s481
        %p483 = scmp.lt.s32.totalorder %s30, 1
        %s484 = scalar_select %p483, %s30, 1
        %s485 = smul.addr %s484, 8
        %s486 = scalar_lea.vmem %s0, %s485
        %v488 = vld [vmem:[%s486] sm:$0xff]
        %vm489 = vcmask 261120
        %v490 = vsel %vm489, %v488, 0.0
        %491 = vadd.xlane.f32.xlu0 %v490
        %v492 = vpop.xlane.xlu0 %491
        %v493 = vrcp.pop 32.0
        %v494 = vmul.f32 %v492, %v493
        %v495 = vsub.f32 %v488, %v494
        %v496 = vmul.f32 %v495, %v495
        %v497 = vsel %vm489, %v496, 0.0
        %498 = vadd.xlane.f32.xlu0 %v497
        %v499 = vpop.xlane.xlu0 %498
        %v500 = vmul.f32 %v499, %v493
        %v501 = vadd.f32 %v500, 1e-05
        %v502 = vrsqrt.pop %v501
        %v503 = vmul.f32 %v495, %v502
        %v504 = vld [vmem:[#allocation2] sm:$0x1]
        %v506 = vlaneseq
        %v507 = vshrl.u32 %v506, 7
        %v508 = vsub.s32 0, %v507
        %v509 = vrot.slane %v504, %v508
        %v511 = vmul.f32 %v503, %v509
        %v512 = vld [vmem:[#allocation5] sm:$0x1]
        %v514 = vlaneseq
        %v515 = vshrl.u32 %v514, 7
        %v516 = vsub.s32 0, %v515
        %v517 = vrot.slane %v512, %v516
        %v519 = vadd.f32 %v511, %v517
        %v520 = vpack.c.bf16 %v519, %v519
        %v521 = vld [vmem:[%s1] sm:$0xf]
        %v522 = vld [vmem:[%s1 + $0x4] sm:$0xf]
        %v523 = vld [vmem:[%s1 + $0x8] sm:$0xf]
        %v524 = vld [vmem:[%s1 + $0xc] sm:$0xf]
        %v525 = vld [vmem:[%s2] sm:$0x1]
        %v527 = vlaneseq
        %v528 = vshrl.u32 %v527, 7
        %v529 = vsub.s32 0, %v528
        %v530 = vrot.slane %v525, %v529
        %v536 = vunpack.c.l.b16 %v521
        %v537 = vunpack.c.l.b16 %v522
        %v538 = vunpack.c.l.b16 %v523
        %v539 = vunpack.c.l.b16 %v524
        %v540 = vpack.c.b16 %v537, %v536
        %v541 = vpack.c.b16 %v539, %v538
        %v545 = vsel %vm489, %v520, 0
        %547 = vmatprep.subr.bf16.mxu0 0
        %548 = vmatpush1.bf16.msra.mxu0 %v540
        %549 = vmatprep.subr.bf16.mxu0 0
        %550 = vmatpush1.bf16.msra.mxu0 %v541
        %551 = vmatprep.subr.bf16.mxu0 0
        %552 = vmatpush1.bf16.msra.mxu0 0
        %553 = vmatprep.subr.bf16.mxu0 0
        %554 = vmatpush1.bf16.msra.mxu0 0
        %555 = vmatprep.subr.bf16.mxu0 0
        %556 = vmatpush1.bf16.msra.mxu0 0
        %557 = vmatprep.subr.bf16.mxu0 0
        %558 = vmatpush1.bf16.msra.mxu0 0
        %559 = vmatprep.subr.bf16.mxu0 0
        %560 = vmatpush1.bf16.msra.mxu0 0
        %561 = vmatprep.subr.bf16.mxu0 0
        %562 = vmatpush1.bf16.msra.mxu0 0
        %563 = vmatprep.subr.bf16.mxu0 0
        %564 = vmatpush1.bf16.msra.mxu0 0
        %565 = vmatprep.subr.bf16.mxu0 0
        %566 = vmatpush1.bf16.msra.mxu0 0
        %567 = vmatprep.subr.bf16.mxu0 0
        %568 = vmatpush1.bf16.msra.mxu0 0
        %569 = vmatprep.subr.bf16.mxu0 0
        %570 = vmatpush1.bf16.msra.mxu0 0
        %571 = vmatprep.subr.bf16.mxu0 0
        %572 = vmatpush1.bf16.msra.mxu0 0
        %573 = vmatprep.subr.bf16.mxu0 0
        %574 = vmatpush1.bf16.msra.mxu0 0
        %575 = vmatprep.subr.bf16.mxu0 0
        %576 = vmatpush1.bf16.msra.mxu0 0
        %577 = vmatprep.subr.bf16.mxu0 0
        %578 = vmatpush1.bf16.msra.mxu0 0
        %579 = vmatprep.mubr.bf16.mxu0 0
        %580 = vmatmul.mubr.bf16.gmra.mrb[0].mxu0 %v545
        %v581 = vpop.f32.mrb[0].mxu0
        %v582 = vadd.f32 %v530, %v581
        %v583 = vpop.f32.mrb[0].mxu0
        %v584 = vpop.f32.mrb[0].mxu0
        %v585 = vpop.f32.mrb[0].mxu0
        %586 = vdwg.mxu0
        %v587 = vpack.c.bf16 %v582, %v582
        %589 = vrot.lane.b32.xlu0 %v587, 120
        %v590 = vpop.permute.xlu0 %589
        %591 = vrot.lane.b32.xlu0 %v587, 112
        %v592 = vpop.permute.xlu0 %591
        %593 = vrot.lane.b32.xlu0 %v587, 104
        %v594 = vpop.permute.xlu0 %593
        %595 = vrot.lane.b32.xlu0 %v587, 96
        %v596 = vpop.permute.xlu0 %595
        %vm597 = vcmask 64512
        %v599 = vsel %vm597, %v587, 0
        %v602 = vsel %vm597, %v596, 0
        %604 = vmatprep.subr.bf16.mxu0 0
        %605 = vmatpush1.bf16.xpose.msra.mxu0 %v602
        %606 = vmatprep.subr.bf16.mxu0 0
        %607 = vmatpush1.bf16.xpose.msra.mxu0 0
        %608 = vmatprep.subr.bf16.mxu0 0
        %609 = vmatpush1.bf16.xpose.msra.mxu0 0
        %610 = vmatprep.subr.bf16.mxu0 0
        %611 = vmatpush1.bf16.xpose.msra.mxu0 0
        %612 = vmatprep.subr.bf16.mxu0 0
        %613 = vmatpush1.bf16.xpose.msra.mxu0 0
        %614 = vmatprep.subr.bf16.mxu0 0
        %615 = vmatpush1.bf16.xpose.msra.mxu0 0
        %616 = vmatprep.subr.bf16.mxu0 0
        %617 = vmatpush1.bf16.xpose.msra.mxu0 0
        %618 = vmatprep.subr.bf16.mxu0 0
        %619 = vmatpush1.bf16.xpose.msra.mxu0 0
        %620 = vmatprep.subr.bf16.mxu0 0
        %621 = vmatpush1.bf16.xpose.msra.mxu0 0
        %622 = vmatprep.subr.bf16.mxu0 0
        %623 = vmatpush1.bf16.xpose.msra.mxu0 0
        %624 = vmatprep.subr.bf16.mxu0 0
        %625 = vmatpush1.bf16.xpose.msra.mxu0 0
        %626 = vmatprep.subr.bf16.mxu0 0
        %627 = vmatpush1.bf16.xpose.msra.mxu0 0
        %628 = vmatprep.subr.bf16.mxu0 0
        %629 = vmatpush1.bf16.xpose.msra.mxu0 0
        %630 = vmatprep.subr.bf16.mxu0 0
        %631 = vmatpush1.bf16.xpose.msra.mxu0 0
        %632 = vmatprep.subr.bf16.mxu0 0
        %633 = vmatpush1.bf16.xpose.msra.mxu0 0
        %634 = vmatprep.subr.bf16.mxu0 0
        %635 = vmatpush1.bf16.xpose.msra.mxu0 0
        %636 = vmatprep.mubr.bf16.mxu0 0
        %637 = vmatmul.mubr.bf16.gmra.mrb[0].mxu0 %v599
        %v638 = vpop.f32.mrb[0].mxu0
        %v639 = vadd.f32 0.0, %v638
        %v640 = vpop.f32.mrb[0].mxu0
        %v641 = vpop.f32.mrb[0].mxu0
        %v642 = vpop.f32.mrb[0].mxu0
        %643 = vdwg.mxu0
        %644 = vrot.lane.b32.xlu0 %v590, 96
        %v645 = vpop.permute.xlu0 %644
        %v647 = vsel %vm597, %v590, 0
        %v650 = vsel %vm597, %v645, 0
        %652 = vmatprep.subr.bf16.mxu0 0
        %653 = vmatpush1.bf16.xpose.msra.mxu0 %v650
        %654 = vmatprep.subr.bf16.mxu0 0
        %655 = vmatpush1.bf16.xpose.msra.mxu0 0
        %656 = vmatprep.subr.bf16.mxu0 0
        %657 = vmatpush1.bf16.xpose.msra.mxu0 0
        %658 = vmatprep.subr.bf16.mxu0 0
        %659 = vmatpush1.bf16.xpose.msra.mxu0 0
        %660 = vmatprep.subr.bf16.mxu0 0
        %661 = vmatpush1.bf16.xpose.msra.mxu0 0
        %662 = vmatprep.subr.bf16.mxu0 0
        %663 = vmatpush1.bf16.xpose.msra.mxu0 0
        %664 = vmatprep.subr.bf16.mxu0 0
        %665 = vmatpush1.bf16.xpose.msra.mxu0 0
        %666 = vmatprep.subr.bf16.mxu0 0
        %667 = vmatpush1.bf16.xpose.msra.mxu0 0
        %668 = vmatprep.subr.bf16.mxu0 0
        %669 = vmatpush1.bf16.xpose.msra.mxu0 0
        %670 = vmatprep.subr.bf16.mxu0 0
        %671 = vmatpush1.bf16.xpose.msra.mxu0 0
        %672 = vmatprep.subr.bf16.mxu0 0
        %673 = vmatpush1.bf16.xpose.msra.mxu0 0
        %674 = vmatprep.subr.bf16.mxu0 0
        %675 = vmatpush1.bf16.xpose.msra.mxu0 0
        %676 = vmatprep.subr.bf16.mxu0 0
        %677 = vmatpush1.bf16.xpose.msra.mxu0 0
        %678 = vmatprep.subr.bf16.mxu0 0
        %679 = vmatpush1.bf16.xpose.msra.mxu0 0
        %680 = vmatprep.subr.bf16.mxu0 0
        %681 = vmatpush1.bf16.xpose.msra.mxu0 0
        %682 = vmatprep.subr.bf16.mxu0 0
        %683 = vmatpush1.bf16.xpose.msra.mxu0 0
        %684 = vmatprep.mubr.bf16.mxu0 0
        %685 = vmatmul.mubr.bf16.gmra.mrb[0].mxu0 %v647
        %v686 = vpop.f32.mrb[0].mxu0
        %v687 = vadd.f32 0.0, %v686
        %v688 = vpop.f32.mrb[0].mxu0
        %v689 = vpop.f32.mrb[0].mxu0
        %v690 = vpop.f32.mrb[0].mxu0
        %691 = vdwg.mxu0
        %692 = vrot.lane.b32.xlu0 %v592, 96
        %v693 = vpop.permute.xlu0 %692
        %v695 = vsel %vm597, %v592, 0
        %v698 = vsel %vm597, %v693, 0
        %700 = vmatprep.subr.bf16.mxu0 0
        %701 = vmatpush1.bf16.xpose.msra.mxu0 %v698
        %702 = vmatprep.subr.bf16.mxu0 0
        %703 = vmatpush1.bf16.xpose.msra.mxu0 0
        %704 = vmatprep.subr.bf16.mxu0 0
        %705 = vmatpush1.bf16.xpose.msra.mxu0 0
        %706 = vmatprep.subr.bf16.mxu0 0
        %707 = vmatpush1.bf16.xpose.msra.mxu0 0
        %708 = vmatprep.subr.bf16.mxu0 0
        %709 = vmatpush1.bf16.xpose.msra.mxu0 0
        %710 = vmatprep.subr.bf16.mxu0 0
        %711 = vmatpush1.bf16.xpose.msra.mxu0 0
        %712 = vmatprep.subr.bf16.mxu0 0
        %713 = vmatpush1.bf16.xpose.msra.mxu0 0
        %714 = vmatprep.subr.bf16.mxu0 0
        %715 = vmatpush1.bf16.xpose.msra.mxu0 0
        %716 = vmatprep.subr.bf16.mxu0 0
        %717 = vmatpush1.bf16.xpose.msra.mxu0 0
        %718 = vmatprep.subr.bf16.mxu0 0
        %719 = vmatpush1.bf16.xpose.msra.mxu0 0
        %720 = vmatprep.subr.bf16.mxu0 0
        %721 = vmatpush1.bf16.xpose.msra.mxu0 0
        %722 = vmatprep.subr.bf16.mxu0 0
        %723 = vmatpush1.bf16.xpose.msra.mxu0 0
        %724 = vmatprep.subr.bf16.mxu0 0
        %725 = vmatpush1.bf16.xpose.msra.mxu0 0
        %726 = vmatprep.subr.bf16.mxu0 0
        %727 = vmatpush1.bf16.xpose.msra.mxu0 0
        %728 = vmatprep.subr.bf16.mxu0 0
        %729 = vmatpush1.bf16.xpose.msra.mxu0 0
        %730 = vmatprep.subr.bf16.mxu0 0
        %731 = vmatpush1.bf16.xpose.msra.mxu0 0
        %732 = vmatprep.mubr.bf16.mxu0 0
        %733 = vmatmul.mubr.bf16.gmra.mrb[0].mxu0 %v695
        %v734 = vpop.f32.mrb[0].mxu0
        %v735 = vadd.f32 0.0, %v734
        %v736 = vpop.f32.mrb[0].mxu0
        %v737 = vpop.f32.mrb[0].mxu0
        %v738 = vpop.f32.mrb[0].mxu0
        %739 = vdwg.mxu0
        %740 = vrot.lane.b32.xlu0 %v594, 96
        %v741 = vpop.permute.xlu0 %740
        %v743 = vsel %vm597, %v594, 0
        %v746 = vsel %vm597, %v741, 0
        %748 = vmatprep.subr.bf16.mxu0 0
        %749 = vmatpush1.bf16.xpose.msra.mxu0 %v746
        %750 = vmatprep.subr.bf16.mxu0 0
        %751 = vmatpush1.bf16.xpose.msra.mxu0 0
        %752 = vmatprep.subr.bf16.mxu0 0
        %753 = vmatpush1.bf16.xpose.msra.mxu0 0
        %754 = vmatprep.subr.bf16.mxu0 0
        %755 = vmatpush1.bf16.xpose.msra.mxu0 0
        %756 = vmatprep.subr.bf16.mxu0 0
        %757 = vmatpush1.bf16.xpose.msra.mxu0 0
        %758 = vmatprep.subr.bf16.mxu0 0
        %759 = vmatpush1.bf16.xpose.msra.mxu0 0
        %760 = vmatprep.subr.bf16.mxu0 0
        %761 = vmatpush1.bf16.xpose.msra.mxu0 0
        %762 = vmatprep.subr.bf16.mxu0 0
        %763 = vmatpush1.bf16.xpose.msra.mxu0 0
        %764 = vmatprep.subr.bf16.mxu0 0
        %765 = vmatpush1.bf16.xpose.msra.mxu0 0
        %766 = vmatprep.subr.bf16.mxu0 0
        %767 = vmatpush1.bf16.xpose.msra.mxu0 0
        %768 = vmatprep.subr.bf16.mxu0 0
        %769 = vmatpush1.bf16.xpose.msra.mxu0 0
        %770 = vmatprep.subr.bf16.mxu0 0
        %771 = vmatpush1.bf16.xpose.msra.mxu0 0
        %772 = vmatprep.subr.bf16.mxu0 0
        %773 = vmatpush1.bf16.xpose.msra.mxu0 0
        %774 = vmatprep.subr.bf16.mxu0 0
        %775 = vmatpush1.bf16.xpose.msra.mxu0 0
        %776 = vmatprep.subr.bf16.mxu0 0
        %777 = vmatpush1.bf16.xpose.msra.mxu0 0
        %778 = vmatprep.subr.bf16.mxu0 0
        %779 = vmatpush1.bf16.xpose.msra.mxu0 0
        %780 = vmatprep.mubr.bf16.mxu0 0
        %781 = vmatmul.mubr.bf16.gmra.mrb[0].mxu0 %v743
        %v782 = vpop.f32.mrb[0].mxu0
        %v783 = vadd.f32 0.0, %v782
        %v784 = vpop.f32.mrb[0].mxu0
        %v785 = vpop.f32.mrb[0].mxu0
        %v786 = vpop.f32.mrb[0].mxu0
        %787 = vdwg.mxu0
        %v788 = vsel %vm597, %v639, -inf
        %789 = vmax.xlane.f32.xlu0 %v788
        %v790 = vpop.xlane.xlu0 %789
        %v791 = vsel %vm597, %v687, -inf
        %792 = vmax.xlane.f32.xlu0 %v791
        %v793 = vpop.xlane.xlu0 %792
        %v794 = vsel %vm597, %v735, -inf
        %795 = vmax.xlane.f32.xlu0 %v794
        %v796 = vpop.xlane.xlu0 %795
        %v797 = vsel %vm597, %v783, -inf
        %798 = vmax.xlane.f32.xlu0 %v797
        %v799 = vpop.xlane.xlu0 %798
        %v800 = vsub.f32 %v639, %v790
        %v801 = vsub.f32 %v687, %v793
        %v802 = vsub.f32 %v735, %v796
        %v803 = vsub.f32 %v783, %v799
        %v804 = vmul.f32 %v800, 1.442695
        %v805 = vpow.pop %v804
        %v806 = vmul.f32 %v801, 1.442695
        %v807 = vpow.pop %v806
        %v808 = vmul.f32 %v802, 1.442695
        %v809 = vpow.pop %v808
        %v810 = vmul.f32 %v803, 1.442695
        %v811 = vpow.pop %v810
        %v812 = vsel %vm597, %v805, 0.0
        %813 = vadd.xlane.f32.xlu0 %v812
        %v814 = vpop.xlane.xlu0 %813
        %v815 = vsel %vm597, %v807, 0.0
        %816 = vadd.xlane.f32.xlu0 %v815
        %v817 = vpop.xlane.xlu0 %816
        %v818 = vsel %vm597, %v809, 0.0
        %819 = vadd.xlane.f32.xlu0 %v818
        %v820 = vpop.xlane.xlu0 %819
        %v821 = vsel %vm597, %v811, 0.0
        %822 = vadd.xlane.f32.xlu0 %v821
        %v823 = vpop.xlane.xlu0 %822
        %v824 = vrcp.pop %v814
        %v825 = vrcp.pop %v817
        %v826 = vrcp.pop %v820
        %v827 = vrcp.pop %v823
        %v828 = vmul.f32 %v805, %v824
        %v829 = vmul.f32 %v807, %v825
        %v830 = vmul.f32 %v809, %v826
        %v831 = vmul.f32 %v811, %v827
        %v832 = vpack.c.bf16 %v828, %v828
        %v833 = vpack.c.bf16 %v829, %v829
        %v834 = vpack.c.bf16 %v830, %v830
        %v835 = vpack.c.bf16 %v831, %v831
        %836 = vrot.lane.b32.xlu0 %v587, 64
        %v837 = vpop.permute.xlu0 %836
        %v839 = vsel %vm597, %v832, 0
        %vm841 = vcmask 1043456
        %v843 = vsel %vm841, %v837, 0
        %845 = vmatprep.subr.bf16.mxu0 0
        %846 = vmatpush1.bf16.msra.mxu0 %v843
        %847 = vmatprep.subr.bf16.mxu0 0
        %848 = vmatpush1.bf16.msra.mxu0 0
        %849 = vmatprep.subr.bf16.mxu0 0
        %850 = vmatpush1.bf16.msra.mxu0 0
        %851 = vmatprep.subr.bf16.mxu0 0
        %852 = vmatpush1.bf16.msra.mxu0 0
        %853 = vmatprep.subr.bf16.mxu0 0
        %854 = vmatpush1.bf16.msra.mxu0 0
        %855 = vmatprep.subr.bf16.mxu0 0
        %856 = vmatpush1.bf16.msra.mxu0 0
        %857 = vmatprep.subr.bf16.mxu0 0
        %858 = vmatpush1.bf16.msra.mxu0 0
        %859 = vmatprep.subr.bf16.mxu0 0
        %860 = vmatpush1.bf16.msra.mxu0 0
        %861 = vmatprep.subr.bf16.mxu0 0
        %862 = vmatpush1.bf16.msra.mxu0 0
        %863 = vmatprep.subr.bf16.mxu0 0
        %864 = vmatpush1.bf16.msra.mxu0 0
        %865 = vmatprep.subr.bf16.mxu0 0
        %866 = vmatpush1.bf16.msra.mxu0 0
        %867 = vmatprep.subr.bf16.mxu0 0
        %868 = vmatpush1.bf16.msra.mxu0 0
        %869 = vmatprep.subr.bf16.mxu0 0
        %870 = vmatpush1.bf16.msra.mxu0 0
        %871 = vmatprep.subr.bf16.mxu0 0
        %872 = vmatpush1.bf16.msra.mxu0 0
        %873 = vmatprep.subr.bf16.mxu0 0
        %874 = vmatpush1.bf16.msra.mxu0 0
        %875 = vmatprep.subr.bf16.mxu0 0
        %876 = vmatpush1.bf16.msra.mxu0 0
        %877 = vmatprep.mubr.bf16.mxu0 0
        %878 = vmatmul.mubr.bf16.gmra.mrb[0].mxu0 %v839
        %v879 = vpop.f32.mrb[0].mxu0
        %v880 = vadd.f32 0.0, %v879
        %v881 = vpop.f32.mrb[0].mxu0
        %v882 = vpop.f32.mrb[0].mxu0
        %v883 = vpop.f32.mrb[0].mxu0
        %884 = vdwg.mxu0
        %885 = vrot.lane.b32.xlu0 %v590, 64
        %v886 = vpop.permute.xlu0 %885
        %v888 = vsel %vm597, %v833, 0
        %v891 = vsel %vm841, %v886, 0
        %893 = vmatprep.subr.bf16.mxu0 0
        %894 = vmatpush1.bf16.msra.mxu0 %v891
        %895 = vmatprep.subr.bf16.mxu0 0
        %896 = vmatpush1.bf16.msra.mxu0 0
        %897 = vmatprep.subr.bf16.mxu0 0
        %898 = vmatpush1.bf16.msra.mxu0 0
        %899 = vmatprep.subr.bf16.mxu0 0
        %900 = vmatpush1.bf16.msra.mxu0 0
        %901 = vmatprep.subr.bf16.mxu0 0
        %902 = vmatpush1.bf16.msra.mxu0 0
        %903 = vmatprep.subr.bf16.mxu0 0
        %904 = vmatpush1.bf16.msra.mxu0 0
        %905 = vmatprep.subr.bf16.mxu0 0
        %906 = vmatpush1.bf16.msra.mxu0 0
        %907 = vmatprep.subr.bf16.mxu0 0
        %908 = vmatpush1.bf16.msra.mxu0 0
        %909 = vmatprep.subr.bf16.mxu0 0
        %910 = vmatpush1.bf16.msra.mxu0 0
        %911 = vmatprep.subr.bf16.mxu0 0
        %912 = vmatpush1.bf16.msra.mxu0 0
        %913 = vmatprep.subr.bf16.mxu0 0
        %914 = vmatpush1.bf16.msra.mxu0 0
        %915 = vmatprep.subr.bf16.mxu0 0
        %916 = vmatpush1.bf16.msra.mxu0 0
        %917 = vmatprep.subr.bf16.mxu0 0
        %918 = vmatpush1.bf16.msra.mxu0 0
        %919 = vmatprep.subr.bf16.mxu0 0
        %920 = vmatpush1.bf16.msra.mxu0 0
        %921 = vmatprep.subr.bf16.mxu0 0
        %922 = vmatpush1.bf16.msra.mxu0 0
        %923 = vmatprep.subr.bf16.mxu0 0
        %924 = vmatpush1.bf16.msra.mxu0 0
        %925 = vmatprep.mubr.bf16.mxu0 0
        %926 = vmatmul.mubr.bf16.gmra.mrb[0].mxu0 %v888
        %v927 = vpop.f32.mrb[0].mxu0
        %v928 = vadd.f32 0.0, %v927
        %v929 = vpop.f32.mrb[0].mxu0
        %v930 = vpop.f32.mrb[0].mxu0
        %v931 = vpop.f32.mrb[0].mxu0
        %932 = vdwg.mxu0
        %933 = vrot.lane.b32.xlu0 %v592, 64
        %v934 = vpop.permute.xlu0 %933
        %v936 = vsel %vm597, %v834, 0
        %v939 = vsel %vm841, %v934, 0
        %941 = vmatprep.subr.bf16.mxu0 0
        %942 = vmatpush1.bf16.msra.mxu0 %v939
        %943 = vmatprep.subr.bf16.mxu0 0
        %944 = vmatpush1.bf16.msra.mxu0 0
        %945 = vmatprep.subr.bf16.mxu0 0
        %946 = vmatpush1.bf16.msra.mxu0 0
        %947 = vmatprep.subr.bf16.mxu0 0
        %948 = vmatpush1.bf16.msra.mxu0 0
        %949 = vmatprep.subr.bf16.mxu0 0
        %950 = vmatpush1.bf16.msra.mxu0 0
        %951 = vmatprep.subr.bf16.mxu0 0
        %952 = vmatpush1.bf16.msra.mxu0 0
        %953 = vmatprep.subr.bf16.mxu0 0
        %954 = vmatpush1.bf16.msra.mxu0 0
        %955 = vmatprep.subr.bf16.mxu0 0
        %956 = vmatpush1.bf16.msra.mxu0 0
        %957 = vmatprep.subr.bf16.mxu0 0
        %958 = vmatpush1.bf16.msra.mxu0 0
        %959 = vmatprep.subr.bf16.mxu0 0
        %960 = vmatpush1.bf16.msra.mxu0 0
        %961 = vmatprep.subr.bf16.mxu0 0
        %962 = vmatpush1.bf16.msra.mxu0 0
        %963 = vmatprep.subr.bf16.mxu0 0
        %964 = vmatpush1.bf16.msra.mxu0 0
        %965 = vmatprep.subr.bf16.mxu0 0
        %966 = vmatpush1.bf16.msra.mxu0 0
        %967 = vmatprep.subr.bf16.mxu0 0
        %968 = vmatpush1.bf16.msra.mxu0 0
        %969 = vmatprep.subr.bf16.mxu0 0
        %970 = vmatpush1.bf16.msra.mxu0 0
        %971 = vmatprep.subr.bf16.mxu0 0
        %972 = vmatpush1.bf16.msra.mxu0 0
        %973 = vmatprep.mubr.bf16.mxu0 0
        %974 = vmatmul.mubr.bf16.gmra.mrb[0].mxu0 %v936
        %v975 = vpop.f32.mrb[0].mxu0
        %v976 = vadd.f32 0.0, %v975
        %v977 = vpop.f32.mrb[0].mxu0
        %v978 = vpop.f32.mrb[0].mxu0
        %v979 = vpop.f32.mrb[0].mxu0
        %980 = vdwg.mxu0
        %981 = vrot.lane.b32.xlu0 %v594, 64
        %v982 = vpop.permute.xlu0 %981
        %v984 = vsel %vm597, %v835, 0
        %v987 = vsel %vm841, %v982, 0
        %989 = vmatprep.subr.bf16.mxu0 0
        %990 = vmatpush1.bf16.msra.mxu0 %v987
        %991 = vmatprep.subr.bf16.mxu0 0
        %992 = vmatpush1.bf16.msra.mxu0 0
        %993 = vmatprep.subr.bf16.mxu0 0
        %994 = vmatpush1.bf16.msra.mxu0 0
        %995 = vmatprep.subr.bf16.mxu0 0
        %996 = vmatpush1.bf16.msra.mxu0 0
        %997 = vmatprep.subr.bf16.mxu0 0
        %998 = vmatpush1.bf16.msra.mxu0 0
        %999 = vmatprep.subr.bf16.mxu0 0
        %1000 = vmatpush1.bf16.msra.mxu0 0
        %1001 = vmatprep.subr.bf16.mxu0 0
        %1002 = vmatpush1.bf16.msra.mxu0 0
        %1003 = vmatprep.subr.bf16.mxu0 0
        %1004 = vmatpush1.bf16.msra.mxu0 0
        %1005 = vmatprep.subr.bf16.mxu0 0
        %1006 = vmatpush1.bf16.msra.mxu0 0
        %1007 = vmatprep.subr.bf16.mxu0 0
        %1008 = vmatpush1.bf16.msra.mxu0 0
        %1009 = vmatprep.subr.bf16.mxu0 0
        %1010 = vmatpush1.bf16.msra.mxu0 0
        %1011 = vmatprep.subr.bf16.mxu0 0
        %1012 = vmatpush1.bf16.msra.mxu0 0
        %1013 = vmatprep.subr.bf16.mxu0 0
        %1014 = vmatpush1.bf16.msra.mxu0 0
        %1015 = vmatprep.subr.bf16.mxu0 0
        %1016 = vmatpush1.bf16.msra.mxu0 0
        %1017 = vmatprep.subr.bf16.mxu0 0
        %1018 = vmatpush1.bf16.msra.mxu0 0
        %1019 = vmatprep.subr.bf16.mxu0 0
        %1020 = vmatpush1.bf16.msra.mxu0 0
        %1021 = vmatprep.mubr.bf16.mxu0 0
        %1022 = vmatmul.mubr.bf16.gmra.mrb[0].mxu0 %v984
        %v1023 = vpop.f32.mrb[0].mxu0
        %v1024 = vadd.f32 0.0, %v1023
        %v1025 = vpop.f32.mrb[0].mxu0
        %v1026 = vpop.f32.mrb[0].mxu0
        %v1027 = vpop.f32.mrb[0].mxu0
        %1028 = vdwg.mxu0
        %1030 = vrot.lane.b32.xlu0 %v928, 8
        %v1031 = vpop.permute.xlu0 %1030
        %1034 = vrot.lane.b32.xlu0 %v976, 16
        %v1035 = vpop.permute.xlu0 %1034
        %1038 = vrot.lane.b32.xlu0 %v1024, 24
        %v1039 = vpop.permute.xlu0 %1038
        %v1041 = vsel %vm597, %v880, %v1031
        %vm1042 = vcmask 130048
        %v1043 = vsel %vm1042, %v1041, %v1035
        %vm1044 = vcmask 195584
        %v1045 = vsel %vm1044, %v1043, %v1039
        %v1046 = vpack.c.bf16 %v1045, %v1045
        %v1047 = vld [vmem:[%s3] sm:$0xf]
        %v1048 = vld [vmem:[%s3 + $0x4] sm:$0xf]
        %v1049 = vld [vmem:[%s3 + $0x8] sm:$0xf]
        %v1050 = vld [vmem:[%s3 + $0xc] sm:$0xf]
        %v1051 = vld [vmem:[%s4] sm:$0x1]
        %v1053 = vlaneseq
        %v1054 = vshrl.u32 %v1053, 7
        %v1055 = vsub.s32 0, %v1054
        %v1056 = vrot.slane %v1051, %v1055
        %v1062 = vunpack.c.l.b16 %v1047
        %v1063 = vunpack.c.l.b16 %v1048
        %v1064 = vunpack.c.l.b16 %v1049
        %v1065 = vunpack.c.l.b16 %v1050
        %v1066 = vpack.c.b16 %v1063, %v1062
        %v1067 = vpack.c.b16 %v1065, %v1064
        %v1071 = vsel %vm489, %v1046, 0
        %1073 = vmatprep.subr.bf16.mxu0 0
        %1074 = vmatpush1.bf16.msra.mxu0 %v1066
        %1075 = vmatprep.subr.bf16.mxu0 0
        %1076 = vmatpush1.bf16.msra.mxu0 %v1067
        %1077 = vmatprep.subr.bf16.mxu0 0
        %1078 = vmatpush1.bf16.msra.mxu0 0
        %1079 = vmatprep.subr.bf16.mxu0 0
        %1080 = vmatpush1.bf16.msra.mxu0 0
        %1081 = vmatprep.subr.bf16.mxu0 0
        %1082 = vmatpush1.bf16.msra.mxu0 0
        %1083 = vmatprep.subr.bf16.mxu0 0
        %1084 = vmatpush1.bf16.msra.mxu0 0
        %1085 = vmatprep.subr.bf16.mxu0 0
        %1086 = vmatpush1.bf16.msra.mxu0 0
        %1087 = vmatprep.subr.bf16.mxu0 0
        %1088 = vmatpush1.bf16.msra.mxu0 0
        %1089 = vmatprep.subr.bf16.mxu0 0
        %1090 = vmatpush1.bf16.msra.mxu0 0
        %1091 = vmatprep.subr.bf16.mxu0 0
        %1092 = vmatpush1.bf16.msra.mxu0 0
        %1093 = vmatprep.subr.bf16.mxu0 0
        %1094 = vmatpush1.bf16.msra.mxu0 0
        %1095 = vmatprep.subr.bf16.mxu0 0
        %1096 = vmatpush1.bf16.msra.mxu0 0
        %1097 = vmatprep.subr.bf16.mxu0 0
        %1098 = vmatpush1.bf16.msra.mxu0 0
        %1099 = vmatprep.subr.bf16.mxu0 0
        %1100 = vmatpush1.bf16.msra.mxu0 0
        %1101 = vmatprep.subr.bf16.mxu0 0
        %1102 = vmatpush1.bf16.msra.mxu0 0
        %1103 = vmatprep.subr.bf16.mxu0 0
        %1104 = vmatpush1.bf16.msra.mxu0 0
        %1105 = vmatprep.mubr.bf16.mxu0 0
        %1106 = vmatmul.mubr.bf16.gmra.mrb[0].mxu0 %v1071
        %v1107 = vpop.f32.mrb[0].mxu0
        %v1108 = vadd.f32 %v1056, %v1107
        %v1109 = vpop.f32.mrb[0].mxu0
        %v1110 = vpop.f32.mrb[0].mxu0
        %v1111 = vpop.f32.mrb[0].mxu0
        %1112 = vdwg.mxu0
        %v1113 = vld [vmem:[%s486] sm:$0xff]
        %v1114 = vadd.f32 %v1113, %v1108
        %v1115 = vsel %vm489, %v1114, 0.0
        %1116 = vadd.xlane.f32.xlu0 %v1115
        %v1117 = vpop.xlane.xlu0 %1116
        %v1118 = vmul.f32 %v1117, %v493
        %v1119 = vsub.f32 %v1114, %v1118
        %v1120 = vmul.f32 %v1119, %v1119
        %v1121 = vsel %vm489, %v1120, 0.0
        %1122 = vadd.xlane.f32.xlu0 %v1121
        %v1123 = vpop.xlane.xlu0 %1122
        %v1124 = vmul.f32 %v1123, %v493
        %v1125 = vadd.f32 %v1124, 1e-05
        %v1126 = vrsqrt.pop %v1125
        %v1127 = vmul.f32 %v1119, %v1126
        %v1128 = vld [vmem:[#allocation7] sm:$0x1]
        %v1130 = vlaneseq
        %v1131 = vshrl.u32 %v1130, 7
        %v1132 = vsub.s32 0, %v1131
        %v1133 = vrot.slane %v1128, %v1132
        %v1135 = vmul.f32 %v1127, %v1133
        %v1136 = vld [vmem:[#allocation8] sm:$0x1]
        %v1138 = vlaneseq
        %v1139 = vshrl.u32 %v1138, 7
        %v1140 = vsub.s32 0, %v1139
        %v1141 = vrot.slane %v1136, %v1140
        %v1143 = vadd.f32 %v1135, %v1141
        %v1144 = vpack.c.bf16 %v1143, %v1143
        %v1145 = vld [vmem:[%s9] sm:$0xf]
        %v1146 = vld [vmem:[%s9 + $0x4] sm:$0xf]
        %v1147 = vld [vmem:[%s9 + $0x8] sm:$0xf]
        %v1148 = vld [vmem:[%s9 + $0xc] sm:$0xf]
        %v1149 = vld [vmem:[%s10] sm:$0x1]
        %v1151 = vlaneseq
        %v1152 = vshrl.u32 %v1151, 7
        %v1153 = vsub.s32 0, %v1152
        %v1154 = vrot.slane %v1149, %v1153
        %v1160 = vunpack.c.l.b16 %v1145
        %v1161 = vunpack.c.l.b16 %v1146
        %v1162 = vunpack.c.l.b16 %v1147
        %v1163 = vunpack.c.l.b16 %v1148
        %v1164 = vpack.c.b16 %v1161, %v1160
        %v1165 = vpack.c.b16 %v1163, %v1162
        %v1169 = vsel %vm489, %v1144, 0
        %1171 = vmatprep.subr.bf16.mxu0 0
        %1172 = vmatpush1.bf16.msra.mxu0 %v1164
        %1173 = vmatprep.subr.bf16.mxu0 0
        %1174 = vmatpush1.bf16.msra.mxu0 %v1165
        %1175 = vmatprep.subr.bf16.mxu0 0
        %1176 = vmatpush1.bf16.msra.mxu0 0
        %1177 = vmatprep.subr.bf16.mxu0 0
        %1178 = vmatpush1.bf16.msra.mxu0 0
        %1179 = vmatprep.subr.bf16.mxu0 0
        %1180 = vmatpush1.bf16.msra.mxu0 0
        %1181 = vmatprep.subr.bf16.mxu0 0
        %1182 = vmatpush1.bf16.msra.mxu0 0
        %1183 = vmatprep.subr.bf16.mxu0 0
        %1184 = vmatpush1.bf16.msra.mxu0 0
        %1185 = vmatprep.subr.bf16.mxu0 0
        %1186 = vmatpush1.bf16.msra.mxu0 0
        %1187 = vmatprep.subr.bf16.mxu0 0
        %1188 = vmatpush1.bf16.msra.mxu0 0
        %1189 = vmatprep.subr.bf16.mxu0 0
        %1190 = vmatpush1.bf16.msra.mxu0 0
        %1191 = vmatprep.subr.bf16.mxu0 0
        %1192 = vmatpush1.bf16.msra.mxu0 0
        %1193 = vmatprep.subr.bf16.mxu0 0
        %1194 = vmatpush1.bf16.msra.mxu0 0
        %1195 = vmatprep.subr.bf16.mxu0 0
        %1196 = vmatpush1.bf16.msra.mxu0 0
        %1197 = vmatprep.subr.bf16.mxu0 0
        %1198 = vmatpush1.bf16.msra.mxu0 0
        %1199 = vmatprep.subr.bf16.mxu0 0
        %1200 = vmatpush1.bf16.msra.mxu0 0
        %1201 = vmatprep.subr.bf16.mxu0 0
        %1202 = vmatpush1.bf16.msra.mxu0 0
        %1203 = vmatprep.mubr.bf16.mxu0 0
        %1204 = vmatmul.mubr.bf16.gmra.mrb[0].mxu0 %v1169
        %v1205 = vpop.f32.mrb[0].mxu0
        %v1206 = vadd.f32 %v1154, %v1205
        %v1207 = vpop.f32.mrb[0].mxu0
        %v1208 = vpop.f32.mrb[0].mxu0
        %v1209 = vpop.f32.mrb[0].mxu0
        %1210 = vdwg.mxu0
        %v1211 = vmax.f32 %v1206, 0.0
        %v1212 = vpack.c.bf16 %v1211, %v1211
        %v1213 = vld [vmem:[%s11] sm:$0xf]
        %v1214 = vld [vmem:[%s11 + $0x4] sm:$0xf]
        %v1215 = vld [vmem:[%s11 + $0x8] sm:$0xf]
        %v1216 = vld [vmem:[%s11 + $0xc] sm:$0xf]
        %v1217 = vld [vmem:[%s11 + $0x10] sm:$0xf]
        %v1218 = vld [vmem:[%s11 + $0x14] sm:$0xf]
        %v1219 = vld [vmem:[%s11 + $0x18] sm:$0xf]
        %v1220 = vld [vmem:[%s11 + $0x1c] sm:$0xf]
        %v1221 = vld [vmem:[%s12] sm:$0x1]
        %v1223 = vlaneseq
        %v1224 = vshrl.u32 %v1223, 7
        %v1225 = vsub.s32 0, %v1224
        %v1226 = vrot.slane %v1221, %v1225
        %v1236 = vunpack.c.l.b16 %v1213
        %v1237 = vunpack.c.l.b16 %v1214
        %v1238 = vunpack.c.l.b16 %v1215
        %v1239 = vunpack.c.l.b16 %v1216
        %v1240 = vunpack.c.l.b16 %v1217
        %v1241 = vunpack.c.l.b16 %v1218
        %v1242 = vunpack.c.l.b16 %v1219
        %v1243 = vunpack.c.l.b16 %v1220
        %v1244 = vpack.c.b16 %v1237, %v1236
        %v1245 = vpack.c.b16 %v1239, %v1238
        %v1246 = vpack.c.b16 %v1241, %v1240
        %v1247 = vpack.c.b16 %v1243, %v1242
        %vm1252 = vcmask 523264
        %v1254 = vsel %vm1252, %v1212, 0
        %1256 = vmatprep.subr.bf16.mxu0 0
        %1257 = vmatpush1.bf16.msra.mxu0 %v1244
        %1258 = vmatprep.subr.bf16.mxu0 0
        %1259 = vmatpush1.bf16.msra.mxu0 %v1245
        %1260 = vmatprep.subr.bf16.mxu0 0
        %1261 = vmatpush1.bf16.msra.mxu0 %v1246
        %1262 = vmatprep.subr.bf16.mxu0 0
        %1263 = vmatpush1.bf16.msra.mxu0 %v1247
        %1264 = vmatprep.subr.bf16.mxu0 0
        %1265 = vmatpush1.bf16.msra.mxu0 0
        %1266 = vmatprep.subr.bf16.mxu0 0
        %1267 = vmatpush1.bf16.msra.mxu0 0
        %1268 = vmatprep.subr.bf16.mxu0 0
        %1269 = vmatpush1.bf16.msra.mxu0 0
        %1270 = vmatprep.subr.bf16.mxu0 0
        %1271 = vmatpush1.bf16.msra.mxu0 0
        %1272 = vmatprep.subr.bf16.mxu0 0
        %1273 = vmatpush1.bf16.msra.mxu0 0
        %1274 = vmatprep.subr.bf16.mxu0 0
        %1275 = vmatpush1.bf16.msra.mxu0 0
        %1276 = vmatprep.subr.bf16.mxu0 0
        %1277 = vmatpush1.bf16.msra.mxu0 0
        %1278 = vmatprep.subr.bf16.mxu0 0
        %1279 = vmatpush1.bf16.msra.mxu0 0
        %1280 = vmatprep.subr.bf16.mxu0 0
        %1281 = vmatpush1.bf16.msra.mxu0 0
        %1282 = vmatprep.subr.bf16.mxu0 0
        %1283 = vmatpush1.bf16.msra.mxu0 0
        %1284 = vmatprep.subr.bf16.mxu0 0
        %1285 = vmatpush1.bf16.msra.mxu0 0
        %1286 = vmatprep.subr.bf16.mxu0 0
        %1287 = vmatpush1.bf16.msra.mxu0 0
        %1288 = vmatprep.mubr.bf16.mxu0 0
        %1289 = vmatmul.mubr.bf16.gmra.mrb[0].mxu0 %v1254
        %v1290 = vpop.f32.mrb[0].mxu0
        %v1291 = vadd.f32 %v1226, %v1290
        %v1292 = vpop.f32.mrb[0].mxu0
        %v1293 = vpop.f32.mrb[0].mxu0
        %v1294 = vpop.f32.mrb[0].mxu0
        %1295 = vdwg.mxu0
        %v1296 = vadd.f32 %v1114, %v1291
        %1297 = vst.msk [vmem:[%s482] sm:$0xff] %vm489, %v1296
        %s1298 = sand.u32 %s316, 1
        %s1299 = scalar_lea.sflag [#allocation4], %s1298
        %s1300 = sand.u32 %s316, 1
        %s1301 = smul.addr %s1300, 8
        %s1302 = scalar_lea.vmem [#allocation10], %s1301
        // Predicated region
        $region89: #{tpu_custom_call.1} parent=71 // pred_check
          %p1303 = pneg %p326
        $region90: #{tpu_custom_call.1} parent=71 // pred_check_branch
          %1305 = sbr.rel (%p1303) target = $region92
        $region91: #{tpu_custom_call.1} parent=71 // pred_region
          %s1307 = ssub.s32 128, 128
          %1308 = vsyncadd %s1299, %s1307
          %s1309 = smul.addr %s30, 128
          %s1310 = scalar_lea.hbm %s13, %s1309
          %s1312 = sshll.u32 %s1302, 4
          %s1313 = int_to_ptr.vmem [resolvable:$true] %s1312
          %1315 = dma.vmem_to_hbm [thread:$0]  %s1313, 128, %s1310, %s1299
        $region92: #{tpu_custom_call.1} parent=71 // pred_fallthru
          _
      $region72: #{tpu_custom_call.1} parent=5 // pred_fallthru
        _
      %p1316 = scmp.le.s32.totalorder 2, %s25
      // Predicated region
      $region93: #{tpu_custom_call.1} parent=5 // pred_check
        %p1317 = pneg %p1316
      $region94: #{tpu_custom_call.1} parent=5 // pred_check_branch
        %1319 = sbr.rel (%p1317) target = $region96
      $region95: #{tpu_custom_call.1} parent=5 // pred_region
        %s1320 = ssub.s32 %s25, 2
        // Predicated region
        $region97: #{tpu_custom_call.1} parent=95 // pred_check
          %p1321 = pneg %p332
        $region98: #{tpu_custom_call.1} parent=95 // pred_check_branch
          %1323 = sbr.rel (%p1321) target = $region100
        $region99: #{tpu_custom_call.1} parent=95 // pred_region
          %s1324 = sand.u32 %s317, 1
          %s1325 = scalar_lea.sflag [#allocation4], %s1324
          %s1326 = sand.u32 %s317, 1
          %s1327 = smul.addr %s1326, 8
          %s1328 = scalar_lea.vmem [#allocation10], %s1327
          %1329 = dma.done %s1325, 128
        $region100: #{tpu_custom_call.1} parent=95 // pred_fallthru
          _
      $region96: #{tpu_custom_call.1} parent=5 // pred_fallthru
        _
    $region6: #{tpu_custom_call.1} parent=1 // loop_footer
      %s29 = sadd.s32 1, %s25
    $region7: #{tpu_custom_call.1} parent=1 // loop_footer_branch
      %24 = sbr.rel target = $region3
    $region8: #{tpu_custom_call.1} parent=1 // loop_exit
      _
    %1330 = vsyncpa [#allocation3], 1
    %s1331 = scalar_lea.sflag [#allocation3], 1
    %1332 = vsyncpa %s1331, 1
    %1333 = vsyncpa [#allocation6], 1
    %1334 = vsyncpa [#allocation9], 1
    %1335 = vsyncpa [#allocation4], 1
    %s1336 = scalar_lea.sflag [#allocation4], 1
    %1337 = vsyncpa %s1336, 1

</llo_original>
